<compile_context>
chip_gen: v5e
topology: v5e:2x2
jax: 0.10.0
libtpu: 0.0.40
codegen_flags: <defaults>
</compile_context>

<pallas_src>
import numpy as np
import jax
import jax.numpy as jnp
from jax.experimental import pallas as pl
from jax.experimental.pallas import tpu as pltpu


# ---------------------------------------------------------------------------
# Fused forward kernel: one grid step == B_TILE samples.
#   x_ref   : (Ho1*B, 3*W*C)   conv1 row-strips, rows = (oh1, b)
#   act_ref : (B, A)           actions, rows = b
#   out_ref : (B, 128)         lane-dense Q slab (column 0 is the real Q)
# ---------------------------------------------------------------------------
def _conv_critic_kernel(x_ref, act_ref,
                        m1_ref, b1_ref, m2_ref, b2_ref,
                        wfc_ref, bfc_ref, lng_ref, lnb_ref,
                        wt1f_ref, wt1a_ref, bt1_ref,
                        wt2_ref, bt2_ref, wt3_ref, bt3_ref,
                        out_ref):
    f32 = jnp.float32
    bt = act_ref.shape[0]            # batch tile (static)
    kh = m2_ref.shape[0]             # conv kernel rows (3, static)
    ho2 = wfc_ref.shape[0]           # conv2 output rows per sample (static)
    r2 = ho2 * bt

    # ---- conv1 (3x3, stride 2) + ReLU: rows = (oh1, b), lanes = (ow1, filter) ----
    h1 = jnp.dot(x_ref[...], m1_ref[...], preferred_element_type=f32)
    h1 = jnp.maximum(h1 + b1_ref[...], 0.0)

    # ---- conv2 (3x3, stride 1) + ReLU: 3 aligned row-shifted slices of h1,
    #      each through a banded lane-mixing matrix; rows = (oh2, b) ----
    h2 = jnp.dot(h1[0:r2, :], m2_ref[0], preferred_element_type=f32)
    for i in range(1, kh):
        h2 = h2 + jnp.dot(h1[i * bt:i * bt + r2, :], m2_ref[i],
                          preferred_element_type=f32)
    h2 = jnp.maximum(h2 + b2_ref[...], 0.0)

    # ---- encoder fc (NCHW flatten order folded into wfc layout); rows = b ----
    acc = jnp.dot(h2[0:bt, :], wfc_ref[0], preferred_element_type=f32)
    for o in range(1, ho2):
        acc = acc + jnp.dot(h2[o * bt:(o + 1) * bt, :], wfc_ref[o],
                            preferred_element_type=f32)
    feat = acc + bfc_ref[...]

    # ---- LayerNorm (biased variance, eps=1e-5, like torch) + tanh (f32) ----
    mean = jnp.mean(feat, axis=-1, keepdims=True)
    var = jnp.mean((feat - mean) ** 2, axis=-1, keepdims=True)
    feat = (feat - mean) * jax.lax.rsqrt(var + 1e-5)
    feat = jnp.tanh(feat * lng_ref[...] + lnb_ref[...])

    # ---- trunk MLP; concat([feature, action]) folded into split t1 weights ----
    h = (jnp.dot(feat, wt1f_ref[...], preferred_element_type=f32)
         + jnp.dot(act_ref[...], wt1a_ref[...], preferred_element_type=f32)
         + bt1_ref[...])
    h = jnp.maximum(h, 0.0)
    h = jnp.maximum(jnp.dot(h, wt2_ref[...], preferred_element_type=f32)
                    + bt2_ref[...], 0.0)
    out_ref[...] = (jnp.dot(h, wt3_ref[...], preferred_element_type=f32)
                    + bt3_ref[...])


_PARAM_ORDER = ("m1", "b1", "m2", "b2", "wfc", "bfc", "ln_g", "ln_b",
                "wt1f", "wt1a", "bt1", "wt2", "bt2", "wt3", "bt3")


def _full_spec(a):
    nd = a.ndim
    return pl.BlockSpec(a.shape, lambda i: (0,) * nd)   # grid-invariant weight


def conv_critic_forward(params, obs, action, b_tile=8):
    """Q(obs, action).  obs: (N, C, H, W) NCHW float;  action: (N, A)."""
    N, C, H, W = obs.shape
    A = action.shape[1]
    k = 3
    ho1 = (H - k) // 2 + 1
    kwc = k * W * C
    out_pad = params["wt3"].shape[1]

    n_pad = ((N + b_tile - 1) // b_tile) * b_tile
    nb = n_pad // b_tile
    obs_f = obs.astype(jnp.float32)
    act_f = action.astype(jnp.float32)
    if n_pad != N:
        obs_f = jnp.concatenate(
            [obs_f, jnp.zeros((n_pad - N, C, H, W), jnp.float32)], axis=0)
        act_f = jnp.concatenate(
            [act_f, jnp.zeros((n_pad - N, A), jnp.float32)], axis=0)

    # Wrapper-side layout plumbing (HBM ops only, nothing dense lands in VMEM):
    #  * NCHW -> NHWC, then a row-only im2col: each conv1 output row keeps its 3
    #    input rows flattened to (tap_row, iw, c) on the lane dim.
    #  * rows are ordered (block, oh1, sample-in-block) so the kernel sees a
    #    plain 2-D (ho1*b_tile, 3*W*C) tile with the batch on aligned sublanes.
    x = jnp.transpose(obs_f, (0, 2, 3, 1))                          # (n_pad,H,W,C)
    strips = jnp.stack([x[:, 2 * o:2 * o + k] for o in range(ho1)], axis=1)
    strips = strips.reshape(n_pad, ho1, kwc)
    strips = strips.reshape(nb, b_tile, ho1, kwc).transpose(0, 2, 1, 3)
    strips = strips.reshape(nb * ho1 * b_tile, kwc)

    weights = [params[name] for name in _PARAM_ORDER]

    # Advisory cost estimate so XLA can overlap surrounding ops with the kernel.
    lw1 = params["m1"].shape[1]
    lw2 = params["m2"].shape[2]
    ho2 = params["wfc"].shape[0]
    feat_dim = params["wfc"].shape[2]
    hidden = params["wt2"].shape[0]
    flops = nb * (2 * (ho1 * b_tile) * kwc * lw1
                  + params["m2"].shape[0] * 2 * (ho2 * b_tile) * lw1 * lw2
                  + ho2 * 2 * b_tile * lw2 * feat_dim
                  + 2 * b_tile * (feat_dim + A) * hidden
                  + 2 * b_tile * hidden * hidden
                  + 2 * b_tile * hidden * out_pad)
    bytes_accessed = 4 * (int(strips.size) + int(act_f.size) + n_pad * out_pad
                          + nb * sum(int(w.size) for w in weights))
    cost = pl.CostEstimate(flops=int(flops),
                           transcendentals=int(n_pad * (feat_dim + 1)),
                           bytes_accessed=int(bytes_accessed))

    out = pl.pallas_call(
        _conv_critic_kernel,
        out_shape=jax.ShapeDtypeStruct((n_pad, out_pad), jnp.float32),
        grid=(nb,),
        in_specs=[pl.BlockSpec((ho1 * b_tile, kwc), lambda i: (i, 0)),
                  pl.BlockSpec((b_tile, A), lambda i: (i, 0))]
                 + [_full_spec(w) for w in weights],
        out_specs=pl.BlockSpec((b_tile, out_pad), lambda i: (i, 0)),
        compiler_params=pltpu.CompilerParams(
            dimension_semantics=("parallel",)),
        cost_estimate=cost,
    )(strips, act_f, *weights)
    # TODO(synk): goal_conditioned branch omitted (constructor default False);
    # it would run the same fused encoder on `goal` and widen the trunk input.
    return out[:N, :1]


# ---------------------------------------------------------------------------
# Deterministic parameter init (mirrors torch orthogonal_init) + the banded
# conv-as-matmul weight layouts.  All kernel-side layouts are built ONCE here.
# ---------------------------------------------------------------------------
def orthogonal(key, shape, gain=1.0):
    rows = shape[0]
    cols = int(np.prod(shape[1:]))
    flat = jax.random.normal(key, (rows, cols), jnp.float32)
    transposed = rows < cols
    if transposed:
        flat = flat.T
    q, r = jnp.linalg.qr(flat)
    q = q * jnp.sign(jnp.diagonal(r))
    if transposed:
        q = q.T
    return (gain * q).reshape(shape).astype(jnp.float32)


def make_params(key, obs_shape, action_dim, feature_dim, hidden_dim,
                num_filters=8, k=3, out_pad=128):
    C, H, W = obs_shape
    F_ = num_filters
    gain_relu = float(np.sqrt(2.0))
    ks = jax.random.split(key, 6)
    w1 = orthogonal(ks[0], (F_, C, k, k), gain_relu)          # torch OIHW
    w2 = orthogonal(ks[1], (F_, F_, k, k), gain_relu)
    ho1 = (H - k) // 2 + 1
    wo1 = (W - k) // 2 + 1
    ho2 = ho1 - k + 1
    wo2 = wo1 - k + 1
    conv_flat = F_ * ho2 * wo2
    fc = orthogonal(ks[2], (feature_dim, conv_flat))          # torch (out,in)
    t1 = orthogonal(ks[3], (hidden_dim, feature_dim + action_dim))
    t2 = orthogonal(ks[4], (hidden_dim, hidden_dim))
    t3 = orthogonal(ks[5], (1, hidden_dim))

    w1n, w2n, fcn = np.asarray(w1), np.asarray(w2), np.asarray(fc)
    b1 = np.zeros((F_,), np.float32)
    b2 = np.zeros((F_,), np.float32)

    # conv1 banded matrix: strip lane (i, iw, c) -> output lane (ow1, g), stride 2
    m1 = np.zeros((k * W * C, wo1 * F_), np.float32)
    for g in range(F_):
        for c in range(C):
            for i in range(k):
                for j in range(k):
                    for ow in range(wo1):
                        iw = 2 * ow + j
                        m1[i * W * C + iw * C + c, ow * F_ + g] = w1n[g, c, i, j]

    # conv2 banded matrices (one per kernel row): lane (ow1, f) -> lane (ow2, g)
    m2 = np.zeros((k, wo1 * F_, wo2 * F_), np.float32)
    for i in range(k):
        for g in range(F_):
            for f in range(F_):
                for j in range(k):
                    for ow2 in range(wo2):
                        m2[i, (ow2 + j) * F_ + f, ow2 * F_ + g] = w2n[g, f, i, j]

    # encoder fc regrouped per conv2 output row; folds NCHW flatten order
    wfc = np.zeros((ho2, wo2 * F_, feature_dim), np.float32)
    for oh2 in range(ho2):
        for ow2 in range(wo2):
            for g in range(F_):
                wfc[oh2, ow2 * F_ + g, :] = fcn[:, g * ho2 * wo2 + oh2 * wo2 + ow2]

    z = lambda *s: jnp.zeros(s, jnp.float32)
    params = dict(
        m1=jnp.asarray(m1),
        b1=jnp.asarray(np.tile(b1, wo1)).reshape(1, wo1 * F_),
        m2=jnp.asarray(m2),
        b2=jnp.asarray(np.tile(b2, wo2)).reshape(1, wo2 * F_),
        wfc=jnp.asarray(wfc),
        bfc=z(1, feature_dim),
        ln_g=jnp.ones((1, feature_dim), jnp.float32),
        ln_b=z(1, feature_dim),
        wt1f=t1[:, :feature_dim].T,
        wt1a=t1[:, feature_dim:].T,
        bt1=z(1, hidden_dim),
        wt2=t2.T, bt2=z(1, hidden_dim),
        wt3=z(hidden_dim, out_pad).at[:, 0].set(t3[0]),
        bt3=z(1, out_pad),
    )
    raw = dict(w1=w1, b1=z(F_), w2=w2, b2=z(F_),
               fc=fc, bfc=z(feature_dim),
               ln_g=jnp.ones((feature_dim,), jnp.float32), ln_b=z(feature_dim),
               t1=t1, bt1=z(hidden_dim), t2=t2, bt2=z(hidden_dim),
               t3=t3, bt3=z(1))
    return params, raw


# ---------------------------------------------------------------------------
# Pure-JAX reference (torch-equivalent) for a numerical sanity check.
# ---------------------------------------------------------------------------
def reference_forward(raw, obs, action):
    dn = ("NCHW", "OIHW", "NCHW")
    x = jax.lax.conv_general_dilated(obs, raw["w1"], (2, 2), "VALID",
                                     dimension_numbers=dn)
    x = jax.nn.relu(x + raw["b1"].reshape(1, -1, 1, 1))
    x = jax.lax.conv_general_dilated(x, raw["w2"], (1, 1), "VALID",
                                     dimension_numbers=dn)
    x = jax.nn.relu(x + raw["b2"].reshape(1, -1, 1, 1))
    x = x.reshape(x.shape[0], -1)
    x = x @ raw["fc"].T + raw["bfc"]
    mean = x.mean(-1, keepdims=True)
    var = ((x - mean) ** 2).mean(-1, keepdims=True)
    feat = jnp.tanh((x - mean) * jax.lax.rsqrt(var + 1e-5) * raw["ln_g"] + raw["ln_b"])
    h = jnp.concatenate([feat, action], axis=1)
    h = jax.nn.relu(h @ raw["t1"].T + raw["bt1"])
    h = jax.nn.relu(h @ raw["t2"].T + raw["bt2"])
    return h @ raw["t3"].T + raw["bt3"]


if __name__ == "__main__":
    jax.config.update("jax_default_matmul_precision", "highest")

    key = jax.random.PRNGKey(0)
    k_param, k_obs, k_act = jax.random.split(key, 3)

    batch, C, H, W = 2, 4, 16, 16
    action_dim, feature_dim, hidden_dim = 6, 32, 32

    params, raw = make_params(k_param, (C, H, W), action_dim, feature_dim, hidden_dim)
    obs = jax.random.normal(k_obs, (batch, C, H, W), jnp.float32)     # NCHW
    action = jax.random.normal(k_act, (batch, action_dim), jnp.float32)

    q = conv_critic_forward(params, obs, action)
    q = jax.block_until_ready(q)
    assert q.shape == (batch, 1), q.shape
    assert bool(jnp.all(jnp.isfinite(q)))

    q_ref = reference_forward(raw, obs, action)
    assert bool(jnp.allclose(q, q_ref, atol=5e-3, rtol=5e-3)), (q, q_ref)
    print("KERNEL_OK")
</pallas_src>

<mosaic_0001>
module attributes {stable_mosaic.version = 11 : i64} {
  func.func @_conv_critic_kernel(%arg0: i32, %arg1: memref<56x192xf32, #tpu.memory_space<vmem>>, %arg2: memref<8x6xf32, #tpu.memory_space<vmem>>, %arg3: memref<192x56xf32, #tpu.memory_space<vmem>>, %arg4: memref<1x56xf32, #tpu.memory_space<vmem>>, %arg5: memref<3x56x40xf32, #tpu.memory_space<vmem>>, %arg6: memref<1x40xf32, #tpu.memory_space<vmem>>, %arg7: memref<5x40x32xf32, #tpu.memory_space<vmem>>, %arg8: memref<1x32xf32, #tpu.memory_space<vmem>>, %arg9: memref<1x32xf32, #tpu.memory_space<vmem>>, %arg10: memref<1x32xf32, #tpu.memory_space<vmem>>, %arg11: memref<32x32xf32, #tpu.memory_space<vmem>>, %arg12: memref<6x32xf32, #tpu.memory_space<vmem>>, %arg13: memref<1x32xf32, #tpu.memory_space<vmem>>, %arg14: memref<32x32xf32, #tpu.memory_space<vmem>>, %arg15: memref<1x32xf32, #tpu.memory_space<vmem>>, %arg16: memref<32x128xf32, #tpu.memory_space<vmem>>, %arg17: memref<1x128xf32, #tpu.memory_space<vmem>>, %arg18: memref<8x128xf32, #tpu.memory_space<vmem>>) attributes {dimension_semantics = [#tpu.dimension_semantics<parallel>], iteration_bounds = array<i64: 1>, scalar_prefetch = 0 : i64, scratch_operands = 0 : i64, tpu.core_type = #tpu.core_type<tc>, window_params = [{transform_indices = @transform_0, window_bounds = array<i64: 56, 192>}, {transform_indices = @transform_1, window_bounds = array<i64: 8, 6>}, {pipeline_mode = #tpu.pipeline_mode<synchronous>, transform_indices = @transform_2, window_bounds = array<i64: 192, 56>}, {pipeline_mode = #tpu.pipeline_mode<synchronous>, transform_indices = @transform_3, window_bounds = array<i64: 1, 56>}, {pipeline_mode = #tpu.pipeline_mode<synchronous>, transform_indices = @transform_4, window_bounds = array<i64: 3, 56, 40>}, {pipeline_mode = #tpu.pipeline_mode<synchronous>, transform_indices = @transform_5, window_bounds = array<i64: 1, 40>}, {pipeline_mode = #tpu.pipeline_mode<synchronous>, transform_indices = @transform_6, window_bounds = array<i64: 5, 40, 32>}, {pipeline_mode = #tpu.pipeline_mode<synchronous>, transform_indices = @transform_7, window_bounds = array<i64: 1, 32>}, {pipeline_mode = #tpu.pipeline_mode<synchronous>, transform_indices = @transform_8, window_bounds = array<i64: 1, 32>}, {pipeline_mode = #tpu.pipeline_mode<synchronous>, transform_indices = @transform_9, window_bounds = array<i64: 1, 32>}, {pipeline_mode = #tpu.pipeline_mode<synchronous>, transform_indices = @transform_10, window_bounds = array<i64: 32, 32>}, {pipeline_mode = #tpu.pipeline_mode<synchronous>, transform_indices = @transform_11, window_bounds = array<i64: 6, 32>}, {pipeline_mode = #tpu.pipeline_mode<synchronous>, transform_indices = @transform_12, window_bounds = array<i64: 1, 32>}, {pipeline_mode = #tpu.pipeline_mode<synchronous>, transform_indices = @transform_13, window_bounds = array<i64: 32, 32>}, {pipeline_mode = #tpu.pipeline_mode<synchronous>, transform_indices = @transform_14, window_bounds = array<i64: 1, 32>}, {pipeline_mode = #tpu.pipeline_mode<synchronous>, transform_indices = @transform_15, window_bounds = array<i64: 32, 128>}, {pipeline_mode = #tpu.pipeline_mode<synchronous>, transform_indices = @transform_16, window_bounds = array<i64: 1, 128>}, {transform_indices = @transform_17, window_bounds = array<i64: 8, 128>}]} {
    %c0 = arith.constant 0 : index
    %c0_0 = arith.constant 0 : index
    %0 = vector.load %arg1[%c0, %c0_0] : memref<56x192xf32, #tpu.memory_space<vmem>>, vector<56x192xf32>
    %c0_1 = arith.constant 0 : index
    %c0_2 = arith.constant 0 : index
    %1 = vector.load %arg3[%c0_1, %c0_2] : memref<192x56xf32, #tpu.memory_space<vmem>>, vector<192x56xf32>
    %cst = arith.constant dense<0.000000e+00> : vector<56x56xf32>
    %2 = tpu.matmul %0, %1, %cst {dimension_numbers = #tpu.dot_dimension_numbers<[1], [0], [0], [1], [0, 0, 1, 1], [], []>, precision = #tpu.contract_precision<fp32>} : vector<56x192xf32>, vector<192x56xf32>, vector<56x56xf32> -> vector<56x56xf32>
    %c0_3 = arith.constant 0 : index
    %c0_4 = arith.constant 0 : index
    %3 = vector.load %arg4[%c0_3, %c0_4] : memref<1x56xf32, #tpu.memory_space<vmem>>, vector<1x56xf32>
    %4 = vector.broadcast %3 : vector<1x56xf32> to vector<56x56xf32>
    %5 = arith.addf %2, %4 : vector<56x56xf32>
    %cst_5 = arith.constant 0.000000e+00 : f32
    %6 = vector.broadcast %cst_5 : f32 to vector<56x56xf32>
    %7 = arith.maximumf %5, %6 : vector<56x56xf32>
    %8 = vector.extract_strided_slice %7 {offsets = [0, 0], sizes = [40, 56], strides = [1, 1]} : vector<56x56xf32> to vector<40x56xf32>
    %c0_6 = arith.constant 0 : index
    %c0_7 = arith.constant 0 : index
    %c0_8 = arith.constant 0 : index
    %9 = vector.load %arg5[%c0_6, %c0_7, %c0_8] : memref<3x56x40xf32, #tpu.memory_space<vmem>>, vector<1x56x40xf32>
    %10 = vector.shape_cast %9 : vector<1x56x40xf32> to vector<56x40xf32>
    %cst_9 = arith.constant dense<0.000000e+00> : vector<40x40xf32>
    %11 = tpu.matmul %8, %10, %cst_9 {dimension_numbers = #tpu.dot_dimension_numbers<[1], [0], [0], [1], [0, 0, 1, 1], [], []>, precision = #tpu.contract_precision<fp32>} : vector<40x56xf32>, vector<56x40xf32>, vector<40x40xf32> -> vector<40x40xf32>
    %12 = vector.extract_strided_slice %7 {offsets = [8, 0], sizes = [40, 56], strides = [1, 1]} : vector<56x56xf32> to vector<40x56xf32>
    %c1 = arith.constant 1 : index
    %c0_10 = arith.constant 0 : index
    %c0_11 = arith.constant 0 : index
    %13 = vector.load %arg5[%c1, %c0_10, %c0_11] : memref<3x56x40xf32, #tpu.memory_space<vmem>>, vector<1x56x40xf32>
    %14 = vector.shape_cast %13 : vector<1x56x40xf32> to vector<56x40xf32>
    %cst_12 = arith.constant dense<0.000000e+00> : vector<40x40xf32>
    %15 = tpu.matmul %12, %14, %cst_12 {dimension_numbers = #tpu.dot_dimension_numbers<[1], [0], [0], [1], [0, 0, 1, 1], [], []>, precision = #tpu.contract_precision<fp32>} : vector<40x56xf32>, vector<56x40xf32>, vector<40x40xf32> -> vector<40x40xf32>
    %16 = arith.addf %11, %15 : vector<40x40xf32>
    %17 = vector.extract_strided_slice %7 {offsets = [16, 0], sizes = [40, 56], strides = [1, 1]} : vector<56x56xf32> to vector<40x56xf32>
    %c2 = arith.constant 2 : index
    %c0_13 = arith.constant 0 : index
    %c0_14 = arith.constant 0 : index
    %18 = vector.load %arg5[%c2, %c0_13, %c0_14] : memref<3x56x40xf32, #tpu.memory_space<vmem>>, vector<1x56x40xf32>
    %19 = vector.shape_cast %18 : vector<1x56x40xf32> to vector<56x40xf32>
    %cst_15 = arith.constant dense<0.000000e+00> : vector<40x40xf32>
    %20 = tpu.matmul %17, %19, %cst_15 {dimension_numbers = #tpu.dot_dimension_numbers<[1], [0], [0], [1], [0, 0, 1, 1], [], []>, precision = #tpu.contract_precision<fp32>} : vector<40x56xf32>, vector<56x40xf32>, vector<40x40xf32> -> vector<40x40xf32>
    %21 = arith.addf %16, %20 : vector<40x40xf32>
    %c0_16 = arith.constant 0 : index
    %c0_17 = arith.constant 0 : index
    %22 = vector.load %arg6[%c0_16, %c0_17] : memref<1x40xf32, #tpu.memory_space<vmem>>, vector<1x40xf32>
    %23 = vector.broadcast %22 : vector<1x40xf32> to vector<40x40xf32>
    %24 = arith.addf %21, %23 : vector<40x40xf32>
    %cst_18 = arith.constant 0.000000e+00 : f32
    %25 = vector.broadcast %cst_18 : f32 to vector<40x40xf32>
    %26 = arith.maximumf %24, %25 : vector<40x40xf32>
    %27 = vector.extract_strided_slice %26 {offsets = [0, 0], sizes = [8, 40], strides = [1, 1]} : vector<40x40xf32> to vector<8x40xf32>
    %c0_19 = arith.constant 0 : index
    %c0_20 = arith.constant 0 : index
    %c0_21 = arith.constant 0 : index
    %28 = vector.load %arg7[%c0_19, %c0_20, %c0_21] : memref<5x40x32xf32, #tpu.memory_space<vmem>>, vector<1x40x32xf32>
    %29 = vector.shape_cast %28 : vector<1x40x32xf32> to vector<40x32xf32>
    %cst_22 = arith.constant dense<0.000000e+00> : vector<8x32xf32>
    %30 = tpu.matmul %27, %29, %cst_22 {dimension_numbers = #tpu.dot_dimension_numbers<[1], [0], [0], [1], [0, 0, 1, 1], [], []>, precision = #tpu.contract_precision<fp32>} : vector<8x40xf32>, vector<40x32xf32>, vector<8x32xf32> -> vector<8x32xf32>
    %31 = vector.extract_strided_slice %26 {offsets = [8, 0], sizes = [8, 40], strides = [1, 1]} : vector<40x40xf32> to vector<8x40xf32>
    %c1_23 = arith.constant 1 : index
    %c0_24 = arith.constant 0 : index
    %c0_25 = arith.constant 0 : index
    %32 = vector.load %arg7[%c1_23, %c0_24, %c0_25] : memref<5x40x32xf32, #tpu.memory_space<vmem>>, vector<1x40x32xf32>
    %33 = vector.shape_cast %32 : vector<1x40x32xf32> to vector<40x32xf32>
    %cst_26 = arith.constant dense<0.000000e+00> : vector<8x32xf32>
    %34 = tpu.matmul %31, %33, %cst_26 {dimension_numbers = #tpu.dot_dimension_numbers<[1], [0], [0], [1], [0, 0, 1, 1], [], []>, precision = #tpu.contract_precision<fp32>} : vector<8x40xf32>, vector<40x32xf32>, vector<8x32xf32> -> vector<8x32xf32>
    %35 = arith.addf %30, %34 : vector<8x32xf32>
    %36 = vector.extract_strided_slice %26 {offsets = [16, 0], sizes = [8, 40], strides = [1, 1]} : vector<40x40xf32> to vector<8x40xf32>
    %c2_27 = arith.constant 2 : index
    %c0_28 = arith.constant 0 : index
    %c0_29 = arith.constant 0 : index
    %37 = vector.load %arg7[%c2_27, %c0_28, %c0_29] : memref<5x40x32xf32, #tpu.memory_space<vmem>>, vector<1x40x32xf32>
    %38 = vector.shape_cast %37 : vector<1x40x32xf32> to vector<40x32xf32>
    %cst_30 = arith.constant dense<0.000000e+00> : vector<8x32xf32>
    %39 = tpu.matmul %36, %38, %cst_30 {dimension_numbers = #tpu.dot_dimension_numbers<[1], [0], [0], [1], [0, 0, 1, 1], [], []>, precision = #tpu.contract_precision<fp32>} : vector<8x40xf32>, vector<40x32xf32>, vector<8x32xf32> -> vector<8x32xf32>
    %40 = arith.addf %35, %39 : vector<8x32xf32>
    %41 = vector.extract_strided_slice %26 {offsets = [24, 0], sizes = [8, 40], strides = [1, 1]} : vector<40x40xf32> to vector<8x40xf32>
    %c3 = arith.constant 3 : index
    %c0_31 = arith.constant 0 : index
    %c0_32 = arith.constant 0 : index
    %42 = vector.load %arg7[%c3, %c0_31, %c0_32] : memref<5x40x32xf32, #tpu.memory_space<vmem>>, vector<1x40x32xf32>
    %43 = vector.shape_cast %42 : vector<1x40x32xf32> to vector<40x32xf32>
    %cst_33 = arith.constant dense<0.000000e+00> : vector<8x32xf32>
    %44 = tpu.matmul %41, %43, %cst_33 {dimension_numbers = #tpu.dot_dimension_numbers<[1], [0], [0], [1], [0, 0, 1, 1], [], []>, precision = #tpu.contract_precision<fp32>} : vector<8x40xf32>, vector<40x32xf32>, vector<8x32xf32> -> vector<8x32xf32>
    %45 = arith.addf %40, %44 : vector<8x32xf32>
    %46 = vector.extract_strided_slice %26 {offsets = [32, 0], sizes = [8, 40], strides = [1, 1]} : vector<40x40xf32> to vector<8x40xf32>
    %c4 = arith.constant 4 : index
    %c0_34 = arith.constant 0 : index
    %c0_35 = arith.constant 0 : index
    %47 = vector.load %arg7[%c4, %c0_34, %c0_35] : memref<5x40x32xf32, #tpu.memory_space<vmem>>, vector<1x40x32xf32>
    %48 = vector.shape_cast %47 : vector<1x40x32xf32> to vector<40x32xf32>
    %cst_36 = arith.constant dense<0.000000e+00> : vector<8x32xf32>
    %49 = tpu.matmul %46, %48, %cst_36 {dimension_numbers = #tpu.dot_dimension_numbers<[1], [0], [0], [1], [0, 0, 1, 1], [], []>, precision = #tpu.contract_precision<fp32>} : vector<8x40xf32>, vector<40x32xf32>, vector<8x32xf32> -> vector<8x32xf32>
    %50 = arith.addf %45, %49 : vector<8x32xf32>
    %c0_37 = arith.constant 0 : index
    %c0_38 = arith.constant 0 : index
    %51 = vector.load %arg8[%c0_37, %c0_38] : memref<1x32xf32, #tpu.memory_space<vmem>>, vector<1x32xf32>
    %52 = vector.broadcast %51 : vector<1x32xf32> to vector<8x32xf32>
    %53 = arith.addf %50, %52 : vector<8x32xf32>
    %cst_39 = arith.constant dense<0.000000e+00> : vector<8xf32>
    %54 = vector.multi_reduction <add>, %53, %cst_39 [1] : vector<8x32xf32> to vector<8xf32>
    %55 = vector.shape_cast %54 : vector<8xf32> to vector<8x1xf32>
    %cst_40 = arith.constant 3.200000e+01 : f32
    %56 = vector.broadcast %cst_40 : f32 to vector<8x1xf32>
    %57 = arith.divf %55, %56 : vector<8x1xf32>
    %58 = vector.broadcast %57 : vector<8x1xf32> to vector<8x32xf32>
    %59 = arith.subf %53, %58 : vector<8x32xf32>
    %60 = arith.mulf %59, %59 : vector<8x32xf32>
    %cst_41 = arith.constant dense<0.000000e+00> : vector<8xf32>
    %61 = vector.multi_reduction <add>, %60, %cst_41 [1] : vector<8x32xf32> to vector<8xf32>
    %62 = vector.shape_cast %61 : vector<8xf32> to vector<8x1xf32>
    %cst_42 = arith.constant 3.200000e+01 : f32
    %63 = vector.broadcast %cst_42 : f32 to vector<8x1xf32>
    %64 = arith.divf %62, %63 : vector<8x1xf32>
    %65 = vector.broadcast %57 : vector<8x1xf32> to vector<8x32xf32>
    %66 = arith.subf %53, %65 : vector<8x32xf32>
    %cst_43 = arith.constant 9.99999974E-6 : f32
    %67 = vector.broadcast %cst_43 : f32 to vector<8x1xf32>
    %68 = arith.addf %64, %67 : vector<8x1xf32>
    %69 = math.rsqrt %68 : vector<8x1xf32>
    %70 = vector.broadcast %69 : vector<8x1xf32> to vector<8x32xf32>
    %71 = arith.mulf %66, %70 : vector<8x32xf32>
    %c0_44 = arith.constant 0 : index
    %c0_45 = arith.constant 0 : index
    %72 = vector.load %arg9[%c0_44, %c0_45] : memref<1x32xf32, #tpu.memory_space<vmem>>, vector<1x32xf32>
    %73 = vector.broadcast %72 : vector<1x32xf32> to vector<8x32xf32>
    %74 = arith.mulf %71, %73 : vector<8x32xf32>
    %c0_46 = arith.constant 0 : index
    %c0_47 = arith.constant 0 : index
    %75 = vector.load %arg10[%c0_46, %c0_47] : memref<1x32xf32, #tpu.memory_space<vmem>>, vector<1x32xf32>
    %76 = vector.broadcast %75 : vector<1x32xf32> to vector<8x32xf32>
    %77 = arith.addf %74, %76 : vector<8x32xf32>
    %78 = math.tanh %77 : vector<8x32xf32>
    %c0_48 = arith.constant 0 : index
    %c0_49 = arith.constant 0 : index
    %79 = vector.load %arg11[%c0_48, %c0_49] : memref<32x32xf32, #tpu.memory_space<vmem>>, vector<32x32xf32>
    %cst_50 = arith.constant dense<0.000000e+00> : vector<8x32xf32>
    %80 = tpu.matmul %78, %79, %cst_50 {dimension_numbers = #tpu.dot_dimension_numbers<[1], [0], [0], [1], [0, 0, 1, 1], [], []>, precision = #tpu.contract_precision<fp32>} : vector<8x32xf32>, vector<32x32xf32>, vector<8x32xf32> -> vector<8x32xf32>
    %c0_51 = arith.constant 0 : index
    %c0_52 = arith.constant 0 : index
    %81 = vector.load %arg2[%c0_51, %c0_52] : memref<8x6xf32, #tpu.memory_space<vmem>>, vector<8x6xf32>
    %c0_53 = arith.constant 0 : index
    %c0_54 = arith.constant 0 : index
    %82 = vector.load %arg12[%c0_53, %c0_54] : memref<6x32xf32, #tpu.memory_space<vmem>>, vector<6x32xf32>
    %cst_55 = arith.constant dense<0.000000e+00> : vector<8x32xf32>
    %83 = tpu.matmul %81, %82, %cst_55 {dimension_numbers = #tpu.dot_dimension_numbers<[1], [0], [0], [1], [0, 0, 1, 1], [], []>, precision = #tpu.contract_precision<fp32>} : vector<8x6xf32>, vector<6x32xf32>, vector<8x32xf32> -> vector<8x32xf32>
    %84 = arith.addf %80, %83 : vector<8x32xf32>
    %c0_56 = arith.constant 0 : index
    %c0_57 = arith.constant 0 : index
    %85 = vector.load %arg13[%c0_56, %c0_57] : memref<1x32xf32, #tpu.memory_space<vmem>>, vector<1x32xf32>
    %86 = vector.broadcast %85 : vector<1x32xf32> to vector<8x32xf32>
    %87 = arith.addf %84, %86 : vector<8x32xf32>
    %cst_58 = arith.constant 0.000000e+00 : f32
    %88 = vector.broadcast %cst_58 : f32 to vector<8x32xf32>
    %89 = arith.maximumf %87, %88 : vector<8x32xf32>
    %c0_59 = arith.constant 0 : index
    %c0_60 = arith.constant 0 : index
    %90 = vector.load %arg14[%c0_59, %c0_60] : memref<32x32xf32, #tpu.memory_space<vmem>>, vector<32x32xf32>
    %cst_61 = arith.constant dense<0.000000e+00> : vector<8x32xf32>
    %91 = tpu.matmul %89, %90, %cst_61 {dimension_numbers = #tpu.dot_dimension_numbers<[1], [0], [0], [1], [0, 0, 1, 1], [], []>, precision = #tpu.contract_precision<fp32>} : vector<8x32xf32>, vector<32x32xf32>, vector<8x32xf32> -> vector<8x32xf32>
    %c0_62 = arith.constant 0 : index
    %c0_63 = arith.constant 0 : index
    %92 = vector.load %arg15[%c0_62, %c0_63] : memref<1x32xf32, #tpu.memory_space<vmem>>, vector<1x32xf32>
    %93 = vector.broadcast %92 : vector<1x32xf32> to vector<8x32xf32>
    %94 = arith.addf %91, %93 : vector<8x32xf32>
    %cst_64 = arith.constant 0.000000e+00 : f32
    %95 = vector.broadcast %cst_64 : f32 to vector<8x32xf32>
    %96 = arith.maximumf %94, %95 : vector<8x32xf32>
    %c0_65 = arith.constant 0 : index
    %c0_66 = arith.constant 0 : index
    %97 = vector.load %arg16[%c0_65, %c0_66] : memref<32x128xf32, #tpu.memory_space<vmem>>, vector<32x128xf32>
    %cst_67 = arith.constant dense<0.000000e+00> : vector<8x128xf32>
    %98 = tpu.matmul %96, %97, %cst_67 {dimension_numbers = #tpu.dot_dimension_numbers<[1], [0], [0], [1], [0, 0, 1, 1], [], []>, precision = #tpu.contract_precision<fp32>} : vector<8x32xf32>, vector<32x128xf32>, vector<8x128xf32> -> vector<8x128xf32>
    %c0_68 = arith.constant 0 : index
    %c0_69 = arith.constant 0 : index
    %99 = vector.load %arg17[%c0_68, %c0_69] : memref<1x128xf32, #tpu.memory_space<vmem>>, vector<1x128xf32>
    %100 = vector.broadcast %99 : vector<1x128xf32> to vector<8x128xf32>
    %101 = arith.addf %98, %100 : vector<8x128xf32>
    %c0_70 = arith.constant 0 : index
    %c0_71 = arith.constant 0 : index
    %102 = vector.load %arg18[%c0_70, %c0_71] : memref<8x128xf32, #tpu.memory_space<vmem>>, vector<8x128xf32>
    tpu.vector_store %arg18[%c0_70, %c0_71], %101 {strides = array<i32>} : memref<8x128xf32, #tpu.memory_space<vmem>>, vector<8x128xf32>,
    return
  }
  func.func @transform_0(%arg0: i32) -> (i32, i32) {
    %c0_i32 = arith.constant 0 : i32
    %c0_i32_0 = arith.constant 0 : i32
    return %arg0, %c0_i32 : i32, i32
  }
  func.func @transform_1(%arg0: i32) -> (i32, i32) {
    %c0_i32 = arith.constant 0 : i32
    %c0_i32_0 = arith.constant 0 : i32
    return %arg0, %c0_i32 : i32, i32
  }
  func.func @transform_2(%arg0: i32) -> (i32, i32) {
    %c0_i32 = arith.constant 0 : i32
    %c0_i32_0 = arith.constant 0 : i32
    %c0_i32_1 = arith.constant 0 : i32
    return %c0_i32, %c0_i32_0 : i32, i32
  }
  func.func @transform_3(%arg0: i32) -> (i32, i32) {
    %c0_i32 = arith.constant 0 : i32
    %c0_i32_0 = arith.constant 0 : i32
    %c0_i32_1 = arith.constant 0 : i32
    return %c0_i32, %c0_i32_0 : i32, i32
  }
  func.func @transform_4(%arg0: i32) -> (i32, i32, i32) {
    %c0_i32 = arith.constant 0 : i32
    %c0_i32_0 = arith.constant 0 : i32
    %c0_i32_1 = arith.constant 0 : i32
    %c0_i32_2 = arith.constant 0 : i32
    return %c0_i32, %c0_i32_0, %c0_i32_1 : i32, i32, i32
  }
  func.func @transform_5(%arg0: i32) -> (i32, i32) {
    %c0_i32 = arith.constant 0 : i32
    %c0_i32_0 = arith.constant 0 : i32
    %c0_i32_1 = arith.constant 0 : i32
    return %c0_i32, %c0_i32_0 : i32, i32
  }
  func.func @transform_6(%arg0: i32) -> (i32, i32, i32) {
    %c0_i32 = arith.constant 0 : i32
    %c0_i32_0 = arith.constant 0 : i32
    %c0_i32_1 = arith.constant 0 : i32
    %c0_i32_2 = arith.constant 0 : i32
    return %c0_i32, %c0_i32_0, %c0_i32_1 : i32, i32, i32
  }
  func.func @transform_7(%arg0: i32) -> (i32, i32) {
    %c0_i32 = arith.constant 0 : i32
    %c0_i32_0 = arith.constant 0 : i32
    %c0_i32_1 = arith.constant 0 : i32
    return %c0_i32, %c0_i32_0 : i32, i32
  }
  func.func @transform_8(%arg0: i32) -> (i32, i32) {
    %c0_i32 = arith.constant 0 : i32
    %c0_i32_0 = arith.constant 0 : i32
    %c0_i32_1 = arith.constant 0 : i32
    return %c0_i32, %c0_i32_0 : i32, i32
  }
  func.func @transform_9(%arg0: i32) -> (i32, i32) {
    %c0_i32 = arith.constant 0 : i32
    %c0_i32_0 = arith.constant 0 : i32
    %c0_i32_1 = arith.constant 0 : i32
    return %c0_i32, %c0_i32_0 : i32, i32
  }
  func.func @transform_10(%arg0: i32) -> (i32, i32) {
    %c0_i32 = arith.constant 0 : i32
    %c0_i32_0 = arith.constant 0 : i32
    %c0_i32_1 = arith.constant 0 : i32
    return %c0_i32, %c0_i32_0 : i32, i32
  }
  func.func @transform_11(%arg0: i32) -> (i32, i32) {
    %c0_i32 = arith.constant 0 : i32
    %c0_i32_0 = arith.constant 0 : i32
    %c0_i32_1 = arith.constant 0 : i32
    return %c0_i32, %c0_i32_0 : i32, i32
  }
  func.func @transform_12(%arg0: i32) -> (i32, i32) {
    %c0_i32 = arith.constant 0 : i32
    %c0_i32_0 = arith.constant 0 : i32
    %c0_i32_1 = arith.constant 0 : i32
    return %c0_i32, %c0_i32_0 : i32, i32
  }
  func.func @transform_13(%arg0: i32) -> (i32, i32) {
    %c0_i32 = arith.constant 0 : i32
    %c0_i32_0 = arith.constant 0 : i32
    %c0_i32_1 = arith.constant 0 : i32
    return %c0_i32, %c0_i32_0 : i32, i32
  }
  func.func @transform_14(%arg0: i32) -> (i32, i32) {
    %c0_i32 = arith.constant 0 : i32
    %c0_i32_0 = arith.constant 0 : i32
    %c0_i32_1 = arith.constant 0 : i32
    return %c0_i32, %c0_i32_0 : i32, i32
  }
  func.func @transform_15(%arg0: i32) -> (i32, i32) {
    %c0_i32 = arith.constant 0 : i32
    %c0_i32_0 = arith.constant 0 : i32
    %c0_i32_1 = arith.constant 0 : i32
    return %c0_i32, %c0_i32_0 : i32, i32
  }
  func.func @transform_16(%arg0: i32) -> (i32, i32) {
    %c0_i32 = arith.constant 0 : i32
    %c0_i32_0 = arith.constant 0 : i32
    %c0_i32_1 = arith.constant 0 : i32
    return %c0_i32, %c0_i32_0 : i32, i32
  }
  func.func @transform_17(%arg0: i32) -> (i32, i32) {
    %c0_i32 = arith.constant 0 : i32
    %c0_i32_0 = arith.constant 0 : i32
    return %arg0, %c0_i32 : i32, i32
  }
}

</mosaic_0001>

<llo_original>
// kernel: tpu_custom_call.1
$region0: #{tpu_custom_call.1}
  #allocation0 [shape = 'u32[]', space=smem, size = 0x4, offset = 0x4, fixed_abs, tag = 'smem constant byte address 0x4 - core index']
  #allocation1 [shape = 'u32[72,128]{1,0:T(1,128)}', space=vmem, size = 0x9000, scoped, tag = 'internal scratch']
  %s0 = inlined_call_operand.vmem [shape: f32[56,192], index: 0, kind: input, shape index: {}]
  %s1 = inlined_call_operand.vmem [shape: f32[8,6], index: 1, kind: input, shape index: {}]
  %s2 = inlined_call_operand.vmem [shape: f32[192,56], index: 2, kind: input, shape index: {}]
  %s3 = inlined_call_operand.vmem [shape: f32[1,56], index: 3, kind: input, shape index: {}]
  %s4 = inlined_call_operand.vmem [shape: f32[3,56,40], index: 4, kind: input, shape index: {}]
  %s5 = inlined_call_operand.vmem [shape: f32[1,40], index: 5, kind: input, shape index: {}]
  %s6 = inlined_call_operand.vmem [shape: f32[5,40,32], index: 6, kind: input, shape index: {}]
  %s7 = inlined_call_operand.vmem [shape: f32[1,32], index: 7, kind: input, shape index: {}]
  %s8 = inlined_call_operand.vmem [shape: f32[1,32], index: 8, kind: input, shape index: {}]
  %s9 = inlined_call_operand.vmem [shape: f32[1,32], index: 9, kind: input, shape index: {}]
  %s10 = inlined_call_operand.vmem [shape: f32[32,32], index: 10, kind: input, shape index: {}]
  %s11 = inlined_call_operand.vmem [shape: f32[6,32], index: 11, kind: input, shape index: {}]
  %s12 = inlined_call_operand.vmem [shape: f32[1,32], index: 12, kind: input, shape index: {}]
  %s13 = inlined_call_operand.vmem [shape: f32[32,32], index: 13, kind: input, shape index: {}]
  %s14 = inlined_call_operand.vmem [shape: f32[1,32], index: 14, kind: input, shape index: {}]
  %s15 = inlined_call_operand.vmem [shape: f32[32,128], index: 15, kind: input, shape index: {}]
  %s16 = inlined_call_operand.vmem [shape: f32[1,128], index: 16, kind: input, shape index: {}]
  %s17 = inlined_call_operand.hbm [shape: f32[8,128], index: 17, kind: output, shape index: {}]
  %s18 = sld [smem:[#allocation0]]
  $region78: #{tpu_custom_call.1} parent=0
    _
  %s20 = ssub.s32 1, %s18
  %s21 = scalar_select 0, %s20, %s18
  $region1: #{tpu_custom_call.1} parent=0
    #allocation2 [shape = 'u8[4096]{0}', space=vmem, size = 0x1000, scoped, tag = 'output window, operand 0, single buffered']
    #allocation3 [shape = 's32[1]{0}', space=sflag, size = 0x4, scoped, tag = 'scoped memory for tpu_custom_call.1']
    %22 = vsyncpa [#allocation3], 0
    // Predicated region
    $region2: #{tpu_custom_call.1} parent=1 // pred_check
      _
    $region3: #{tpu_custom_call.1} parent=1 // pred_check_branch
      %24 = sbr.rel (0) target = $region5
    $region4: #{tpu_custom_call.1} parent=1 // pred_region
      _
    $region5: #{tpu_custom_call.1} parent=1 // pred_fallthru
      _
    // Predicated region
    $region6: #{tpu_custom_call.1} parent=1 // pred_check
      _
    $region7: #{tpu_custom_call.1} parent=1 // pred_check_branch
      %26 = sbr.rel (0) target = $region9
    $region8: #{tpu_custom_call.1} parent=1 // pred_region
      _
    $region9: #{tpu_custom_call.1} parent=1 // pred_fallthru
      _
    // Predicated region
    $region10: #{tpu_custom_call.1} parent=1 // pred_check
      _
    $region11: #{tpu_custom_call.1} parent=1 // pred_check_branch
      %28 = sbr.rel (0) target = $region13
    $region12: #{tpu_custom_call.1} parent=1 // pred_region
      _
    $region13: #{tpu_custom_call.1} parent=1 // pred_fallthru
      _
    // Predicated region
    $region14: #{tpu_custom_call.1} parent=1 // pred_check
      _
    $region15: #{tpu_custom_call.1} parent=1 // pred_check_branch
      %30 = sbr.rel (0) target = $region17
    $region16: #{tpu_custom_call.1} parent=1 // pred_region
      _
    $region17: #{tpu_custom_call.1} parent=1 // pred_fallthru
      _
    // Predicated region
    $region18: #{tpu_custom_call.1} parent=1 // pred_check
      _
    $region19: #{tpu_custom_call.1} parent=1 // pred_check_branch
      %32 = sbr.rel (0) target = $region21
    $region20: #{tpu_custom_call.1} parent=1 // pred_region
      _
    $region21: #{tpu_custom_call.1} parent=1 // pred_fallthru
      _
    // Predicated region
    $region22: #{tpu_custom_call.1} parent=1 // pred_check
      _
    $region23: #{tpu_custom_call.1} parent=1 // pred_check_branch
      %34 = sbr.rel (0) target = $region25
    $region24: #{tpu_custom_call.1} parent=1 // pred_region
      _
    $region25: #{tpu_custom_call.1} parent=1 // pred_fallthru
      _
    // Predicated region
    $region26: #{tpu_custom_call.1} parent=1 // pred_check
      _
    $region27: #{tpu_custom_call.1} parent=1 // pred_check_branch
      %36 = sbr.rel (0) target = $region29
    $region28: #{tpu_custom_call.1} parent=1 // pred_region
      _
    $region29: #{tpu_custom_call.1} parent=1 // pred_fallthru
      _
    // Predicated region
    $region30: #{tpu_custom_call.1} parent=1 // pred_check
      _
    $region31: #{tpu_custom_call.1} parent=1 // pred_check_branch
      %38 = sbr.rel (0) target = $region33
    $region32: #{tpu_custom_call.1} parent=1 // pred_region
      _
    $region33: #{tpu_custom_call.1} parent=1 // pred_fallthru
      _
    // Predicated region
    $region34: #{tpu_custom_call.1} parent=1 // pred_check
      _
    $region35: #{tpu_custom_call.1} parent=1 // pred_check_branch
      %40 = sbr.rel (0) target = $region37
    $region36: #{tpu_custom_call.1} parent=1 // pred_region
      _
    $region37: #{tpu_custom_call.1} parent=1 // pred_fallthru
      _
    // Predicated region
    $region38: #{tpu_custom_call.1} parent=1 // pred_check
      _
    $region39: #{tpu_custom_call.1} parent=1 // pred_check_branch
      %42 = sbr.rel (0) target = $region41
    $region40: #{tpu_custom_call.1} parent=1 // pred_region
      _
    $region41: #{tpu_custom_call.1} parent=1 // pred_fallthru
      _
    // Predicated region
    $region42: #{tpu_custom_call.1} parent=1 // pred_check
      _
    $region43: #{tpu_custom_call.1} parent=1 // pred_check_branch
      %44 = sbr.rel (0) target = $region45
    $region44: #{tpu_custom_call.1} parent=1 // pred_region
      _
    $region45: #{tpu_custom_call.1} parent=1 // pred_fallthru
      _
    // Predicated region
    $region46: #{tpu_custom_call.1} parent=1 // pred_check
      _
    $region47: #{tpu_custom_call.1} parent=1 // pred_check_branch
      %46 = sbr.rel (0) target = $region49
    $region48: #{tpu_custom_call.1} parent=1 // pred_region
      _
    $region49: #{tpu_custom_call.1} parent=1 // pred_fallthru
      _
    // Predicated region
    $region50: #{tpu_custom_call.1} parent=1 // pred_check
      _
    $region51: #{tpu_custom_call.1} parent=1 // pred_check_branch
      %48 = sbr.rel (0) target = $region53
    $region52: #{tpu_custom_call.1} parent=1 // pred_region
      _
    $region53: #{tpu_custom_call.1} parent=1 // pred_fallthru
      _
    // Predicated region
    $region54: #{tpu_custom_call.1} parent=1 // pred_check
      _
    $region55: #{tpu_custom_call.1} parent=1 // pred_check_branch
      %50 = sbr.rel (0) target = $region57
    $region56: #{tpu_custom_call.1} parent=1 // pred_region
      _
    $region57: #{tpu_custom_call.1} parent=1 // pred_fallthru
      _
    // Predicated region
    $region58: #{tpu_custom_call.1} parent=1 // pred_check
      _
    $region59: #{tpu_custom_call.1} parent=1 // pred_check_branch
      %52 = sbr.rel (0) target = $region61
    $region60: #{tpu_custom_call.1} parent=1 // pred_region
      _
    $region61: #{tpu_custom_call.1} parent=1 // pred_fallthru
      _
    // Predicated region
    $region62: #{tpu_custom_call.1} parent=1 // pred_check
      _
    $region63: #{tpu_custom_call.1} parent=1 // pred_check_branch
      %54 = sbr.rel (0) target = $region65
    $region64: #{tpu_custom_call.1} parent=1 // pred_region
      _
    $region65: #{tpu_custom_call.1} parent=1 // pred_fallthru
      _
    // Predicated region
    $region66: #{tpu_custom_call.1} parent=1 // pred_check
      _
    $region67: #{tpu_custom_call.1} parent=1 // pred_check_branch
      %56 = sbr.rel (0) target = $region69
    $region68: #{tpu_custom_call.1} parent=1 // pred_region
      _
    $region69: #{tpu_custom_call.1} parent=1 // pred_fallthru
      _
    %v57 = vld [vmem:[%s0] sm:$0xff]
    %v58 = vld [vmem:[%s0 + $0x8] sm:$0xff]
    %v59 = vld [vmem:[%s0 + $0x10] sm:$0xff]
    %v60 = vld [vmem:[%s0 + $0x18] sm:$0xff]
    %v61 = vld [vmem:[%s0 + $0x20] sm:$0xff]
    %v62 = vld [vmem:[%s0 + $0x28] sm:$0xff]
    %v63 = vld [vmem:[%s0 + $0x30] sm:$0xff]
    %v64 = vld [vmem:[%s0 + $0x38] sm:$0xff]
    %v65 = vld [vmem:[%s0 + $0x40] sm:$0xff]
    %v66 = vld [vmem:[%s0 + $0x48] sm:$0xff]
    %v67 = vld [vmem:[%s0 + $0x50] sm:$0xff]
    %v68 = vld [vmem:[%s0 + $0x58] sm:$0xff]
    %v69 = vld [vmem:[%s0 + $0x60] sm:$0xff]
    %v70 = vld [vmem:[%s0 + $0x68] sm:$0xff]
    %v71 = vld [vmem:[%s2] sm:$0xff]
    %v72 = vld [vmem:[%s2 + $0x8] sm:$0xff]
    %v73 = vld [vmem:[%s2 + $0x10] sm:$0xff]
    %v74 = vld [vmem:[%s2 + $0x18] sm:$0xff]
    %v75 = vld [vmem:[%s2 + $0x20] sm:$0xff]
    %v76 = vld [vmem:[%s2 + $0x28] sm:$0xff]
    %v77 = vld [vmem:[%s2 + $0x30] sm:$0xff]
    %v78 = vld [vmem:[%s2 + $0x38] sm:$0xff]
    %v79 = vld [vmem:[%s2 + $0x40] sm:$0xff]
    %v80 = vld [vmem:[%s2 + $0x48] sm:$0xff]
    %v81 = vld [vmem:[%s2 + $0x50] sm:$0xff]
    %v82 = vld [vmem:[%s2 + $0x58] sm:$0xff]
    %v83 = vld [vmem:[%s2 + $0x60] sm:$0xff]
    %v84 = vld [vmem:[%s2 + $0x68] sm:$0xff]
    %v85 = vld [vmem:[%s2 + $0x70] sm:$0xff]
    %v86 = vld [vmem:[%s2 + $0x78] sm:$0xff]
    %v87 = vld [vmem:[%s2 + $0x80] sm:$0xff]
    %v88 = vld [vmem:[%s2 + $0x88] sm:$0xff]
    %v89 = vld [vmem:[%s2 + $0x90] sm:$0xff]
    %v90 = vld [vmem:[%s2 + $0x98] sm:$0xff]
    %v91 = vld [vmem:[%s2 + $0xa0] sm:$0xff]
    %v92 = vld [vmem:[%s2 + $0xa8] sm:$0xff]
    %v93 = vld [vmem:[%s2 + $0xb0] sm:$0xff]
    %v94 = vld [vmem:[%s2 + $0xb8] sm:$0xff]
    %v95 = vld [vmem:[%s3] sm:$0x1]
    %v97 = vperm.slane %v95, 0
    %vm99 = vcmask 523264
    %v101 = vsel %vm99, %v58, 0
    %v104 = vsel %vm99, %v60, 0
    %v107 = vsel %vm99, %v62, 0
    %v110 = vsel %vm99, %v64, 0
    %v113 = vsel %vm99, %v66, 0
    %v116 = vsel %vm99, %v68, 0
    %v119 = vsel %vm99, %v70, 0
    %v121 = vand.u32 %v86, 4294901760
    %122 = vmatpush.msra.mxu0 %v121
    %v123 = vand.u32 %v85, 4294901760
    %124 = vmatpush.msra.mxu0 %v123
    %v125 = vand.u32 %v84, 4294901760
    %126 = vmatpush.msra.mxu0 %v125
    %v127 = vand.u32 %v83, 4294901760
    %128 = vmatpush.msra.mxu0 %v127
    %v129 = vand.u32 %v82, 4294901760
    %130 = vmatpush.msra.mxu0 %v129
    %v131 = vand.u32 %v81, 4294901760
    %132 = vmatpush.msra.mxu0 %v131
    %v133 = vand.u32 %v80, 4294901760
    %134 = vmatpush.msra.mxu0 %v133
    %v135 = vand.u32 %v79, 4294901760
    %136 = vmatpush.msra.mxu0 %v135
    %v137 = vand.u32 %v78, 4294901760
    %138 = vmatpush.msra.mxu0 %v137
    %v139 = vand.u32 %v77, 4294901760
    %140 = vmatpush.msra.mxu0 %v139
    %v141 = vand.u32 %v76, 4294901760
    %142 = vmatpush.msra.mxu0 %v141
    %v143 = vand.u32 %v75, 4294901760
    %144 = vmatpush.msra.mxu0 %v143
    %v145 = vand.u32 %v74, 4294901760
    %146 = vmatpush.msra.mxu0 %v145
    %v147 = vand.u32 %v73, 4294901760
    %148 = vmatpush.msra.mxu0 %v147
    %v149 = vand.u32 %v72, 4294901760
    %150 = vmatpush.msra.mxu0 %v149
    %v151 = vand.u32 %v71, 4294901760
    %152 = vmatpush.msra.mxu0 %v151
    %v153 = vand.u32 %v57, 4294901760
    %v154 = vsub.f32 %v57, %v153
    %v155 = vand.u32 %v154, 4294901760
    %v156 = vsub.f32 %v154, %v155
    %v157 = vand.u32 %v156, 4294901760
    %158 = vmatmul.f32.gmra.mxu0 %v157
    %v159 = vpop.f32.mrf.mxu0
    %v160 = vadd.f32 %v97, %v159
    %v161 = vand.u32 %v59, 4294901760
    %v162 = vsub.f32 %v59, %v161
    %v163 = vand.u32 %v162, 4294901760
    %v164 = vsub.f32 %v162, %v163
    %v165 = vand.u32 %v164, 4294901760
    %166 = vmatmul.f32.gmra.mxu0 %v165
    %v167 = vpop.f32.mrf.mxu0
    %v168 = vadd.f32 %v97, %v167
    %v169 = vand.u32 %v61, 4294901760
    %v170 = vsub.f32 %v61, %v169
    %v171 = vand.u32 %v170, 4294901760
    %v172 = vsub.f32 %v170, %v171
    %v173 = vand.u32 %v172, 4294901760
    %174 = vmatmul.f32.gmra.mxu0 %v173
    %v175 = vpop.f32.mrf.mxu0
    %v176 = vadd.f32 %v97, %v175
    %v177 = vand.u32 %v63, 4294901760
    %v178 = vsub.f32 %v63, %v177
    %v179 = vand.u32 %v178, 4294901760
    %v180 = vsub.f32 %v178, %v179
    %v181 = vand.u32 %v180, 4294901760
    %182 = vmatmul.f32.gmra.mxu0 %v181
    %v183 = vpop.f32.mrf.mxu0
    %v184 = vadd.f32 %v97, %v183
    %v185 = vand.u32 %v65, 4294901760
    %v186 = vsub.f32 %v65, %v185
    %v187 = vand.u32 %v186, 4294901760
    %v188 = vsub.f32 %v186, %v187
    %v189 = vand.u32 %v188, 4294901760
    %190 = vmatmul.f32.gmra.mxu0 %v189
    %v191 = vpop.f32.mrf.mxu0
    %v192 = vadd.f32 %v97, %v191
    %v193 = vand.u32 %v67, 4294901760
    %v194 = vsub.f32 %v67, %v193
    %v195 = vand.u32 %v194, 4294901760
    %v196 = vsub.f32 %v194, %v195
    %v197 = vand.u32 %v196, 4294901760
    %198 = vmatmul.f32.gmra.mxu0 %v197
    %v199 = vpop.f32.mrf.mxu0
    %v200 = vadd.f32 %v97, %v199
    %v201 = vand.u32 %v69, 4294901760
    %v202 = vsub.f32 %v69, %v201
    %v203 = vand.u32 %v202, 4294901760
    %v204 = vsub.f32 %v202, %v203
    %v205 = vand.u32 %v204, 4294901760
    %206 = vmatmul.f32.gmra.mxu0 %v205
    %v207 = vpop.f32.mrf.mxu0
    %v208 = vadd.f32 %v97, %v207
    %209 = vdwg.mxu0
    %v210 = vand.u32 %v86, 4294901760
    %v211 = vsub.f32 %v86, %v210
    %v212 = vand.u32 %v211, 4294901760
    %v213 = vsub.f32 %v211, %v212
    %v214 = vand.u32 %v213, 4294901760
    %215 = vmatpush.msra.mxu0 %v214
    %v216 = vand.u32 %v85, 4294901760
    %v217 = vsub.f32 %v85, %v216
    %v218 = vand.u32 %v217, 4294901760
    %v219 = vsub.f32 %v217, %v218
    %v220 = vand.u32 %v219, 4294901760
    %221 = vmatpush.msra.mxu0 %v220
    %v222 = vand.u32 %v84, 4294901760
    %v223 = vsub.f32 %v84, %v222
    %v224 = vand.u32 %v223, 4294901760
    %v225 = vsub.f32 %v223, %v224
    %v226 = vand.u32 %v225, 4294901760
    %227 = vmatpush.msra.mxu0 %v226
    %v228 = vand.u32 %v83, 4294901760
    %v229 = vsub.f32 %v83, %v228
    %v230 = vand.u32 %v229, 4294901760
    %v231 = vsub.f32 %v229, %v230
    %v232 = vand.u32 %v231, 4294901760
    %233 = vmatpush.msra.mxu0 %v232
    %v234 = vand.u32 %v82, 4294901760
    %v235 = vsub.f32 %v82, %v234
    %v236 = vand.u32 %v235, 4294901760
    %v237 = vsub.f32 %v235, %v236
    %v238 = vand.u32 %v237, 4294901760
    %239 = vmatpush.msra.mxu0 %v238
    %v240 = vand.u32 %v81, 4294901760
    %v241 = vsub.f32 %v81, %v240
    %v242 = vand.u32 %v241, 4294901760
    %v243 = vsub.f32 %v241, %v242
    %v244 = vand.u32 %v243, 4294901760
    %245 = vmatpush.msra.mxu0 %v244
    %v246 = vand.u32 %v80, 4294901760
    %v247 = vsub.f32 %v80, %v246
    %v248 = vand.u32 %v247, 4294901760
    %v249 = vsub.f32 %v247, %v248
    %v250 = vand.u32 %v249, 4294901760
    %251 = vmatpush.msra.mxu0 %v250
    %v252 = vand.u32 %v79, 4294901760
    %v253 = vsub.f32 %v79, %v252
    %v254 = vand.u32 %v253, 4294901760
    %v255 = vsub.f32 %v253, %v254
    %v256 = vand.u32 %v255, 4294901760
    %257 = vmatpush.msra.mxu0 %v256
    %v258 = vand.u32 %v78, 4294901760
    %v259 = vsub.f32 %v78, %v258
    %v260 = vand.u32 %v259, 4294901760
    %v261 = vsub.f32 %v259, %v260
    %v262 = vand.u32 %v261, 4294901760
    %263 = vmatpush.msra.mxu0 %v262
    %v264 = vand.u32 %v77, 4294901760
    %v265 = vsub.f32 %v77, %v264
    %v266 = vand.u32 %v265, 4294901760
    %v267 = vsub.f32 %v265, %v266
    %v268 = vand.u32 %v267, 4294901760
    %269 = vmatpush.msra.mxu0 %v268
    %v270 = vand.u32 %v76, 4294901760
    %v271 = vsub.f32 %v76, %v270
    %v272 = vand.u32 %v271, 4294901760
    %v273 = vsub.f32 %v271, %v272
    %v274 = vand.u32 %v273, 4294901760
    %275 = vmatpush.msra.mxu0 %v274
    %v276 = vand.u32 %v75, 4294901760
    %v277 = vsub.f32 %v75, %v276
    %v278 = vand.u32 %v277, 4294901760
    %v279 = vsub.f32 %v277, %v278
    %v280 = vand.u32 %v279, 4294901760
    %281 = vmatpush.msra.mxu0 %v280
    %v282 = vand.u32 %v74, 4294901760
    %v283 = vsub.f32 %v74, %v282
    %v284 = vand.u32 %v283, 4294901760
    %v285 = vsub.f32 %v283, %v284
    %v286 = vand.u32 %v285, 4294901760
    %287 = vmatpush.msra.mxu0 %v286
    %v288 = vand.u32 %v73, 4294901760
    %v289 = vsub.f32 %v73, %v288
    %v290 = vand.u32 %v289, 4294901760
    %v291 = vsub.f32 %v289, %v290
    %v292 = vand.u32 %v291, 4294901760
    %293 = vmatpush.msra.mxu0 %v292
    %v294 = vand.u32 %v72, 4294901760
    %v295 = vsub.f32 %v72, %v294
    %v296 = vand.u32 %v295, 4294901760
    %v297 = vsub.f32 %v295, %v296
    %v298 = vand.u32 %v297, 4294901760
    %299 = vmatpush.msra.mxu0 %v298
    %v300 = vand.u32 %v71, 4294901760
    %v301 = vsub.f32 %v71, %v300
    %v302 = vand.u32 %v301, 4294901760
    %v303 = vsub.f32 %v301, %v302
    %v304 = vand.u32 %v303, 4294901760
    %305 = vmatpush.msra.mxu0 %v304
    %v306 = vand.u32 %v57, 4294901760
    %307 = vmatmul.f32.gmra.mxu0 %v306
    %v308 = vpop.f32.mrf.mxu0
    %v309 = vadd.f32 %v160, %v308
    %v310 = vand.u32 %v59, 4294901760
    %311 = vmatmul.f32.gmra.mxu0 %v310
    %v312 = vpop.f32.mrf.mxu0
    %v313 = vadd.f32 %v168, %v312
    %v314 = vand.u32 %v61, 4294901760
    %315 = vmatmul.f32.gmra.mxu0 %v314
    %v316 = vpop.f32.mrf.mxu0
    %v317 = vadd.f32 %v176, %v316
    %v318 = vand.u32 %v63, 4294901760
    %319 = vmatmul.f32.gmra.mxu0 %v318
    %v320 = vpop.f32.mrf.mxu0
    %v321 = vadd.f32 %v184, %v320
    %v322 = vand.u32 %v65, 4294901760
    %323 = vmatmul.f32.gmra.mxu0 %v322
    %v324 = vpop.f32.mrf.mxu0
    %v325 = vadd.f32 %v192, %v324
    %v326 = vand.u32 %v67, 4294901760
    %327 = vmatmul.f32.gmra.mxu0 %v326
    %v328 = vpop.f32.mrf.mxu0
    %v329 = vadd.f32 %v200, %v328
    %v330 = vand.u32 %v69, 4294901760
    %331 = vmatmul.f32.gmra.mxu0 %v330
    %v332 = vpop.f32.mrf.mxu0
    %v333 = vadd.f32 %v208, %v332
    %334 = vdwg.mxu0
    %v335 = vand.u32 %v86, 4294901760
    %v336 = vsub.f32 %v86, %v335
    %337 = vmatpush.msra.mxu0 %v336
    %v338 = vand.u32 %v85, 4294901760
    %v339 = vsub.f32 %v85, %v338
    %340 = vmatpush.msra.mxu0 %v339
    %v341 = vand.u32 %v84, 4294901760
    %v342 = vsub.f32 %v84, %v341
    %343 = vmatpush.msra.mxu0 %v342
    %v344 = vand.u32 %v83, 4294901760
    %v345 = vsub.f32 %v83, %v344
    %346 = vmatpush.msra.mxu0 %v345
    %v347 = vand.u32 %v82, 4294901760
    %v348 = vsub.f32 %v82, %v347
    %349 = vmatpush.msra.mxu0 %v348
    %v350 = vand.u32 %v81, 4294901760
    %v351 = vsub.f32 %v81, %v350
    %352 = vmatpush.msra.mxu0 %v351
    %v353 = vand.u32 %v80, 4294901760
    %v354 = vsub.f32 %v80, %v353
    %355 = vmatpush.msra.mxu0 %v354
    %v356 = vand.u32 %v79, 4294901760
    %v357 = vsub.f32 %v79, %v356
    %358 = vmatpush.msra.mxu0 %v357
    %v359 = vand.u32 %v78, 4294901760
    %v360 = vsub.f32 %v78, %v359
    %361 = vmatpush.msra.mxu0 %v360
    %v362 = vand.u32 %v77, 4294901760
    %v363 = vsub.f32 %v77, %v362
    %364 = vmatpush.msra.mxu0 %v363
    %v365 = vand.u32 %v76, 4294901760
    %v366 = vsub.f32 %v76, %v365
    %367 = vmatpush.msra.mxu0 %v366
    %v368 = vand.u32 %v75, 4294901760
    %v369 = vsub.f32 %v75, %v368
    %370 = vmatpush.msra.mxu0 %v369
    %v371 = vand.u32 %v74, 4294901760
    %v372 = vsub.f32 %v74, %v371
    %373 = vmatpush.msra.mxu0 %v372
    %v374 = vand.u32 %v73, 4294901760
    %v375 = vsub.f32 %v73, %v374
    %376 = vmatpush.msra.mxu0 %v375
    %v377 = vand.u32 %v72, 4294901760
    %v378 = vsub.f32 %v72, %v377
    %379 = vmatpush.msra.mxu0 %v378
    %v380 = vand.u32 %v71, 4294901760
    %v381 = vsub.f32 %v71, %v380
    %382 = vmatpush.msra.mxu0 %v381
    %v383 = vand.u32 %v57, 4294901760
    %v384 = vsub.f32 %v57, %v383
    %385 = vmatmul.f32.gmra.mxu0 %v384
    %v386 = vpop.f32.mrf.mxu0
    %v387 = vadd.f32 %v309, %v386
    %v388 = vand.u32 %v59, 4294901760
    %v389 = vsub.f32 %v59, %v388
    %390 = vmatmul.f32.gmra.mxu0 %v389
    %v391 = vpop.f32.mrf.mxu0
    %v392 = vadd.f32 %v313, %v391
    %v393 = vand.u32 %v61, 4294901760
    %v394 = vsub.f32 %v61, %v393
    %395 = vmatmul.f32.gmra.mxu0 %v394
    %v396 = vpop.f32.mrf.mxu0
    %v397 = vadd.f32 %v317, %v396
    %v398 = vand.u32 %v63, 4294901760
    %v399 = vsub.f32 %v63, %v398
    %400 = vmatmul.f32.gmra.mxu0 %v399
    %v401 = vpop.f32.mrf.mxu0
    %v402 = vadd.f32 %v321, %v401
    %v403 = vand.u32 %v65, 4294901760
    %v404 = vsub.f32 %v65, %v403
    %405 = vmatmul.f32.gmra.mxu0 %v404
    %v406 = vpop.f32.mrf.mxu0
    %v407 = vadd.f32 %v325, %v406
    %v408 = vand.u32 %v67, 4294901760
    %v409 = vsub.f32 %v67, %v408
    %410 = vmatmul.f32.gmra.mxu0 %v409
    %v411 = vpop.f32.mrf.mxu0
    %v412 = vadd.f32 %v329, %v411
    %v413 = vand.u32 %v69, 4294901760
    %v414 = vsub.f32 %v69, %v413
    %415 = vmatmul.f32.gmra.mxu0 %v414
    %v416 = vpop.f32.mrf.mxu0
    %v417 = vadd.f32 %v333, %v416
    %418 = vdwg.mxu0
    %v419 = vand.u32 %v86, 4294901760
    %420 = vmatpush.msra.mxu0 %v419
    %v421 = vand.u32 %v85, 4294901760
    %422 = vmatpush.msra.mxu0 %v421
    %v423 = vand.u32 %v84, 4294901760
    %424 = vmatpush.msra.mxu0 %v423
    %v425 = vand.u32 %v83, 4294901760
    %426 = vmatpush.msra.mxu0 %v425
    %v427 = vand.u32 %v82, 4294901760
    %428 = vmatpush.msra.mxu0 %v427
    %v429 = vand.u32 %v81, 4294901760
    %430 = vmatpush.msra.mxu0 %v429
    %v431 = vand.u32 %v80, 4294901760
    %432 = vmatpush.msra.mxu0 %v431
    %v433 = vand.u32 %v79, 4294901760
    %434 = vmatpush.msra.mxu0 %v433
    %v435 = vand.u32 %v78, 4294901760
    %436 = vmatpush.msra.mxu0 %v435
    %v437 = vand.u32 %v77, 4294901760
    %438 = vmatpush.msra.mxu0 %v437
    %v439 = vand.u32 %v76, 4294901760
    %440 = vmatpush.msra.mxu0 %v439
    %v441 = vand.u32 %v75, 4294901760
    %442 = vmatpush.msra.mxu0 %v441
    %v443 = vand.u32 %v74, 4294901760
    %444 = vmatpush.msra.mxu0 %v443
    %v445 = vand.u32 %v73, 4294901760
    %446 = vmatpush.msra.mxu0 %v445
    %v447 = vand.u32 %v72, 4294901760
    %448 = vmatpush.msra.mxu0 %v447
    %v449 = vand.u32 %v71, 4294901760
    %450 = vmatpush.msra.mxu0 %v449
    %v451 = vand.u32 %v57, 4294901760
    %v452 = vsub.f32 %v57, %v451
    %v453 = vand.u32 %v452, 4294901760
    %454 = vmatmul.f32.gmra.mxu0 %v453
    %v455 = vpop.f32.mrf.mxu0
    %v456 = vadd.f32 %v387, %v455
    %v457 = vand.u32 %v59, 4294901760
    %v458 = vsub.f32 %v59, %v457
    %v459 = vand.u32 %v458, 4294901760
    %460 = vmatmul.f32.gmra.mxu0 %v459
    %v461 = vpop.f32.mrf.mxu0
    %v462 = vadd.f32 %v392, %v461
    %v463 = vand.u32 %v61, 4294901760
    %v464 = vsub.f32 %v61, %v463
    %v465 = vand.u32 %v464, 4294901760
    %466 = vmatmul.f32.gmra.mxu0 %v465
    %v467 = vpop.f32.mrf.mxu0
    %v468 = vadd.f32 %v397, %v467
    %v469 = vand.u32 %v63, 4294901760
    %v470 = vsub.f32 %v63, %v469
    %v471 = vand.u32 %v470, 4294901760
    %472 = vmatmul.f32.gmra.mxu0 %v471
    %v473 = vpop.f32.mrf.mxu0
    %v474 = vadd.f32 %v402, %v473
    %v475 = vand.u32 %v65, 4294901760
    %v476 = vsub.f32 %v65, %v475
    %v477 = vand.u32 %v476, 4294901760
    %478 = vmatmul.f32.gmra.mxu0 %v477
    %v479 = vpop.f32.mrf.mxu0
    %v480 = vadd.f32 %v407, %v479
    %v481 = vand.u32 %v67, 4294901760
    %v482 = vsub.f32 %v67, %v481
    %v483 = vand.u32 %v482, 4294901760
    %484 = vmatmul.f32.gmra.mxu0 %v483
    %v485 = vpop.f32.mrf.mxu0
    %v486 = vadd.f32 %v412, %v485
    %v487 = vand.u32 %v69, 4294901760
    %v488 = vsub.f32 %v69, %v487
    %v489 = vand.u32 %v488, 4294901760
    %490 = vmatmul.f32.gmra.mxu0 %v489
    %v491 = vpop.f32.mrf.mxu0
    %v492 = vadd.f32 %v417, %v491
    %493 = vdwg.mxu0
    %v494 = vand.u32 %v86, 4294901760
    %v495 = vsub.f32 %v86, %v494
    %v496 = vand.u32 %v495, 4294901760
    %497 = vmatpush.msra.mxu0 %v496
    %v498 = vand.u32 %v85, 4294901760
    %v499 = vsub.f32 %v85, %v498
    %v500 = vand.u32 %v499, 4294901760
    %501 = vmatpush.msra.mxu0 %v500
    %v502 = vand.u32 %v84, 4294901760
    %v503 = vsub.f32 %v84, %v502
    %v504 = vand.u32 %v503, 4294901760
    %505 = vmatpush.msra.mxu0 %v504
    %v506 = vand.u32 %v83, 4294901760
    %v507 = vsub.f32 %v83, %v506
    %v508 = vand.u32 %v507, 4294901760
    %509 = vmatpush.msra.mxu0 %v508
    %v510 = vand.u32 %v82, 4294901760
    %v511 = vsub.f32 %v82, %v510
    %v512 = vand.u32 %v511, 4294901760
    %513 = vmatpush.msra.mxu0 %v512
    %v514 = vand.u32 %v81, 4294901760
    %v515 = vsub.f32 %v81, %v514
    %v516 = vand.u32 %v515, 4294901760
    %517 = vmatpush.msra.mxu0 %v516
    %v518 = vand.u32 %v80, 4294901760
    %v519 = vsub.f32 %v80, %v518
    %v520 = vand.u32 %v519, 4294901760
    %521 = vmatpush.msra.mxu0 %v520
    %v522 = vand.u32 %v79, 4294901760
    %v523 = vsub.f32 %v79, %v522
    %v524 = vand.u32 %v523, 4294901760
    %525 = vmatpush.msra.mxu0 %v524
    %v526 = vand.u32 %v78, 4294901760
    %v527 = vsub.f32 %v78, %v526
    %v528 = vand.u32 %v527, 4294901760
    %529 = vmatpush.msra.mxu0 %v528
    %v530 = vand.u32 %v77, 4294901760
    %v531 = vsub.f32 %v77, %v530
    %v532 = vand.u32 %v531, 4294901760
    %533 = vmatpush.msra.mxu0 %v532
    %v534 = vand.u32 %v76, 4294901760
    %v535 = vsub.f32 %v76, %v534
    %v536 = vand.u32 %v535, 4294901760
    %537 = vmatpush.msra.mxu0 %v536
    %v538 = vand.u32 %v75, 4294901760
    %v539 = vsub.f32 %v75, %v538
    %v540 = vand.u32 %v539, 4294901760
    %541 = vmatpush.msra.mxu0 %v540
    %v542 = vand.u32 %v74, 4294901760
    %v543 = vsub.f32 %v74, %v542
    %v544 = vand.u32 %v543, 4294901760
    %545 = vmatpush.msra.mxu0 %v544
    %v546 = vand.u32 %v73, 4294901760
    %v547 = vsub.f32 %v73, %v546
    %v548 = vand.u32 %v547, 4294901760
    %549 = vmatpush.msra.mxu0 %v548
    %v550 = vand.u32 %v72, 4294901760
    %v551 = vsub.f32 %v72, %v550
    %v552 = vand.u32 %v551, 4294901760
    %553 = vmatpush.msra.mxu0 %v552
    %v554 = vand.u32 %v71, 4294901760
    %v555 = vsub.f32 %v71, %v554
    %v556 = vand.u32 %v555, 4294901760
    %557 = vmatpush.msra.mxu0 %v556
    %v558 = vand.u32 %v57, 4294901760
    %559 = vmatmul.f32.gmra.mxu0 %v558
    %v560 = vpop.f32.mrf.mxu0
    %v561 = vadd.f32 %v456, %v560
    %v562 = vand.u32 %v59, 4294901760
    %563 = vmatmul.f32.gmra.mxu0 %v562
    %v564 = vpop.f32.mrf.mxu0
    %v565 = vadd.f32 %v462, %v564
    %v566 = vand.u32 %v61, 4294901760
    %567 = vmatmul.f32.gmra.mxu0 %v566
    %v568 = vpop.f32.mrf.mxu0
    %v569 = vadd.f32 %v468, %v568
    %v570 = vand.u32 %v63, 4294901760
    %571 = vmatmul.f32.gmra.mxu0 %v570
    %v572 = vpop.f32.mrf.mxu0
    %v573 = vadd.f32 %v474, %v572
    %v574 = vand.u32 %v65, 4294901760
    %575 = vmatmul.f32.gmra.mxu0 %v574
    %v576 = vpop.f32.mrf.mxu0
    %v577 = vadd.f32 %v480, %v576
    %v578 = vand.u32 %v67, 4294901760
    %579 = vmatmul.f32.gmra.mxu0 %v578
    %v580 = vpop.f32.mrf.mxu0
    %v581 = vadd.f32 %v486, %v580
    %v582 = vand.u32 %v69, 4294901760
    %583 = vmatmul.f32.gmra.mxu0 %v582
    %v584 = vpop.f32.mrf.mxu0
    %v585 = vadd.f32 %v492, %v584
    %586 = vdwg.mxu0
    %v587 = vand.u32 %v86, 4294901760
    %588 = vmatpush.msra.mxu0 %v587
    %v589 = vand.u32 %v85, 4294901760
    %590 = vmatpush.msra.mxu0 %v589
    %v591 = vand.u32 %v84, 4294901760
    %592 = vmatpush.msra.mxu0 %v591
    %v593 = vand.u32 %v83, 4294901760
    %594 = vmatpush.msra.mxu0 %v593
    %v595 = vand.u32 %v82, 4294901760
    %596 = vmatpush.msra.mxu0 %v595
    %v597 = vand.u32 %v81, 4294901760
    %598 = vmatpush.msra.mxu0 %v597
    %v599 = vand.u32 %v80, 4294901760
    %600 = vmatpush.msra.mxu0 %v599
    %v601 = vand.u32 %v79, 4294901760
    %602 = vmatpush.msra.mxu0 %v601
    %v603 = vand.u32 %v78, 4294901760
    %604 = vmatpush.msra.mxu0 %v603
    %v605 = vand.u32 %v77, 4294901760
    %606 = vmatpush.msra.mxu0 %v605
    %v607 = vand.u32 %v76, 4294901760
    %608 = vmatpush.msra.mxu0 %v607
    %v609 = vand.u32 %v75, 4294901760
    %610 = vmatpush.msra.mxu0 %v609
    %v611 = vand.u32 %v74, 4294901760
    %612 = vmatpush.msra.mxu0 %v611
    %v613 = vand.u32 %v73, 4294901760
    %614 = vmatpush.msra.mxu0 %v613
    %v615 = vand.u32 %v72, 4294901760
    %616 = vmatpush.msra.mxu0 %v615
    %v617 = vand.u32 %v71, 4294901760
    %618 = vmatpush.msra.mxu0 %v617
    %v619 = vand.u32 %v57, 4294901760
    %620 = vmatmul.f32.gmra.mxu0 %v619
    %v621 = vpop.f32.mrf.mxu0
    %v622 = vadd.f32 %v561, %v621
    %v623 = vand.u32 %v59, 4294901760
    %624 = vmatmul.f32.gmra.mxu0 %v623
    %v625 = vpop.f32.mrf.mxu0
    %v626 = vadd.f32 %v565, %v625
    %v627 = vand.u32 %v61, 4294901760
    %628 = vmatmul.f32.gmra.mxu0 %v627
    %v629 = vpop.f32.mrf.mxu0
    %v630 = vadd.f32 %v569, %v629
    %v631 = vand.u32 %v63, 4294901760
    %632 = vmatmul.f32.gmra.mxu0 %v631
    %v633 = vpop.f32.mrf.mxu0
    %v634 = vadd.f32 %v573, %v633
    %v635 = vand.u32 %v65, 4294901760
    %636 = vmatmul.f32.gmra.mxu0 %v635
    %v637 = vpop.f32.mrf.mxu0
    %v638 = vadd.f32 %v577, %v637
    %v639 = vand.u32 %v67, 4294901760
    %640 = vmatmul.f32.gmra.mxu0 %v639
    %v641 = vpop.f32.mrf.mxu0
    %v642 = vadd.f32 %v581, %v641
    %v643 = vand.u32 %v69, 4294901760
    %644 = vmatmul.f32.gmra.mxu0 %v643
    %v645 = vpop.f32.mrf.mxu0
    %v646 = vadd.f32 %v585, %v645
    %647 = vdwg.mxu0
    %648 = vmatpush.msra.mxu0 0.0
    %649 = vmatpush.msra.mxu0 0.0
    %650 = vmatpush.msra.mxu0 0.0
    %651 = vmatpush.msra.mxu0 0.0
    %652 = vmatpush.msra.mxu0 0.0
    %653 = vmatpush.msra.mxu0 0.0
    %654 = vmatpush.msra.mxu0 0.0
    %655 = vmatpush.msra.mxu0 0.0
    %v656 = vand.u32 %v94, 4294901760
    %657 = vmatpush.msra.mxu0 %v656
    %v658 = vand.u32 %v93, 4294901760
    %659 = vmatpush.msra.mxu0 %v658
    %v660 = vand.u32 %v92, 4294901760
    %661 = vmatpush.msra.mxu0 %v660
    %v662 = vand.u32 %v91, 4294901760
    %663 = vmatpush.msra.mxu0 %v662
    %v664 = vand.u32 %v90, 4294901760
    %665 = vmatpush.msra.mxu0 %v664
    %v666 = vand.u32 %v89, 4294901760
    %667 = vmatpush.msra.mxu0 %v666
    %v668 = vand.u32 %v88, 4294901760
    %669 = vmatpush.msra.mxu0 %v668
    %v670 = vand.u32 %v87, 4294901760
    %671 = vmatpush.msra.mxu0 %v670
    %v672 = vand.u32 %v101, 4294901760
    %v673 = vsub.f32 %v101, %v672
    %v674 = vand.u32 %v673, 4294901760
    %v675 = vsub.f32 %v673, %v674
    %v676 = vand.u32 %v675, 4294901760
    %677 = vmatmul.f32.gmra.mxu0 %v676
    %v678 = vpop.f32.mrf.mxu0
    %v679 = vadd.f32 %v622, %v678
    %v680 = vand.u32 %v104, 4294901760
    %v681 = vsub.f32 %v104, %v680
    %v682 = vand.u32 %v681, 4294901760
    %v683 = vsub.f32 %v681, %v682
    %v684 = vand.u32 %v683, 4294901760
    %685 = vmatmul.f32.gmra.mxu0 %v684
    %v686 = vpop.f32.mrf.mxu0
    %v687 = vadd.f32 %v626, %v686
    %v688 = vand.u32 %v107, 4294901760
    %v689 = vsub.f32 %v107, %v688
    %v690 = vand.u32 %v689, 4294901760
    %v691 = vsub.f32 %v689, %v690
    %v692 = vand.u32 %v691, 4294901760
    %693 = vmatmul.f32.gmra.mxu0 %v692
    %v694 = vpop.f32.mrf.mxu0
    %v695 = vadd.f32 %v630, %v694
    %v696 = vand.u32 %v110, 4294901760
    %v697 = vsub.f32 %v110, %v696
    %v698 = vand.u32 %v697, 4294901760
    %v699 = vsub.f32 %v697, %v698
    %v700 = vand.u32 %v699, 4294901760
    %701 = vmatmul.f32.gmra.mxu0 %v700
    %v702 = vpop.f32.mrf.mxu0
    %v703 = vadd.f32 %v634, %v702
    %v704 = vand.u32 %v113, 4294901760
    %v705 = vsub.f32 %v113, %v704
    %v706 = vand.u32 %v705, 4294901760
    %v707 = vsub.f32 %v705, %v706
    %v708 = vand.u32 %v707, 4294901760
    %709 = vmatmul.f32.gmra.mxu0 %v708
    %v710 = vpop.f32.mrf.mxu0
    %v711 = vadd.f32 %v638, %v710
    %v712 = vand.u32 %v116, 4294901760
    %v713 = vsub.f32 %v116, %v712
    %v714 = vand.u32 %v713, 4294901760
    %v715 = vsub.f32 %v713, %v714
    %v716 = vand.u32 %v715, 4294901760
    %717 = vmatmul.f32.gmra.mxu0 %v716
    %v718 = vpop.f32.mrf.mxu0
    %v719 = vadd.f32 %v642, %v718
    %v720 = vand.u32 %v119, 4294901760
    %v721 = vsub.f32 %v119, %v720
    %v722 = vand.u32 %v721, 4294901760
    %v723 = vsub.f32 %v721, %v722
    %v724 = vand.u32 %v723, 4294901760
    %725 = vmatmul.f32.gmra.mxu0 %v724
    %v726 = vpop.f32.mrf.mxu0
    %v727 = vadd.f32 %v646, %v726
    %728 = vdwg.mxu0
    %729 = vmatpush.msra.mxu0 0.0
    %730 = vmatpush.msra.mxu0 0.0
    %731 = vmatpush.msra.mxu0 0.0
    %732 = vmatpush.msra.mxu0 0.0
    %733 = vmatpush.msra.mxu0 0.0
    %734 = vmatpush.msra.mxu0 0.0
    %735 = vmatpush.msra.mxu0 0.0
    %736 = vmatpush.msra.mxu0 0.0
    %v737 = vand.u32 %v94, 4294901760
    %v738 = vsub.f32 %v94, %v737
    %v739 = vand.u32 %v738, 4294901760
    %v740 = vsub.f32 %v738, %v739
    %v741 = vand.u32 %v740, 4294901760
    %742 = vmatpush.msra.mxu0 %v741
    %v743 = vand.u32 %v93, 4294901760
    %v744 = vsub.f32 %v93, %v743
    %v745 = vand.u32 %v744, 4294901760
    %v746 = vsub.f32 %v744, %v745
    %v747 = vand.u32 %v746, 4294901760
    %748 = vmatpush.msra.mxu0 %v747
    %v749 = vand.u32 %v92, 4294901760
    %v750 = vsub.f32 %v92, %v749
    %v751 = vand.u32 %v750, 4294901760
    %v752 = vsub.f32 %v750, %v751
    %v753 = vand.u32 %v752, 4294901760
    %754 = vmatpush.msra.mxu0 %v753
    %v755 = vand.u32 %v91, 4294901760
    %v756 = vsub.f32 %v91, %v755
    %v757 = vand.u32 %v756, 4294901760
    %v758 = vsub.f32 %v756, %v757
    %v759 = vand.u32 %v758, 4294901760
    %760 = vmatpush.msra.mxu0 %v759
    %v761 = vand.u32 %v90, 4294901760
    %v762 = vsub.f32 %v90, %v761
    %v763 = vand.u32 %v762, 4294901760
    %v764 = vsub.f32 %v762, %v763
    %v765 = vand.u32 %v764, 4294901760
    %766 = vmatpush.msra.mxu0 %v765
    %v767 = vand.u32 %v89, 4294901760
    %v768 = vsub.f32 %v89, %v767
    %v769 = vand.u32 %v768, 4294901760
    %v770 = vsub.f32 %v768, %v769
    %v771 = vand.u32 %v770, 4294901760
    %772 = vmatpush.msra.mxu0 %v771
    %v773 = vand.u32 %v88, 4294901760
    %v774 = vsub.f32 %v88, %v773
    %v775 = vand.u32 %v774, 4294901760
    %v776 = vsub.f32 %v774, %v775
    %v777 = vand.u32 %v776, 4294901760
    %778 = vmatpush.msra.mxu0 %v777
    %v779 = vand.u32 %v87, 4294901760
    %v780 = vsub.f32 %v87, %v779
    %v781 = vand.u32 %v780, 4294901760
    %v782 = vsub.f32 %v780, %v781
    %v783 = vand.u32 %v782, 4294901760
    %784 = vmatpush.msra.mxu0 %v783
    %v785 = vand.u32 %v101, 4294901760
    %786 = vmatmul.f32.gmra.mxu0 %v785
    %v787 = vpop.f32.mrf.mxu0
    %v788 = vadd.f32 %v679, %v787
    %v789 = vand.u32 %v104, 4294901760
    %790 = vmatmul.f32.gmra.mxu0 %v789
    %v791 = vpop.f32.mrf.mxu0
    %v792 = vadd.f32 %v687, %v791
    %v793 = vand.u32 %v107, 4294901760
    %794 = vmatmul.f32.gmra.mxu0 %v793
    %v795 = vpop.f32.mrf.mxu0
    %v796 = vadd.f32 %v695, %v795
    %v797 = vand.u32 %v110, 4294901760
    %798 = vmatmul.f32.gmra.mxu0 %v797
    %v799 = vpop.f32.mrf.mxu0
    %v800 = vadd.f32 %v703, %v799
    %v801 = vand.u32 %v113, 4294901760
    %802 = vmatmul.f32.gmra.mxu0 %v801
    %v803 = vpop.f32.mrf.mxu0
    %v804 = vadd.f32 %v711, %v803
    %v805 = vand.u32 %v116, 4294901760
    %806 = vmatmul.f32.gmra.mxu0 %v805
    %v807 = vpop.f32.mrf.mxu0
    %v808 = vadd.f32 %v719, %v807
    %v809 = vand.u32 %v119, 4294901760
    %810 = vmatmul.f32.gmra.mxu0 %v809
    %v811 = vpop.f32.mrf.mxu0
    %v812 = vadd.f32 %v727, %v811
    %813 = vdwg.mxu0
    %814 = vmatpush.msra.mxu0 0.0
    %815 = vmatpush.msra.mxu0 0.0
    %816 = vmatpush.msra.mxu0 0.0
    %817 = vmatpush.msra.mxu0 0.0
    %818 = vmatpush.msra.mxu0 0.0
    %819 = vmatpush.msra.mxu0 0.0
    %820 = vmatpush.msra.mxu0 0.0
    %821 = vmatpush.msra.mxu0 0.0
    %v822 = vand.u32 %v94, 4294901760
    %v823 = vsub.f32 %v94, %v822
    %824 = vmatpush.msra.mxu0 %v823
    %v825 = vand.u32 %v93, 4294901760
    %v826 = vsub.f32 %v93, %v825
    %827 = vmatpush.msra.mxu0 %v826
    %v828 = vand.u32 %v92, 4294901760
    %v829 = vsub.f32 %v92, %v828
    %830 = vmatpush.msra.mxu0 %v829
    %v831 = vand.u32 %v91, 4294901760
    %v832 = vsub.f32 %v91, %v831
    %833 = vmatpush.msra.mxu0 %v832
    %v834 = vand.u32 %v90, 4294901760
    %v835 = vsub.f32 %v90, %v834
    %836 = vmatpush.msra.mxu0 %v835
    %v837 = vand.u32 %v89, 4294901760
    %v838 = vsub.f32 %v89, %v837
    %839 = vmatpush.msra.mxu0 %v838
    %v840 = vand.u32 %v88, 4294901760
    %v841 = vsub.f32 %v88, %v840
    %842 = vmatpush.msra.mxu0 %v841
    %v843 = vand.u32 %v87, 4294901760
    %v844 = vsub.f32 %v87, %v843
    %845 = vmatpush.msra.mxu0 %v844
    %v846 = vand.u32 %v101, 4294901760
    %v847 = vsub.f32 %v101, %v846
    %848 = vmatmul.f32.gmra.mxu0 %v847
    %v849 = vpop.f32.mrf.mxu0
    %v850 = vadd.f32 %v788, %v849
    %v851 = vand.u32 %v104, 4294901760
    %v852 = vsub.f32 %v104, %v851
    %853 = vmatmul.f32.gmra.mxu0 %v852
    %v854 = vpop.f32.mrf.mxu0
    %v855 = vadd.f32 %v792, %v854
    %v856 = vand.u32 %v107, 4294901760
    %v857 = vsub.f32 %v107, %v856
    %858 = vmatmul.f32.gmra.mxu0 %v857
    %v859 = vpop.f32.mrf.mxu0
    %v860 = vadd.f32 %v796, %v859
    %v861 = vand.u32 %v110, 4294901760
    %v862 = vsub.f32 %v110, %v861
    %863 = vmatmul.f32.gmra.mxu0 %v862
    %v864 = vpop.f32.mrf.mxu0
    %v865 = vadd.f32 %v800, %v864
    %v866 = vand.u32 %v113, 4294901760
    %v867 = vsub.f32 %v113, %v866
    %868 = vmatmul.f32.gmra.mxu0 %v867
    %v869 = vpop.f32.mrf.mxu0
    %v870 = vadd.f32 %v804, %v869
    %v871 = vand.u32 %v116, 4294901760
    %v872 = vsub.f32 %v116, %v871
    %873 = vmatmul.f32.gmra.mxu0 %v872
    %v874 = vpop.f32.mrf.mxu0
    %v875 = vadd.f32 %v808, %v874
    %v876 = vand.u32 %v119, 4294901760
    %v877 = vsub.f32 %v119, %v876
    %878 = vmatmul.f32.gmra.mxu0 %v877
    %v879 = vpop.f32.mrf.mxu0
    %v880 = vadd.f32 %v812, %v879
    %881 = vdwg.mxu0
    %882 = vmatpush.msra.mxu0 0.0
    %883 = vmatpush.msra.mxu0 0.0
    %884 = vmatpush.msra.mxu0 0.0
    %885 = vmatpush.msra.mxu0 0.0
    %886 = vmatpush.msra.mxu0 0.0
    %887 = vmatpush.msra.mxu0 0.0
    %888 = vmatpush.msra.mxu0 0.0
    %889 = vmatpush.msra.mxu0 0.0
    %v890 = vand.u32 %v94, 4294901760
    %891 = vmatpush.msra.mxu0 %v890
    %v892 = vand.u32 %v93, 4294901760
    %893 = vmatpush.msra.mxu0 %v892
    %v894 = vand.u32 %v92, 4294901760
    %895 = vmatpush.msra.mxu0 %v894
    %v896 = vand.u32 %v91, 4294901760
    %897 = vmatpush.msra.mxu0 %v896
    %v898 = vand.u32 %v90, 4294901760
    %899 = vmatpush.msra.mxu0 %v898
    %v900 = vand.u32 %v89, 4294901760
    %901 = vmatpush.msra.mxu0 %v900
    %v902 = vand.u32 %v88, 4294901760
    %903 = vmatpush.msra.mxu0 %v902
    %v904 = vand.u32 %v87, 4294901760
    %905 = vmatpush.msra.mxu0 %v904
    %v906 = vand.u32 %v101, 4294901760
    %v907 = vsub.f32 %v101, %v906
    %v908 = vand.u32 %v907, 4294901760
    %909 = vmatmul.f32.gmra.mxu0 %v908
    %v910 = vpop.f32.mrf.mxu0
    %v911 = vadd.f32 %v850, %v910
    %v912 = vand.u32 %v104, 4294901760
    %v913 = vsub.f32 %v104, %v912
    %v914 = vand.u32 %v913, 4294901760
    %915 = vmatmul.f32.gmra.mxu0 %v914
    %v916 = vpop.f32.mrf.mxu0
    %v917 = vadd.f32 %v855, %v916
    %v918 = vand.u32 %v107, 4294901760
    %v919 = vsub.f32 %v107, %v918
    %v920 = vand.u32 %v919, 4294901760
    %921 = vmatmul.f32.gmra.mxu0 %v920
    %v922 = vpop.f32.mrf.mxu0
    %v923 = vadd.f32 %v860, %v922
    %v924 = vand.u32 %v110, 4294901760
    %v925 = vsub.f32 %v110, %v924
    %v926 = vand.u32 %v925, 4294901760
    %927 = vmatmul.f32.gmra.mxu0 %v926
    %v928 = vpop.f32.mrf.mxu0
    %v929 = vadd.f32 %v865, %v928
    %v930 = vand.u32 %v113, 4294901760
    %v931 = vsub.f32 %v113, %v930
    %v932 = vand.u32 %v931, 4294901760
    %933 = vmatmul.f32.gmra.mxu0 %v932
    %v934 = vpop.f32.mrf.mxu0
    %v935 = vadd.f32 %v870, %v934
    %v936 = vand.u32 %v116, 4294901760
    %v937 = vsub.f32 %v116, %v936
    %v938 = vand.u32 %v937, 4294901760
    %939 = vmatmul.f32.gmra.mxu0 %v938
    %v940 = vpop.f32.mrf.mxu0
    %v941 = vadd.f32 %v875, %v940
    %v942 = vand.u32 %v119, 4294901760
    %v943 = vsub.f32 %v119, %v942
    %v944 = vand.u32 %v943, 4294901760
    %945 = vmatmul.f32.gmra.mxu0 %v944
    %v946 = vpop.f32.mrf.mxu0
    %v947 = vadd.f32 %v880, %v946
    %948 = vdwg.mxu0
    %949 = vmatpush.msra.mxu0 0.0
    %950 = vmatpush.msra.mxu0 0.0
    %951 = vmatpush.msra.mxu0 0.0
    %952 = vmatpush.msra.mxu0 0.0
    %953 = vmatpush.msra.mxu0 0.0
    %954 = vmatpush.msra.mxu0 0.0
    %955 = vmatpush.msra.mxu0 0.0
    %956 = vmatpush.msra.mxu0 0.0
    %v957 = vand.u32 %v94, 4294901760
    %v958 = vsub.f32 %v94, %v957
    %v959 = vand.u32 %v958, 4294901760
    %960 = vmatpush.msra.mxu0 %v959
    %v961 = vand.u32 %v93, 4294901760
    %v962 = vsub.f32 %v93, %v961
    %v963 = vand.u32 %v962, 4294901760
    %964 = vmatpush.msra.mxu0 %v963
    %v965 = vand.u32 %v92, 4294901760
    %v966 = vsub.f32 %v92, %v965
    %v967 = vand.u32 %v966, 4294901760
    %968 = vmatpush.msra.mxu0 %v967
    %v969 = vand.u32 %v91, 4294901760
    %v970 = vsub.f32 %v91, %v969
    %v971 = vand.u32 %v970, 4294901760
    %972 = vmatpush.msra.mxu0 %v971
    %v973 = vand.u32 %v90, 4294901760
    %v974 = vsub.f32 %v90, %v973
    %v975 = vand.u32 %v974, 4294901760
    %976 = vmatpush.msra.mxu0 %v975
    %v977 = vand.u32 %v89, 4294901760
    %v978 = vsub.f32 %v89, %v977
    %v979 = vand.u32 %v978, 4294901760
    %980 = vmatpush.msra.mxu0 %v979
    %v981 = vand.u32 %v88, 4294901760
    %v982 = vsub.f32 %v88, %v981
    %v983 = vand.u32 %v982, 4294901760
    %984 = vmatpush.msra.mxu0 %v983
    %v985 = vand.u32 %v87, 4294901760
    %v986 = vsub.f32 %v87, %v985
    %v987 = vand.u32 %v986, 4294901760
    %988 = vmatpush.msra.mxu0 %v987
    %v989 = vand.u32 %v101, 4294901760
    %990 = vmatmul.f32.gmra.mxu0 %v989
    %v991 = vpop.f32.mrf.mxu0
    %v992 = vadd.f32 %v911, %v991
    %v993 = vand.u32 %v104, 4294901760
    %994 = vmatmul.f32.gmra.mxu0 %v993
    %v995 = vpop.f32.mrf.mxu0
    %v996 = vadd.f32 %v917, %v995
    %v997 = vand.u32 %v107, 4294901760
    %998 = vmatmul.f32.gmra.mxu0 %v997
    %v999 = vpop.f32.mrf.mxu0
    %v1000 = vadd.f32 %v923, %v999
    %v1001 = vand.u32 %v110, 4294901760
    %1002 = vmatmul.f32.gmra.mxu0 %v1001
    %v1003 = vpop.f32.mrf.mxu0
    %v1004 = vadd.f32 %v929, %v1003
    %v1005 = vand.u32 %v113, 4294901760
    %1006 = vmatmul.f32.gmra.mxu0 %v1005
    %v1007 = vpop.f32.mrf.mxu0
    %v1008 = vadd.f32 %v935, %v1007
    %v1009 = vand.u32 %v116, 4294901760
    %1010 = vmatmul.f32.gmra.mxu0 %v1009
    %v1011 = vpop.f32.mrf.mxu0
    %v1012 = vadd.f32 %v941, %v1011
    %v1013 = vand.u32 %v119, 4294901760
    %1014 = vmatmul.f32.gmra.mxu0 %v1013
    %v1015 = vpop.f32.mrf.mxu0
    %v1016 = vadd.f32 %v947, %v1015
    %1017 = vdwg.mxu0
    %1018 = vmatpush.msra.mxu0 0.0
    %1019 = vmatpush.msra.mxu0 0.0
    %1020 = vmatpush.msra.mxu0 0.0
    %1021 = vmatpush.msra.mxu0 0.0
    %1022 = vmatpush.msra.mxu0 0.0
    %1023 = vmatpush.msra.mxu0 0.0
    %1024 = vmatpush.msra.mxu0 0.0
    %1025 = vmatpush.msra.mxu0 0.0
    %v1026 = vand.u32 %v94, 4294901760
    %1027 = vmatpush.msra.mxu0 %v1026
    %v1028 = vand.u32 %v93, 4294901760
    %1029 = vmatpush.msra.mxu0 %v1028
    %v1030 = vand.u32 %v92, 4294901760
    %1031 = vmatpush.msra.mxu0 %v1030
    %v1032 = vand.u32 %v91, 4294901760
    %1033 = vmatpush.msra.mxu0 %v1032
    %v1034 = vand.u32 %v90, 4294901760
    %1035 = vmatpush.msra.mxu0 %v1034
    %v1036 = vand.u32 %v89, 4294901760
    %1037 = vmatpush.msra.mxu0 %v1036
    %v1038 = vand.u32 %v88, 4294901760
    %1039 = vmatpush.msra.mxu0 %v1038
    %v1040 = vand.u32 %v87, 4294901760
    %1041 = vmatpush.msra.mxu0 %v1040
    %v1042 = vand.u32 %v101, 4294901760
    %1043 = vmatmul.f32.gmra.mxu0 %v1042
    %v1044 = vpop.f32.mrf.mxu0
    %v1045 = vadd.f32 %v992, %v1044
    %v1046 = vand.u32 %v104, 4294901760
    %1047 = vmatmul.f32.gmra.mxu0 %v1046
    %v1048 = vpop.f32.mrf.mxu0
    %v1049 = vadd.f32 %v996, %v1048
    %v1050 = vand.u32 %v107, 4294901760
    %1051 = vmatmul.f32.gmra.mxu0 %v1050
    %v1052 = vpop.f32.mrf.mxu0
    %v1053 = vadd.f32 %v1000, %v1052
    %v1054 = vand.u32 %v110, 4294901760
    %1055 = vmatmul.f32.gmra.mxu0 %v1054
    %v1056 = vpop.f32.mrf.mxu0
    %v1057 = vadd.f32 %v1004, %v1056
    %v1058 = vand.u32 %v113, 4294901760
    %1059 = vmatmul.f32.gmra.mxu0 %v1058
    %v1060 = vpop.f32.mrf.mxu0
    %v1061 = vadd.f32 %v1008, %v1060
    %v1062 = vand.u32 %v116, 4294901760
    %1063 = vmatmul.f32.gmra.mxu0 %v1062
    %v1064 = vpop.f32.mrf.mxu0
    %v1065 = vadd.f32 %v1012, %v1064
    %v1066 = vand.u32 %v119, 4294901760
    %1067 = vmatmul.f32.gmra.mxu0 %v1066
    %v1068 = vpop.f32.mrf.mxu0
    %v1069 = vadd.f32 %v1016, %v1068
    %1070 = vdwg.mxu0
    %v1071 = vmax.f32 %v1045, 0.0
    %v1072 = vmax.f32 %v1049, 0.0
    %v1073 = vmax.f32 %v1053, 0.0
    %v1074 = vmax.f32 %v1057, 0.0
    %v1075 = vmax.f32 %v1061, 0.0
    %v1076 = vmax.f32 %v1065, 0.0
    %v1077 = vmax.f32 %v1069, 0.0
    %v1078 = vld [vmem:[%s4] sm:$0xff]
    %v1079 = vld [vmem:[%s4 + $0x8] sm:$0xff]
    %v1080 = vld [vmem:[%s4 + $0x10] sm:$0xff]
    %v1081 = vld [vmem:[%s4 + $0x18] sm:$0xff]
    %v1082 = vld [vmem:[%s4 + $0x20] sm:$0xff]
    %v1083 = vld [vmem:[%s4 + $0x28] sm:$0xff]
    %v1084 = vld [vmem:[%s4 + $0x30] sm:$0xff]
    %s1085 = scalar_lea.vmem %s4, 56
    %v1086 = vld [vmem:[%s1085] sm:$0xff]
    %v1087 = vld [vmem:[%s1085 + $0x8] sm:$0xff]
    %v1088 = vld [vmem:[%s1085 + $0x10] sm:$0xff]
    %v1089 = vld [vmem:[%s1085 + $0x18] sm:$0xff]
    %v1090 = vld [vmem:[%s1085 + $0x20] sm:$0xff]
    %v1091 = vld [vmem:[%s1085 + $0x28] sm:$0xff]
    %v1092 = vld [vmem:[%s1085 + $0x30] sm:$0xff]
    %vm1093 = vcmask 457728
    %v1095 = vsel %vm1093, %v1072, 0
    %v1098 = vsel %vm1093, %v1073, 0
    %v1101 = vsel %vm1093, %v1074, 0
    %v1104 = vsel %vm1093, %v1075, 0
    %v1107 = vsel %vm1093, %v1076, 0
    %1109 = vmatpush.msra.mxu0 0.0
    %1110 = vmatpush.msra.mxu0 0.0
    %1111 = vmatpush.msra.mxu0 0.0
    %1112 = vmatpush.msra.mxu0 0.0
    %1113 = vmatpush.msra.mxu0 0.0
    %1114 = vmatpush.msra.mxu0 0.0
    %1115 = vmatpush.msra.mxu0 0.0
    %1116 = vmatpush.msra.mxu0 0.0
    %1117 = vmatpush.msra.mxu0 0.0
    %v1118 = vand.u32 %v1092, 4294901760
    %1119 = vmatpush.msra.mxu0 %v1118
    %v1120 = vand.u32 %v1091, 4294901760
    %1121 = vmatpush.msra.mxu0 %v1120
    %v1122 = vand.u32 %v1090, 4294901760
    %1123 = vmatpush.msra.mxu0 %v1122
    %v1124 = vand.u32 %v1089, 4294901760
    %1125 = vmatpush.msra.mxu0 %v1124
    %v1126 = vand.u32 %v1088, 4294901760
    %1127 = vmatpush.msra.mxu0 %v1126
    %v1128 = vand.u32 %v1087, 4294901760
    %1129 = vmatpush.msra.mxu0 %v1128
    %v1130 = vand.u32 %v1086, 4294901760
    %1131 = vmatpush.msra.mxu0 %v1130
    %v1132 = vand.u32 %v1095, 4294901760
    %v1133 = vsub.f32 %v1095, %v1132
    %v1134 = vand.u32 %v1133, 4294901760
    %v1135 = vsub.f32 %v1133, %v1134
    %v1136 = vand.u32 %v1135, 4294901760
    %1137 = vmatmul.f32.gmra.mxu0 %v1136
    %v1138 = vpop.f32.mrf.mxu0
    %v1139 = vadd.f32 0.0, %v1138
    %v1140 = vand.u32 %v1098, 4294901760
    %v1141 = vsub.f32 %v1098, %v1140
    %v1142 = vand.u32 %v1141, 4294901760
    %v1143 = vsub.f32 %v1141, %v1142
    %v1144 = vand.u32 %v1143, 4294901760
    %1145 = vmatmul.f32.gmra.mxu0 %v1144
    %v1146 = vpop.f32.mrf.mxu0
    %v1147 = vadd.f32 0.0, %v1146
    %v1148 = vand.u32 %v1101, 4294901760
    %v1149 = vsub.f32 %v1101, %v1148
    %v1150 = vand.u32 %v1149, 4294901760
    %v1151 = vsub.f32 %v1149, %v1150
    %v1152 = vand.u32 %v1151, 4294901760
    %1153 = vmatmul.f32.gmra.mxu0 %v1152
    %v1154 = vpop.f32.mrf.mxu0
    %v1155 = vadd.f32 0.0, %v1154
    %v1156 = vand.u32 %v1104, 4294901760
    %v1157 = vsub.f32 %v1104, %v1156
    %v1158 = vand.u32 %v1157, 4294901760
    %v1159 = vsub.f32 %v1157, %v1158
    %v1160 = vand.u32 %v1159, 4294901760
    %1161 = vmatmul.f32.gmra.mxu0 %v1160
    %v1162 = vpop.f32.mrf.mxu0
    %v1163 = vadd.f32 0.0, %v1162
    %v1164 = vand.u32 %v1107, 4294901760
    %v1165 = vsub.f32 %v1107, %v1164
    %v1166 = vand.u32 %v1165, 4294901760
    %v1167 = vsub.f32 %v1165, %v1166
    %v1168 = vand.u32 %v1167, 4294901760
    %1169 = vmatmul.f32.gmra.mxu0 %v1168
    %v1170 = vpop.f32.mrf.mxu0
    %v1171 = vadd.f32 0.0, %v1170
    %1172 = vdwg.mxu0
    %1173 = vmatpush.msra.mxu0 0.0
    %1174 = vmatpush.msra.mxu0 0.0
    %1175 = vmatpush.msra.mxu0 0.0
    %1176 = vmatpush.msra.mxu0 0.0
    %1177 = vmatpush.msra.mxu0 0.0
    %1178 = vmatpush.msra.mxu0 0.0
    %1179 = vmatpush.msra.mxu0 0.0
    %1180 = vmatpush.msra.mxu0 0.0
    %1181 = vmatpush.msra.mxu0 0.0
    %v1182 = vand.u32 %v1092, 4294901760
    %v1183 = vsub.f32 %v1092, %v1182
    %v1184 = vand.u32 %v1183, 4294901760
    %v1185 = vsub.f32 %v1183, %v1184
    %v1186 = vand.u32 %v1185, 4294901760
    %1187 = vmatpush.msra.mxu0 %v1186
    %v1188 = vand.u32 %v1091, 4294901760
    %v1189 = vsub.f32 %v1091, %v1188
    %v1190 = vand.u32 %v1189, 4294901760
    %v1191 = vsub.f32 %v1189, %v1190
    %v1192 = vand.u32 %v1191, 4294901760
    %1193 = vmatpush.msra.mxu0 %v1192
    %v1194 = vand.u32 %v1090, 4294901760
    %v1195 = vsub.f32 %v1090, %v1194
    %v1196 = vand.u32 %v1195, 4294901760
    %v1197 = vsub.f32 %v1195, %v1196
    %v1198 = vand.u32 %v1197, 4294901760
    %1199 = vmatpush.msra.mxu0 %v1198
    %v1200 = vand.u32 %v1089, 4294901760
    %v1201 = vsub.f32 %v1089, %v1200
    %v1202 = vand.u32 %v1201, 4294901760
    %v1203 = vsub.f32 %v1201, %v1202
    %v1204 = vand.u32 %v1203, 4294901760
    %1205 = vmatpush.msra.mxu0 %v1204
    %v1206 = vand.u32 %v1088, 4294901760
    %v1207 = vsub.f32 %v1088, %v1206
    %v1208 = vand.u32 %v1207, 4294901760
    %v1209 = vsub.f32 %v1207, %v1208
    %v1210 = vand.u32 %v1209, 4294901760
    %1211 = vmatpush.msra.mxu0 %v1210
    %v1212 = vand.u32 %v1087, 4294901760
    %v1213 = vsub.f32 %v1087, %v1212
    %v1214 = vand.u32 %v1213, 4294901760
    %v1215 = vsub.f32 %v1213, %v1214
    %v1216 = vand.u32 %v1215, 4294901760
    %1217 = vmatpush.msra.mxu0 %v1216
    %v1218 = vand.u32 %v1086, 4294901760
    %v1219 = vsub.f32 %v1086, %v1218
    %v1220 = vand.u32 %v1219, 4294901760
    %v1221 = vsub.f32 %v1219, %v1220
    %v1222 = vand.u32 %v1221, 4294901760
    %1223 = vmatpush.msra.mxu0 %v1222
    %v1224 = vand.u32 %v1095, 4294901760
    %1225 = vmatmul.f32.gmra.mxu0 %v1224
    %v1226 = vpop.f32.mrf.mxu0
    %v1227 = vadd.f32 %v1139, %v1226
    %v1228 = vand.u32 %v1098, 4294901760
    %1229 = vmatmul.f32.gmra.mxu0 %v1228
    %v1230 = vpop.f32.mrf.mxu0
    %v1231 = vadd.f32 %v1147, %v1230
    %v1232 = vand.u32 %v1101, 4294901760
    %1233 = vmatmul.f32.gmra.mxu0 %v1232
    %v1234 = vpop.f32.mrf.mxu0
    %v1235 = vadd.f32 %v1155, %v1234
    %v1236 = vand.u32 %v1104, 4294901760
    %1237 = vmatmul.f32.gmra.mxu0 %v1236
    %v1238 = vpop.f32.mrf.mxu0
    %v1239 = vadd.f32 %v1163, %v1238
    %v1240 = vand.u32 %v1107, 4294901760
    %1241 = vmatmul.f32.gmra.mxu0 %v1240
    %v1242 = vpop.f32.mrf.mxu0
    %v1243 = vadd.f32 %v1171, %v1242
    %1244 = vdwg.mxu0
    %1245 = vmatpush.msra.mxu0 0.0
    %1246 = vmatpush.msra.mxu0 0.0
    %1247 = vmatpush.msra.mxu0 0.0
    %1248 = vmatpush.msra.mxu0 0.0
    %1249 = vmatpush.msra.mxu0 0.0
    %1250 = vmatpush.msra.mxu0 0.0
    %1251 = vmatpush.msra.mxu0 0.0
    %1252 = vmatpush.msra.mxu0 0.0
    %1253 = vmatpush.msra.mxu0 0.0
    %v1254 = vand.u32 %v1092, 4294901760
    %v1255 = vsub.f32 %v1092, %v1254
    %1256 = vmatpush.msra.mxu0 %v1255
    %v1257 = vand.u32 %v1091, 4294901760
    %v1258 = vsub.f32 %v1091, %v1257
    %1259 = vmatpush.msra.mxu0 %v1258
    %v1260 = vand.u32 %v1090, 4294901760
    %v1261 = vsub.f32 %v1090, %v1260
    %1262 = vmatpush.msra.mxu0 %v1261
    %v1263 = vand.u32 %v1089, 4294901760
    %v1264 = vsub.f32 %v1089, %v1263
    %1265 = vmatpush.msra.mxu0 %v1264
    %v1266 = vand.u32 %v1088, 4294901760
    %v1267 = vsub.f32 %v1088, %v1266
    %1268 = vmatpush.msra.mxu0 %v1267
    %v1269 = vand.u32 %v1087, 4294901760
    %v1270 = vsub.f32 %v1087, %v1269
    %1271 = vmatpush.msra.mxu0 %v1270
    %v1272 = vand.u32 %v1086, 4294901760
    %v1273 = vsub.f32 %v1086, %v1272
    %1274 = vmatpush.msra.mxu0 %v1273
    %v1275 = vand.u32 %v1095, 4294901760
    %v1276 = vsub.f32 %v1095, %v1275
    %1277 = vmatmul.f32.gmra.mxu0 %v1276
    %v1278 = vpop.f32.mrf.mxu0
    %v1279 = vadd.f32 %v1227, %v1278
    %v1280 = vand.u32 %v1098, 4294901760
    %v1281 = vsub.f32 %v1098, %v1280
    %1282 = vmatmul.f32.gmra.mxu0 %v1281
    %v1283 = vpop.f32.mrf.mxu0
    %v1284 = vadd.f32 %v1231, %v1283
    %v1285 = vand.u32 %v1101, 4294901760
    %v1286 = vsub.f32 %v1101, %v1285
    %1287 = vmatmul.f32.gmra.mxu0 %v1286
    %v1288 = vpop.f32.mrf.mxu0
    %v1289 = vadd.f32 %v1235, %v1288
    %v1290 = vand.u32 %v1104, 4294901760
    %v1291 = vsub.f32 %v1104, %v1290
    %1292 = vmatmul.f32.gmra.mxu0 %v1291
    %v1293 = vpop.f32.mrf.mxu0
    %v1294 = vadd.f32 %v1239, %v1293
    %v1295 = vand.u32 %v1107, 4294901760
    %v1296 = vsub.f32 %v1107, %v1295
    %1297 = vmatmul.f32.gmra.mxu0 %v1296
    %v1298 = vpop.f32.mrf.mxu0
    %v1299 = vadd.f32 %v1243, %v1298
    %1300 = vdwg.mxu0
    %1301 = vmatpush.msra.mxu0 0.0
    %1302 = vmatpush.msra.mxu0 0.0
    %1303 = vmatpush.msra.mxu0 0.0
    %1304 = vmatpush.msra.mxu0 0.0
    %1305 = vmatpush.msra.mxu0 0.0
    %1306 = vmatpush.msra.mxu0 0.0
    %1307 = vmatpush.msra.mxu0 0.0
    %1308 = vmatpush.msra.mxu0 0.0
    %1309 = vmatpush.msra.mxu0 0.0
    %v1310 = vand.u32 %v1092, 4294901760
    %1311 = vmatpush.msra.mxu0 %v1310
    %v1312 = vand.u32 %v1091, 4294901760
    %1313 = vmatpush.msra.mxu0 %v1312
    %v1314 = vand.u32 %v1090, 4294901760
    %1315 = vmatpush.msra.mxu0 %v1314
    %v1316 = vand.u32 %v1089, 4294901760
    %1317 = vmatpush.msra.mxu0 %v1316
    %v1318 = vand.u32 %v1088, 4294901760
    %1319 = vmatpush.msra.mxu0 %v1318
    %v1320 = vand.u32 %v1087, 4294901760
    %1321 = vmatpush.msra.mxu0 %v1320
    %v1322 = vand.u32 %v1086, 4294901760
    %1323 = vmatpush.msra.mxu0 %v1322
    %v1324 = vand.u32 %v1095, 4294901760
    %v1325 = vsub.f32 %v1095, %v1324
    %v1326 = vand.u32 %v1325, 4294901760
    %1327 = vmatmul.f32.gmra.mxu0 %v1326
    %v1328 = vpop.f32.mrf.mxu0
    %v1329 = vadd.f32 %v1279, %v1328
    %v1330 = vand.u32 %v1098, 4294901760
    %v1331 = vsub.f32 %v1098, %v1330
    %v1332 = vand.u32 %v1331, 4294901760
    %1333 = vmatmul.f32.gmra.mxu0 %v1332
    %v1334 = vpop.f32.mrf.mxu0
    %v1335 = vadd.f32 %v1284, %v1334
    %v1336 = vand.u32 %v1101, 4294901760
    %v1337 = vsub.f32 %v1101, %v1336
    %v1338 = vand.u32 %v1337, 4294901760
    %1339 = vmatmul.f32.gmra.mxu0 %v1338
    %v1340 = vpop.f32.mrf.mxu0
    %v1341 = vadd.f32 %v1289, %v1340
    %v1342 = vand.u32 %v1104, 4294901760
    %v1343 = vsub.f32 %v1104, %v1342
    %v1344 = vand.u32 %v1343, 4294901760
    %1345 = vmatmul.f32.gmra.mxu0 %v1344
    %v1346 = vpop.f32.mrf.mxu0
    %v1347 = vadd.f32 %v1294, %v1346
    %v1348 = vand.u32 %v1107, 4294901760
    %v1349 = vsub.f32 %v1107, %v1348
    %v1350 = vand.u32 %v1349, 4294901760
    %1351 = vmatmul.f32.gmra.mxu0 %v1350
    %v1352 = vpop.f32.mrf.mxu0
    %v1353 = vadd.f32 %v1299, %v1352
    %1354 = vdwg.mxu0
    %1355 = vmatpush.msra.mxu0 0.0
    %1356 = vmatpush.msra.mxu0 0.0
    %1357 = vmatpush.msra.mxu0 0.0
    %1358 = vmatpush.msra.mxu0 0.0
    %1359 = vmatpush.msra.mxu0 0.0
    %1360 = vmatpush.msra.mxu0 0.0
    %1361 = vmatpush.msra.mxu0 0.0
    %1362 = vmatpush.msra.mxu0 0.0
    %1363 = vmatpush.msra.mxu0 0.0
    %v1364 = vand.u32 %v1092, 4294901760
    %v1365 = vsub.f32 %v1092, %v1364
    %v1366 = vand.u32 %v1365, 4294901760
    %1367 = vmatpush.msra.mxu0 %v1366
    %v1368 = vand.u32 %v1091, 4294901760
    %v1369 = vsub.f32 %v1091, %v1368
    %v1370 = vand.u32 %v1369, 4294901760
    %1371 = vmatpush.msra.mxu0 %v1370
    %v1372 = vand.u32 %v1090, 4294901760
    %v1373 = vsub.f32 %v1090, %v1372
    %v1374 = vand.u32 %v1373, 4294901760
    %1375 = vmatpush.msra.mxu0 %v1374
    %v1376 = vand.u32 %v1089, 4294901760
    %v1377 = vsub.f32 %v1089, %v1376
    %v1378 = vand.u32 %v1377, 4294901760
    %1379 = vmatpush.msra.mxu0 %v1378
    %v1380 = vand.u32 %v1088, 4294901760
    %v1381 = vsub.f32 %v1088, %v1380
    %v1382 = vand.u32 %v1381, 4294901760
    %1383 = vmatpush.msra.mxu0 %v1382
    %v1384 = vand.u32 %v1087, 4294901760
    %v1385 = vsub.f32 %v1087, %v1384
    %v1386 = vand.u32 %v1385, 4294901760
    %1387 = vmatpush.msra.mxu0 %v1386
    %v1388 = vand.u32 %v1086, 4294901760
    %v1389 = vsub.f32 %v1086, %v1388
    %v1390 = vand.u32 %v1389, 4294901760
    %1391 = vmatpush.msra.mxu0 %v1390
    %v1392 = vand.u32 %v1095, 4294901760
    %1393 = vmatmul.f32.gmra.mxu0 %v1392
    %v1394 = vpop.f32.mrf.mxu0
    %v1395 = vadd.f32 %v1329, %v1394
    %v1396 = vand.u32 %v1098, 4294901760
    %1397 = vmatmul.f32.gmra.mxu0 %v1396
    %v1398 = vpop.f32.mrf.mxu0
    %v1399 = vadd.f32 %v1335, %v1398
    %v1400 = vand.u32 %v1101, 4294901760
    %1401 = vmatmul.f32.gmra.mxu0 %v1400
    %v1402 = vpop.f32.mrf.mxu0
    %v1403 = vadd.f32 %v1341, %v1402
    %v1404 = vand.u32 %v1104, 4294901760
    %1405 = vmatmul.f32.gmra.mxu0 %v1404
    %v1406 = vpop.f32.mrf.mxu0
    %v1407 = vadd.f32 %v1347, %v1406
    %v1408 = vand.u32 %v1107, 4294901760
    %1409 = vmatmul.f32.gmra.mxu0 %v1408
    %v1410 = vpop.f32.mrf.mxu0
    %v1411 = vadd.f32 %v1353, %v1410
    %1412 = vdwg.mxu0
    %1413 = vmatpush.msra.mxu0 0.0
    %1414 = vmatpush.msra.mxu0 0.0
    %1415 = vmatpush.msra.mxu0 0.0
    %1416 = vmatpush.msra.mxu0 0.0
    %1417 = vmatpush.msra.mxu0 0.0
    %1418 = vmatpush.msra.mxu0 0.0
    %1419 = vmatpush.msra.mxu0 0.0
    %1420 = vmatpush.msra.mxu0 0.0
    %1421 = vmatpush.msra.mxu0 0.0
    %v1422 = vand.u32 %v1092, 4294901760
    %1423 = vmatpush.msra.mxu0 %v1422
    %v1424 = vand.u32 %v1091, 4294901760
    %1425 = vmatpush.msra.mxu0 %v1424
    %v1426 = vand.u32 %v1090, 4294901760
    %1427 = vmatpush.msra.mxu0 %v1426
    %v1428 = vand.u32 %v1089, 4294901760
    %1429 = vmatpush.msra.mxu0 %v1428
    %v1430 = vand.u32 %v1088, 4294901760
    %1431 = vmatpush.msra.mxu0 %v1430
    %v1432 = vand.u32 %v1087, 4294901760
    %1433 = vmatpush.msra.mxu0 %v1432
    %v1434 = vand.u32 %v1086, 4294901760
    %1435 = vmatpush.msra.mxu0 %v1434
    %v1436 = vand.u32 %v1095, 4294901760
    %1437 = vmatmul.f32.gmra.mxu0 %v1436
    %v1438 = vpop.f32.mrf.mxu0
    %v1439 = vadd.f32 %v1395, %v1438
    %v1440 = vand.u32 %v1098, 4294901760
    %1441 = vmatmul.f32.gmra.mxu0 %v1440
    %v1442 = vpop.f32.mrf.mxu0
    %v1443 = vadd.f32 %v1399, %v1442
    %v1444 = vand.u32 %v1101, 4294901760
    %1445 = vmatmul.f32.gmra.mxu0 %v1444
    %v1446 = vpop.f32.mrf.mxu0
    %v1447 = vadd.f32 %v1403, %v1446
    %v1448 = vand.u32 %v1104, 4294901760
    %1449 = vmatmul.f32.gmra.mxu0 %v1448
    %v1450 = vpop.f32.mrf.mxu0
    %v1451 = vadd.f32 %v1407, %v1450
    %v1452 = vand.u32 %v1107, 4294901760
    %1453 = vmatmul.f32.gmra.mxu0 %v1452
    %v1454 = vpop.f32.mrf.mxu0
    %v1455 = vadd.f32 %v1411, %v1454
    %1456 = vdwg.mxu0
    %v1458 = vsel %vm1093, %v1071, 0
    %1460 = vmatpush.msra.mxu0 0.0
    %1461 = vmatpush.msra.mxu0 0.0
    %1462 = vmatpush.msra.mxu0 0.0
    %1463 = vmatpush.msra.mxu0 0.0
    %1464 = vmatpush.msra.mxu0 0.0
    %1465 = vmatpush.msra.mxu0 0.0
    %1466 = vmatpush.msra.mxu0 0.0
    %1467 = vmatpush.msra.mxu0 0.0
    %1468 = vmatpush.msra.mxu0 0.0
    %v1469 = vand.u32 %v1084, 4294901760
    %1470 = vmatpush.msra.mxu0 %v1469
    %v1471 = vand.u32 %v1083, 4294901760
    %1472 = vmatpush.msra.mxu0 %v1471
    %v1473 = vand.u32 %v1082, 4294901760
    %1474 = vmatpush.msra.mxu0 %v1473
    %v1475 = vand.u32 %v1081, 4294901760
    %1476 = vmatpush.msra.mxu0 %v1475
    %v1477 = vand.u32 %v1080, 4294901760
    %1478 = vmatpush.msra.mxu0 %v1477
    %v1479 = vand.u32 %v1079, 4294901760
    %1480 = vmatpush.msra.mxu0 %v1479
    %v1481 = vand.u32 %v1078, 4294901760
    %1482 = vmatpush.msra.mxu0 %v1481
    %v1483 = vand.u32 %v1458, 4294901760
    %v1484 = vsub.f32 %v1458, %v1483
    %v1485 = vand.u32 %v1484, 4294901760
    %v1486 = vsub.f32 %v1484, %v1485
    %v1487 = vand.u32 %v1486, 4294901760
    %1488 = vmatmul.f32.gmra.mxu0 %v1487
    %v1489 = vpop.f32.mrf.mxu0
    %v1490 = vadd.f32 %v1439, %v1489
    %v1491 = vand.u32 %v1095, 4294901760
    %v1492 = vsub.f32 %v1095, %v1491
    %v1493 = vand.u32 %v1492, 4294901760
    %v1494 = vsub.f32 %v1492, %v1493
    %v1495 = vand.u32 %v1494, 4294901760
    %1496 = vmatmul.f32.gmra.mxu0 %v1495
    %v1497 = vpop.f32.mrf.mxu0
    %v1498 = vadd.f32 %v1443, %v1497
    %v1499 = vand.u32 %v1098, 4294901760
    %v1500 = vsub.f32 %v1098, %v1499
    %v1501 = vand.u32 %v1500, 4294901760
    %v1502 = vsub.f32 %v1500, %v1501
    %v1503 = vand.u32 %v1502, 4294901760
    %1504 = vmatmul.f32.gmra.mxu0 %v1503
    %v1505 = vpop.f32.mrf.mxu0
    %v1506 = vadd.f32 %v1447, %v1505
    %v1507 = vand.u32 %v1101, 4294901760
    %v1508 = vsub.f32 %v1101, %v1507
    %v1509 = vand.u32 %v1508, 4294901760
    %v1510 = vsub.f32 %v1508, %v1509
    %v1511 = vand.u32 %v1510, 4294901760
    %1512 = vmatmul.f32.gmra.mxu0 %v1511
    %v1513 = vpop.f32.mrf.mxu0
    %v1514 = vadd.f32 %v1451, %v1513
    %v1515 = vand.u32 %v1104, 4294901760
    %v1516 = vsub.f32 %v1104, %v1515
    %v1517 = vand.u32 %v1516, 4294901760
    %v1518 = vsub.f32 %v1516, %v1517
    %v1519 = vand.u32 %v1518, 4294901760
    %1520 = vmatmul.f32.gmra.mxu0 %v1519
    %v1521 = vpop.f32.mrf.mxu0
    %v1522 = vadd.f32 %v1455, %v1521
    %1523 = vdwg.mxu0
    %1524 = vmatpush.msra.mxu0 0.0
    %1525 = vmatpush.msra.mxu0 0.0
    %1526 = vmatpush.msra.mxu0 0.0
    %1527 = vmatpush.msra.mxu0 0.0
    %1528 = vmatpush.msra.mxu0 0.0
    %1529 = vmatpush.msra.mxu0 0.0
    %1530 = vmatpush.msra.mxu0 0.0
    %1531 = vmatpush.msra.mxu0 0.0
    %1532 = vmatpush.msra.mxu0 0.0
    %v1533 = vand.u32 %v1084, 4294901760
    %v1534 = vsub.f32 %v1084, %v1533
    %v1535 = vand.u32 %v1534, 4294901760
    %v1536 = vsub.f32 %v1534, %v1535
    %v1537 = vand.u32 %v1536, 4294901760
    %1538 = vmatpush.msra.mxu0 %v1537
    %v1539 = vand.u32 %v1083, 4294901760
    %v1540 = vsub.f32 %v1083, %v1539
    %v1541 = vand.u32 %v1540, 4294901760
    %v1542 = vsub.f32 %v1540, %v1541
    %v1543 = vand.u32 %v1542, 4294901760
    %1544 = vmatpush.msra.mxu0 %v1543
    %v1545 = vand.u32 %v1082, 4294901760
    %v1546 = vsub.f32 %v1082, %v1545
    %v1547 = vand.u32 %v1546, 4294901760
    %v1548 = vsub.f32 %v1546, %v1547
    %v1549 = vand.u32 %v1548, 4294901760
    %1550 = vmatpush.msra.mxu0 %v1549
    %v1551 = vand.u32 %v1081, 4294901760
    %v1552 = vsub.f32 %v1081, %v1551
    %v1553 = vand.u32 %v1552, 4294901760
    %v1554 = vsub.f32 %v1552, %v1553
    %v1555 = vand.u32 %v1554, 4294901760
    %1556 = vmatpush.msra.mxu0 %v1555
    %v1557 = vand.u32 %v1080, 4294901760
    %v1558 = vsub.f32 %v1080, %v1557
    %v1559 = vand.u32 %v1558, 4294901760
    %v1560 = vsub.f32 %v1558, %v1559
    %v1561 = vand.u32 %v1560, 4294901760
    %1562 = vmatpush.msra.mxu0 %v1561
    %v1563 = vand.u32 %v1079, 4294901760
    %v1564 = vsub.f32 %v1079, %v1563
    %v1565 = vand.u32 %v1564, 4294901760
    %v1566 = vsub.f32 %v1564, %v1565
    %v1567 = vand.u32 %v1566, 4294901760
    %1568 = vmatpush.msra.mxu0 %v1567
    %v1569 = vand.u32 %v1078, 4294901760
    %v1570 = vsub.f32 %v1078, %v1569
    %v1571 = vand.u32 %v1570, 4294901760
    %v1572 = vsub.f32 %v1570, %v1571
    %v1573 = vand.u32 %v1572, 4294901760
    %1574 = vmatpush.msra.mxu0 %v1573
    %v1575 = vand.u32 %v1458, 4294901760
    %1576 = vmatmul.f32.gmra.mxu0 %v1575
    %v1577 = vpop.f32.mrf.mxu0
    %v1578 = vadd.f32 %v1490, %v1577
    %v1579 = vand.u32 %v1095, 4294901760
    %1580 = vmatmul.f32.gmra.mxu0 %v1579
    %v1581 = vpop.f32.mrf.mxu0
    %v1582 = vadd.f32 %v1498, %v1581
    %v1583 = vand.u32 %v1098, 4294901760
    %1584 = vmatmul.f32.gmra.mxu0 %v1583
    %v1585 = vpop.f32.mrf.mxu0
    %v1586 = vadd.f32 %v1506, %v1585
    %v1587 = vand.u32 %v1101, 4294901760
    %1588 = vmatmul.f32.gmra.mxu0 %v1587
    %v1589 = vpop.f32.mrf.mxu0
    %v1590 = vadd.f32 %v1514, %v1589
    %v1591 = vand.u32 %v1104, 4294901760
    %1592 = vmatmul.f32.gmra.mxu0 %v1591
    %v1593 = vpop.f32.mrf.mxu0
    %v1594 = vadd.f32 %v1522, %v1593
    %1595 = vdwg.mxu0
    %1596 = vmatpush.msra.mxu0 0.0
    %1597 = vmatpush.msra.mxu0 0.0
    %1598 = vmatpush.msra.mxu0 0.0
    %1599 = vmatpush.msra.mxu0 0.0
    %1600 = vmatpush.msra.mxu0 0.0
    %1601 = vmatpush.msra.mxu0 0.0
    %1602 = vmatpush.msra.mxu0 0.0
    %1603 = vmatpush.msra.mxu0 0.0
    %1604 = vmatpush.msra.mxu0 0.0
    %v1605 = vand.u32 %v1084, 4294901760
    %v1606 = vsub.f32 %v1084, %v1605
    %1607 = vmatpush.msra.mxu0 %v1606
    %v1608 = vand.u32 %v1083, 4294901760
    %v1609 = vsub.f32 %v1083, %v1608
    %1610 = vmatpush.msra.mxu0 %v1609
    %v1611 = vand.u32 %v1082, 4294901760
    %v1612 = vsub.f32 %v1082, %v1611
    %1613 = vmatpush.msra.mxu0 %v1612
    %v1614 = vand.u32 %v1081, 4294901760
    %v1615 = vsub.f32 %v1081, %v1614
    %1616 = vmatpush.msra.mxu0 %v1615
    %v1617 = vand.u32 %v1080, 4294901760
    %v1618 = vsub.f32 %v1080, %v1617
    %1619 = vmatpush.msra.mxu0 %v1618
    %v1620 = vand.u32 %v1079, 4294901760
    %v1621 = vsub.f32 %v1079, %v1620
    %1622 = vmatpush.msra.mxu0 %v1621
    %v1623 = vand.u32 %v1078, 4294901760
    %v1624 = vsub.f32 %v1078, %v1623
    %1625 = vmatpush.msra.mxu0 %v1624
    %v1626 = vand.u32 %v1458, 4294901760
    %v1627 = vsub.f32 %v1458, %v1626
    %1628 = vmatmul.f32.gmra.mxu0 %v1627
    %v1629 = vpop.f32.mrf.mxu0
    %v1630 = vadd.f32 %v1578, %v1629
    %v1631 = vand.u32 %v1095, 4294901760
    %v1632 = vsub.f32 %v1095, %v1631
    %1633 = vmatmul.f32.gmra.mxu0 %v1632
    %v1634 = vpop.f32.mrf.mxu0
    %v1635 = vadd.f32 %v1582, %v1634
    %v1636 = vand.u32 %v1098, 4294901760
    %v1637 = vsub.f32 %v1098, %v1636
    %1638 = vmatmul.f32.gmra.mxu0 %v1637
    %v1639 = vpop.f32.mrf.mxu0
    %v1640 = vadd.f32 %v1586, %v1639
    %v1641 = vand.u32 %v1101, 4294901760
    %v1642 = vsub.f32 %v1101, %v1641
    %1643 = vmatmul.f32.gmra.mxu0 %v1642
    %v1644 = vpop.f32.mrf.mxu0
    %v1645 = vadd.f32 %v1590, %v1644
    %v1646 = vand.u32 %v1104, 4294901760
    %v1647 = vsub.f32 %v1104, %v1646
    %1648 = vmatmul.f32.gmra.mxu0 %v1647
    %v1649 = vpop.f32.mrf.mxu0
    %v1650 = vadd.f32 %v1594, %v1649
    %1651 = vdwg.mxu0
    %1652 = vmatpush.msra.mxu0 0.0
    %1653 = vmatpush.msra.mxu0 0.0
    %1654 = vmatpush.msra.mxu0 0.0
    %1655 = vmatpush.msra.mxu0 0.0
    %1656 = vmatpush.msra.mxu0 0.0
    %1657 = vmatpush.msra.mxu0 0.0
    %1658 = vmatpush.msra.mxu0 0.0
    %1659 = vmatpush.msra.mxu0 0.0
    %1660 = vmatpush.msra.mxu0 0.0
    %v1661 = vand.u32 %v1084, 4294901760
    %1662 = vmatpush.msra.mxu0 %v1661
    %v1663 = vand.u32 %v1083, 4294901760
    %1664 = vmatpush.msra.mxu0 %v1663
    %v1665 = vand.u32 %v1082, 4294901760
    %1666 = vmatpush.msra.mxu0 %v1665
    %v1667 = vand.u32 %v1081, 4294901760
    %1668 = vmatpush.msra.mxu0 %v1667
    %v1669 = vand.u32 %v1080, 4294901760
    %1670 = vmatpush.msra.mxu0 %v1669
    %v1671 = vand.u32 %v1079, 4294901760
    %1672 = vmatpush.msra.mxu0 %v1671
    %v1673 = vand.u32 %v1078, 4294901760
    %1674 = vmatpush.msra.mxu0 %v1673
    %v1675 = vand.u32 %v1458, 4294901760
    %v1676 = vsub.f32 %v1458, %v1675
    %v1677 = vand.u32 %v1676, 4294901760
    %1678 = vmatmul.f32.gmra.mxu0 %v1677
    %v1679 = vpop.f32.mrf.mxu0
    %v1680 = vadd.f32 %v1630, %v1679
    %v1681 = vand.u32 %v1095, 4294901760
    %v1682 = vsub.f32 %v1095, %v1681
    %v1683 = vand.u32 %v1682, 4294901760
    %1684 = vmatmul.f32.gmra.mxu0 %v1683
    %v1685 = vpop.f32.mrf.mxu0
    %v1686 = vadd.f32 %v1635, %v1685
    %v1687 = vand.u32 %v1098, 4294901760
    %v1688 = vsub.f32 %v1098, %v1687
    %v1689 = vand.u32 %v1688, 4294901760
    %1690 = vmatmul.f32.gmra.mxu0 %v1689
    %v1691 = vpop.f32.mrf.mxu0
    %v1692 = vadd.f32 %v1640, %v1691
    %v1693 = vand.u32 %v1101, 4294901760
    %v1694 = vsub.f32 %v1101, %v1693
    %v1695 = vand.u32 %v1694, 4294901760
    %1696 = vmatmul.f32.gmra.mxu0 %v1695
    %v1697 = vpop.f32.mrf.mxu0
    %v1698 = vadd.f32 %v1645, %v1697
    %v1699 = vand.u32 %v1104, 4294901760
    %v1700 = vsub.f32 %v1104, %v1699
    %v1701 = vand.u32 %v1700, 4294901760
    %1702 = vmatmul.f32.gmra.mxu0 %v1701
    %v1703 = vpop.f32.mrf.mxu0
    %v1704 = vadd.f32 %v1650, %v1703
    %1705 = vdwg.mxu0
    %1706 = vmatpush.msra.mxu0 0.0
    %1707 = vmatpush.msra.mxu0 0.0
    %1708 = vmatpush.msra.mxu0 0.0
    %1709 = vmatpush.msra.mxu0 0.0
    %1710 = vmatpush.msra.mxu0 0.0
    %1711 = vmatpush.msra.mxu0 0.0
    %1712 = vmatpush.msra.mxu0 0.0
    %1713 = vmatpush.msra.mxu0 0.0
    %1714 = vmatpush.msra.mxu0 0.0
    %v1715 = vand.u32 %v1084, 4294901760
    %v1716 = vsub.f32 %v1084, %v1715
    %v1717 = vand.u32 %v1716, 4294901760
    %1718 = vmatpush.msra.mxu0 %v1717
    %v1719 = vand.u32 %v1083, 4294901760
    %v1720 = vsub.f32 %v1083, %v1719
    %v1721 = vand.u32 %v1720, 4294901760
    %1722 = vmatpush.msra.mxu0 %v1721
    %v1723 = vand.u32 %v1082, 4294901760
    %v1724 = vsub.f32 %v1082, %v1723
    %v1725 = vand.u32 %v1724, 4294901760
    %1726 = vmatpush.msra.mxu0 %v1725
    %v1727 = vand.u32 %v1081, 4294901760
    %v1728 = vsub.f32 %v1081, %v1727
    %v1729 = vand.u32 %v1728, 4294901760
    %1730 = vmatpush.msra.mxu0 %v1729
    %v1731 = vand.u32 %v1080, 4294901760
    %v1732 = vsub.f32 %v1080, %v1731
    %v1733 = vand.u32 %v1732, 4294901760
    %1734 = vmatpush.msra.mxu0 %v1733
    %v1735 = vand.u32 %v1079, 4294901760
    %v1736 = vsub.f32 %v1079, %v1735
    %v1737 = vand.u32 %v1736, 4294901760
    %1738 = vmatpush.msra.mxu0 %v1737
    %v1739 = vand.u32 %v1078, 4294901760
    %v1740 = vsub.f32 %v1078, %v1739
    %v1741 = vand.u32 %v1740, 4294901760
    %1742 = vmatpush.msra.mxu0 %v1741
    %v1743 = vand.u32 %v1458, 4294901760
    %1744 = vmatmul.f32.gmra.mxu0 %v1743
    %v1745 = vpop.f32.mrf.mxu0
    %v1746 = vadd.f32 %v1680, %v1745
    %v1747 = vand.u32 %v1095, 4294901760
    %1748 = vmatmul.f32.gmra.mxu0 %v1747
    %v1749 = vpop.f32.mrf.mxu0
    %v1750 = vadd.f32 %v1686, %v1749
    %v1751 = vand.u32 %v1098, 4294901760
    %1752 = vmatmul.f32.gmra.mxu0 %v1751
    %v1753 = vpop.f32.mrf.mxu0
    %v1754 = vadd.f32 %v1692, %v1753
    %v1755 = vand.u32 %v1101, 4294901760
    %1756 = vmatmul.f32.gmra.mxu0 %v1755
    %v1757 = vpop.f32.mrf.mxu0
    %v1758 = vadd.f32 %v1698, %v1757
    %v1759 = vand.u32 %v1104, 4294901760
    %1760 = vmatmul.f32.gmra.mxu0 %v1759
    %v1761 = vpop.f32.mrf.mxu0
    %v1762 = vadd.f32 %v1704, %v1761
    %1763 = vdwg.mxu0
    %1764 = vmatpush.msra.mxu0 0.0
    %1765 = vmatpush.msra.mxu0 0.0
    %1766 = vmatpush.msra.mxu0 0.0
    %1767 = vmatpush.msra.mxu0 0.0
    %1768 = vmatpush.msra.mxu0 0.0
    %1769 = vmatpush.msra.mxu0 0.0
    %1770 = vmatpush.msra.mxu0 0.0
    %1771 = vmatpush.msra.mxu0 0.0
    %1772 = vmatpush.msra.mxu0 0.0
    %v1773 = vand.u32 %v1084, 4294901760
    %1774 = vmatpush.msra.mxu0 %v1773
    %v1775 = vand.u32 %v1083, 4294901760
    %1776 = vmatpush.msra.mxu0 %v1775
    %v1777 = vand.u32 %v1082, 4294901760
    %1778 = vmatpush.msra.mxu0 %v1777
    %v1779 = vand.u32 %v1081, 4294901760
    %1780 = vmatpush.msra.mxu0 %v1779
    %v1781 = vand.u32 %v1080, 4294901760
    %1782 = vmatpush.msra.mxu0 %v1781
    %v1783 = vand.u32 %v1079, 4294901760
    %1784 = vmatpush.msra.mxu0 %v1783
    %v1785 = vand.u32 %v1078, 4294901760
    %1786 = vmatpush.msra.mxu0 %v1785
    %v1787 = vand.u32 %v1458, 4294901760
    %1788 = vmatmul.f32.gmra.mxu0 %v1787
    %v1789 = vpop.f32.mrf.mxu0
    %v1790 = vadd.f32 %v1746, %v1789
    %v1791 = vand.u32 %v1095, 4294901760
    %1792 = vmatmul.f32.gmra.mxu0 %v1791
    %v1793 = vpop.f32.mrf.mxu0
    %v1794 = vadd.f32 %v1750, %v1793
    %v1795 = vand.u32 %v1098, 4294901760
    %1796 = vmatmul.f32.gmra.mxu0 %v1795
    %v1797 = vpop.f32.mrf.mxu0
    %v1798 = vadd.f32 %v1754, %v1797
    %v1799 = vand.u32 %v1101, 4294901760
    %1800 = vmatmul.f32.gmra.mxu0 %v1799
    %v1801 = vpop.f32.mrf.mxu0
    %v1802 = vadd.f32 %v1758, %v1801
    %v1803 = vand.u32 %v1104, 4294901760
    %1804 = vmatmul.f32.gmra.mxu0 %v1803
    %v1805 = vpop.f32.mrf.mxu0
    %v1806 = vadd.f32 %v1762, %v1805
    %1807 = vdwg.mxu0
    %s1808 = scalar_lea.vmem %s4, 112
    %v1809 = vld [vmem:[%s1808] sm:$0xff]
    %v1810 = vld [vmem:[%s1808 + $0x8] sm:$0xff]
    %v1811 = vld [vmem:[%s1808 + $0x10] sm:$0xff]
    %v1812 = vld [vmem:[%s1808 + $0x18] sm:$0xff]
    %v1813 = vld [vmem:[%s1808 + $0x20] sm:$0xff]
    %v1814 = vld [vmem:[%s1808 + $0x28] sm:$0xff]
    %v1815 = vld [vmem:[%s1808 + $0x30] sm:$0xff]
    %v1817 = vsel %vm1093, %v1077, 0
    %1819 = vmatpush.msra.mxu0 0.0
    %1820 = vmatpush.msra.mxu0 0.0
    %1821 = vmatpush.msra.mxu0 0.0
    %1822 = vmatpush.msra.mxu0 0.0
    %1823 = vmatpush.msra.mxu0 0.0
    %1824 = vmatpush.msra.mxu0 0.0
    %1825 = vmatpush.msra.mxu0 0.0
    %1826 = vmatpush.msra.mxu0 0.0
    %1827 = vmatpush.msra.mxu0 0.0
    %v1828 = vand.u32 %v1815, 4294901760
    %1829 = vmatpush.msra.mxu0 %v1828
    %v1830 = vand.u32 %v1814, 4294901760
    %1831 = vmatpush.msra.mxu0 %v1830
    %v1832 = vand.u32 %v1813, 4294901760
    %1833 = vmatpush.msra.mxu0 %v1832
    %v1834 = vand.u32 %v1812, 4294901760
    %1835 = vmatpush.msra.mxu0 %v1834
    %v1836 = vand.u32 %v1811, 4294901760
    %1837 = vmatpush.msra.mxu0 %v1836
    %v1838 = vand.u32 %v1810, 4294901760
    %1839 = vmatpush.msra.mxu0 %v1838
    %v1840 = vand.u32 %v1809, 4294901760
    %1841 = vmatpush.msra.mxu0 %v1840
    %v1842 = vand.u32 %v1098, 4294901760
    %v1843 = vsub.f32 %v1098, %v1842
    %v1844 = vand.u32 %v1843, 4294901760
    %v1845 = vsub.f32 %v1843, %v1844
    %v1846 = vand.u32 %v1845, 4294901760
    %1847 = vmatmul.f32.gmra.mxu0 %v1846
    %v1848 = vpop.f32.mrf.mxu0
    %v1849 = vadd.f32 0.0, %v1848
    %v1850 = vand.u32 %v1101, 4294901760
    %v1851 = vsub.f32 %v1101, %v1850
    %v1852 = vand.u32 %v1851, 4294901760
    %v1853 = vsub.f32 %v1851, %v1852
    %v1854 = vand.u32 %v1853, 4294901760
    %1855 = vmatmul.f32.gmra.mxu0 %v1854
    %v1856 = vpop.f32.mrf.mxu0
    %v1857 = vadd.f32 0.0, %v1856
    %v1858 = vand.u32 %v1104, 4294901760
    %v1859 = vsub.f32 %v1104, %v1858
    %v1860 = vand.u32 %v1859, 4294901760
    %v1861 = vsub.f32 %v1859, %v1860
    %v1862 = vand.u32 %v1861, 4294901760
    %1863 = vmatmul.f32.gmra.mxu0 %v1862
    %v1864 = vpop.f32.mrf.mxu0
    %v1865 = vadd.f32 0.0, %v1864
    %v1866 = vand.u32 %v1107, 4294901760
    %v1867 = vsub.f32 %v1107, %v1866
    %v1868 = vand.u32 %v1867, 4294901760
    %v1869 = vsub.f32 %v1867, %v1868
    %v1870 = vand.u32 %v1869, 4294901760
    %1871 = vmatmul.f32.gmra.mxu0 %v1870
    %v1872 = vpop.f32.mrf.mxu0
    %v1873 = vadd.f32 0.0, %v1872
    %v1874 = vand.u32 %v1817, 4294901760
    %v1875 = vsub.f32 %v1817, %v1874
    %v1876 = vand.u32 %v1875, 4294901760
    %v1877 = vsub.f32 %v1875, %v1876
    %v1878 = vand.u32 %v1877, 4294901760
    %1879 = vmatmul.f32.gmra.mxu0 %v1878
    %v1880 = vpop.f32.mrf.mxu0
    %v1881 = vadd.f32 0.0, %v1880
    %1882 = vdwg.mxu0
    %1883 = vmatpush.msra.mxu0 0.0
    %1884 = vmatpush.msra.mxu0 0.0
    %1885 = vmatpush.msra.mxu0 0.0
    %1886 = vmatpush.msra.mxu0 0.0
    %1887 = vmatpush.msra.mxu0 0.0
    %1888 = vmatpush.msra.mxu0 0.0
    %1889 = vmatpush.msra.mxu0 0.0
    %1890 = vmatpush.msra.mxu0 0.0
    %1891 = vmatpush.msra.mxu0 0.0
    %v1892 = vand.u32 %v1815, 4294901760
    %v1893 = vsub.f32 %v1815, %v1892
    %v1894 = vand.u32 %v1893, 4294901760
    %v1895 = vsub.f32 %v1893, %v1894
    %v1896 = vand.u32 %v1895, 4294901760
    %1897 = vmatpush.msra.mxu0 %v1896
    %v1898 = vand.u32 %v1814, 4294901760
    %v1899 = vsub.f32 %v1814, %v1898
    %v1900 = vand.u32 %v1899, 4294901760
    %v1901 = vsub.f32 %v1899, %v1900
    %v1902 = vand.u32 %v1901, 4294901760
    %1903 = vmatpush.msra.mxu0 %v1902
    %v1904 = vand.u32 %v1813, 4294901760
    %v1905 = vsub.f32 %v1813, %v1904
    %v1906 = vand.u32 %v1905, 4294901760
    %v1907 = vsub.f32 %v1905, %v1906
    %v1908 = vand.u32 %v1907, 4294901760
    %1909 = vmatpush.msra.mxu0 %v1908
    %v1910 = vand.u32 %v1812, 4294901760
    %v1911 = vsub.f32 %v1812, %v1910
    %v1912 = vand.u32 %v1911, 4294901760
    %v1913 = vsub.f32 %v1911, %v1912
    %v1914 = vand.u32 %v1913, 4294901760
    %1915 = vmatpush.msra.mxu0 %v1914
    %v1916 = vand.u32 %v1811, 4294901760
    %v1917 = vsub.f32 %v1811, %v1916
    %v1918 = vand.u32 %v1917, 4294901760
    %v1919 = vsub.f32 %v1917, %v1918
    %v1920 = vand.u32 %v1919, 4294901760
    %1921 = vmatpush.msra.mxu0 %v1920
    %v1922 = vand.u32 %v1810, 4294901760
    %v1923 = vsub.f32 %v1810, %v1922
    %v1924 = vand.u32 %v1923, 4294901760
    %v1925 = vsub.f32 %v1923, %v1924
    %v1926 = vand.u32 %v1925, 4294901760
    %1927 = vmatpush.msra.mxu0 %v1926
    %v1928 = vand.u32 %v1809, 4294901760
    %v1929 = vsub.f32 %v1809, %v1928
    %v1930 = vand.u32 %v1929, 4294901760
    %v1931 = vsub.f32 %v1929, %v1930
    %v1932 = vand.u32 %v1931, 4294901760
    %1933 = vmatpush.msra.mxu0 %v1932
    %v1934 = vand.u32 %v1098, 4294901760
    %1935 = vmatmul.f32.gmra.mxu0 %v1934
    %v1936 = vpop.f32.mrf.mxu0
    %v1937 = vadd.f32 %v1849, %v1936
    %v1938 = vand.u32 %v1101, 4294901760
    %1939 = vmatmul.f32.gmra.mxu0 %v1938
    %v1940 = vpop.f32.mrf.mxu0
    %v1941 = vadd.f32 %v1857, %v1940
    %v1942 = vand.u32 %v1104, 4294901760
    %1943 = vmatmul.f32.gmra.mxu0 %v1942
    %v1944 = vpop.f32.mrf.mxu0
    %v1945 = vadd.f32 %v1865, %v1944
    %v1946 = vand.u32 %v1107, 4294901760
    %1947 = vmatmul.f32.gmra.mxu0 %v1946
    %v1948 = vpop.f32.mrf.mxu0
    %v1949 = vadd.f32 %v1873, %v1948
    %v1950 = vand.u32 %v1817, 4294901760
    %1951 = vmatmul.f32.gmra.mxu0 %v1950
    %v1952 = vpop.f32.mrf.mxu0
    %v1953 = vadd.f32 %v1881, %v1952
    %1954 = vdwg.mxu0
    %1955 = vmatpush.msra.mxu0 0.0
    %1956 = vmatpush.msra.mxu0 0.0
    %1957 = vmatpush.msra.mxu0 0.0
    %1958 = vmatpush.msra.mxu0 0.0
    %1959 = vmatpush.msra.mxu0 0.0
    %1960 = vmatpush.msra.mxu0 0.0
    %1961 = vmatpush.msra.mxu0 0.0
    %1962 = vmatpush.msra.mxu0 0.0
    %1963 = vmatpush.msra.mxu0 0.0
    %v1964 = vand.u32 %v1815, 4294901760
    %v1965 = vsub.f32 %v1815, %v1964
    %1966 = vmatpush.msra.mxu0 %v1965
    %v1967 = vand.u32 %v1814, 4294901760
    %v1968 = vsub.f32 %v1814, %v1967
    %1969 = vmatpush.msra.mxu0 %v1968
    %v1970 = vand.u32 %v1813, 4294901760
    %v1971 = vsub.f32 %v1813, %v1970
    %1972 = vmatpush.msra.mxu0 %v1971
    %v1973 = vand.u32 %v1812, 4294901760
    %v1974 = vsub.f32 %v1812, %v1973
    %1975 = vmatpush.msra.mxu0 %v1974
    %v1976 = vand.u32 %v1811, 4294901760
    %v1977 = vsub.f32 %v1811, %v1976
    %1978 = vmatpush.msra.mxu0 %v1977
    %v1979 = vand.u32 %v1810, 4294901760
    %v1980 = vsub.f32 %v1810, %v1979
    %1981 = vmatpush.msra.mxu0 %v1980
    %v1982 = vand.u32 %v1809, 4294901760
    %v1983 = vsub.f32 %v1809, %v1982
    %1984 = vmatpush.msra.mxu0 %v1983
    %v1985 = vand.u32 %v1098, 4294901760
    %v1986 = vsub.f32 %v1098, %v1985
    %1987 = vmatmul.f32.gmra.mxu0 %v1986
    %v1988 = vpop.f32.mrf.mxu0
    %v1989 = vadd.f32 %v1937, %v1988
    %v1990 = vand.u32 %v1101, 4294901760
    %v1991 = vsub.f32 %v1101, %v1990
    %1992 = vmatmul.f32.gmra.mxu0 %v1991
    %v1993 = vpop.f32.mrf.mxu0
    %v1994 = vadd.f32 %v1941, %v1993
    %v1995 = vand.u32 %v1104, 4294901760
    %v1996 = vsub.f32 %v1104, %v1995
    %1997 = vmatmul.f32.gmra.mxu0 %v1996
    %v1998 = vpop.f32.mrf.mxu0
    %v1999 = vadd.f32 %v1945, %v1998
    %v2000 = vand.u32 %v1107, 4294901760
    %v2001 = vsub.f32 %v1107, %v2000
    %2002 = vmatmul.f32.gmra.mxu0 %v2001
    %v2003 = vpop.f32.mrf.mxu0
    %v2004 = vadd.f32 %v1949, %v2003
    %v2005 = vand.u32 %v1817, 4294901760
    %v2006 = vsub.f32 %v1817, %v2005
    %2007 = vmatmul.f32.gmra.mxu0 %v2006
    %v2008 = vpop.f32.mrf.mxu0
    %v2009 = vadd.f32 %v1953, %v2008
    %2010 = vdwg.mxu0
    %2011 = vmatpush.msra.mxu0 0.0
    %2012 = vmatpush.msra.mxu0 0.0
    %2013 = vmatpush.msra.mxu0 0.0
    %2014 = vmatpush.msra.mxu0 0.0
    %2015 = vmatpush.msra.mxu0 0.0
    %2016 = vmatpush.msra.mxu0 0.0
    %2017 = vmatpush.msra.mxu0 0.0
    %2018 = vmatpush.msra.mxu0 0.0
    %2019 = vmatpush.msra.mxu0 0.0
    %v2020 = vand.u32 %v1815, 4294901760
    %2021 = vmatpush.msra.mxu0 %v2020
    %v2022 = vand.u32 %v1814, 4294901760
    %2023 = vmatpush.msra.mxu0 %v2022
    %v2024 = vand.u32 %v1813, 4294901760
    %2025 = vmatpush.msra.mxu0 %v2024
    %v2026 = vand.u32 %v1812, 4294901760
    %2027 = vmatpush.msra.mxu0 %v2026
    %v2028 = vand.u32 %v1811, 4294901760
    %2029 = vmatpush.msra.mxu0 %v2028
    %v2030 = vand.u32 %v1810, 4294901760
    %2031 = vmatpush.msra.mxu0 %v2030
    %v2032 = vand.u32 %v1809, 4294901760
    %2033 = vmatpush.msra.mxu0 %v2032
    %v2034 = vand.u32 %v1098, 4294901760
    %v2035 = vsub.f32 %v1098, %v2034
    %v2036 = vand.u32 %v2035, 4294901760
    %2037 = vmatmul.f32.gmra.mxu0 %v2036
    %v2038 = vpop.f32.mrf.mxu0
    %v2039 = vadd.f32 %v1989, %v2038
    %v2040 = vand.u32 %v1101, 4294901760
    %v2041 = vsub.f32 %v1101, %v2040
    %v2042 = vand.u32 %v2041, 4294901760
    %2043 = vmatmul.f32.gmra.mxu0 %v2042
    %v2044 = vpop.f32.mrf.mxu0
    %v2045 = vadd.f32 %v1994, %v2044
    %v2046 = vand.u32 %v1104, 4294901760
    %v2047 = vsub.f32 %v1104, %v2046
    %v2048 = vand.u32 %v2047, 4294901760
    %2049 = vmatmul.f32.gmra.mxu0 %v2048
    %v2050 = vpop.f32.mrf.mxu0
    %v2051 = vadd.f32 %v1999, %v2050
    %v2052 = vand.u32 %v1107, 4294901760
    %v2053 = vsub.f32 %v1107, %v2052
    %v2054 = vand.u32 %v2053, 4294901760
    %2055 = vmatmul.f32.gmra.mxu0 %v2054
    %v2056 = vpop.f32.mrf.mxu0
    %v2057 = vadd.f32 %v2004, %v2056
    %v2058 = vand.u32 %v1817, 4294901760
    %v2059 = vsub.f32 %v1817, %v2058
    %v2060 = vand.u32 %v2059, 4294901760
    %2061 = vmatmul.f32.gmra.mxu0 %v2060
    %v2062 = vpop.f32.mrf.mxu0
    %v2063 = vadd.f32 %v2009, %v2062
    %2064 = vdwg.mxu0
    %2065 = vmatpush.msra.mxu0 0.0
    %2066 = vmatpush.msra.mxu0 0.0
    %2067 = vmatpush.msra.mxu0 0.0
    %2068 = vmatpush.msra.mxu0 0.0
    %2069 = vmatpush.msra.mxu0 0.0
    %2070 = vmatpush.msra.mxu0 0.0
    %2071 = vmatpush.msra.mxu0 0.0
    %2072 = vmatpush.msra.mxu0 0.0
    %2073 = vmatpush.msra.mxu0 0.0
    %v2074 = vand.u32 %v1815, 4294901760
    %v2075 = vsub.f32 %v1815, %v2074
    %v2076 = vand.u32 %v2075, 4294901760
    %2077 = vmatpush.msra.mxu0 %v2076
    %v2078 = vand.u32 %v1814, 4294901760
    %v2079 = vsub.f32 %v1814, %v2078
    %v2080 = vand.u32 %v2079, 4294901760
    %2081 = vmatpush.msra.mxu0 %v2080
    %v2082 = vand.u32 %v1813, 4294901760
    %v2083 = vsub.f32 %v1813, %v2082
    %v2084 = vand.u32 %v2083, 4294901760
    %2085 = vmatpush.msra.mxu0 %v2084
    %v2086 = vand.u32 %v1812, 4294901760
    %v2087 = vsub.f32 %v1812, %v2086
    %v2088 = vand.u32 %v2087, 4294901760
    %2089 = vmatpush.msra.mxu0 %v2088
    %v2090 = vand.u32 %v1811, 4294901760
    %v2091 = vsub.f32 %v1811, %v2090
    %v2092 = vand.u32 %v2091, 4294901760
    %2093 = vmatpush.msra.mxu0 %v2092
    %v2094 = vand.u32 %v1810, 4294901760
    %v2095 = vsub.f32 %v1810, %v2094
    %v2096 = vand.u32 %v2095, 4294901760
    %2097 = vmatpush.msra.mxu0 %v2096
    %v2098 = vand.u32 %v1809, 4294901760
    %v2099 = vsub.f32 %v1809, %v2098
    %v2100 = vand.u32 %v2099, 4294901760
    %2101 = vmatpush.msra.mxu0 %v2100
    %v2102 = vand.u32 %v1098, 4294901760
    %2103 = vmatmul.f32.gmra.mxu0 %v2102
    %v2104 = vpop.f32.mrf.mxu0
    %v2105 = vadd.f32 %v2039, %v2104
    %v2106 = vand.u32 %v1101, 4294901760
    %2107 = vmatmul.f32.gmra.mxu0 %v2106
    %v2108 = vpop.f32.mrf.mxu0
    %v2109 = vadd.f32 %v2045, %v2108
    %v2110 = vand.u32 %v1104, 4294901760
    %2111 = vmatmul.f32.gmra.mxu0 %v2110
    %v2112 = vpop.f32.mrf.mxu0
    %v2113 = vadd.f32 %v2051, %v2112
    %v2114 = vand.u32 %v1107, 4294901760
    %2115 = vmatmul.f32.gmra.mxu0 %v2114
    %v2116 = vpop.f32.mrf.mxu0
    %v2117 = vadd.f32 %v2057, %v2116
    %v2118 = vand.u32 %v1817, 4294901760
    %2119 = vmatmul.f32.gmra.mxu0 %v2118
    %v2120 = vpop.f32.mrf.mxu0
    %v2121 = vadd.f32 %v2063, %v2120
    %2122 = vdwg.mxu0
    %2123 = vmatpush.msra.mxu0 0.0
    %2124 = vmatpush.msra.mxu0 0.0
    %2125 = vmatpush.msra.mxu0 0.0
    %2126 = vmatpush.msra.mxu0 0.0
    %2127 = vmatpush.msra.mxu0 0.0
    %2128 = vmatpush.msra.mxu0 0.0
    %2129 = vmatpush.msra.mxu0 0.0
    %2130 = vmatpush.msra.mxu0 0.0
    %2131 = vmatpush.msra.mxu0 0.0
    %v2132 = vand.u32 %v1815, 4294901760
    %2133 = vmatpush.msra.mxu0 %v2132
    %v2134 = vand.u32 %v1814, 4294901760
    %2135 = vmatpush.msra.mxu0 %v2134
    %v2136 = vand.u32 %v1813, 4294901760
    %2137 = vmatpush.msra.mxu0 %v2136
    %v2138 = vand.u32 %v1812, 4294901760
    %2139 = vmatpush.msra.mxu0 %v2138
    %v2140 = vand.u32 %v1811, 4294901760
    %2141 = vmatpush.msra.mxu0 %v2140
    %v2142 = vand.u32 %v1810, 4294901760
    %2143 = vmatpush.msra.mxu0 %v2142
    %v2144 = vand.u32 %v1809, 4294901760
    %2145 = vmatpush.msra.mxu0 %v2144
    %v2146 = vand.u32 %v1098, 4294901760
    %2147 = vmatmul.f32.gmra.mxu0 %v2146
    %v2148 = vpop.f32.mrf.mxu0
    %v2149 = vadd.f32 %v2105, %v2148
    %v2150 = vand.u32 %v1101, 4294901760
    %2151 = vmatmul.f32.gmra.mxu0 %v2150
    %v2152 = vpop.f32.mrf.mxu0
    %v2153 = vadd.f32 %v2109, %v2152
    %v2154 = vand.u32 %v1104, 4294901760
    %2155 = vmatmul.f32.gmra.mxu0 %v2154
    %v2156 = vpop.f32.mrf.mxu0
    %v2157 = vadd.f32 %v2113, %v2156
    %v2158 = vand.u32 %v1107, 4294901760
    %2159 = vmatmul.f32.gmra.mxu0 %v2158
    %v2160 = vpop.f32.mrf.mxu0
    %v2161 = vadd.f32 %v2117, %v2160
    %v2162 = vand.u32 %v1817, 4294901760
    %2163 = vmatmul.f32.gmra.mxu0 %v2162
    %v2164 = vpop.f32.mrf.mxu0
    %v2165 = vadd.f32 %v2121, %v2164
    %2166 = vdwg.mxu0
    %v2167 = vadd.f32 %v1790, %v2149
    %v2168 = vadd.f32 %v1794, %v2153
    %v2169 = vadd.f32 %v1798, %v2157
    %v2170 = vadd.f32 %v1802, %v2161
    %v2171 = vadd.f32 %v1806, %v2165
    %v2172 = vld [vmem:[%s5] sm:$0x1]
    %v2174 = vperm.slane %v2172, 0
    %v2176 = vadd.f32 %v2167, %v2174
    %v2177 = vadd.f32 %v2168, %v2174
    %v2178 = vadd.f32 %v2169, %v2174
    %v2179 = vadd.f32 %v2170, %v2174
    %v2180 = vadd.f32 %v2171, %v2174
    %v2181 = vmax.f32 %v2176, 0.0
    %v2182 = vmax.f32 %v2177, 0.0
    %v2183 = vmax.f32 %v2178, 0.0
    %v2184 = vmax.f32 %v2179, 0.0
    %v2185 = vmax.f32 %v2180, 0.0
    %v2186 = vld [vmem:[%s6] sm:$0xff]
    %v2187 = vld [vmem:[%s6 + $0x8] sm:$0xff]
    %v2188 = vld [vmem:[%s6 + $0x10] sm:$0xff]
    %v2189 = vld [vmem:[%s6 + $0x18] sm:$0xff]
    %v2190 = vld [vmem:[%s6 + $0x20] sm:$0xff]
    %s2191 = scalar_lea.vmem %s6, 40
    %v2192 = vld [vmem:[%s2191] sm:$0xff]
    %v2193 = vld [vmem:[%s2191 + $0x8] sm:$0xff]
    %v2194 = vld [vmem:[%s2191 + $0x10] sm:$0xff]
    %v2195 = vld [vmem:[%s2191 + $0x18] sm:$0xff]
    %v2196 = vld [vmem:[%s2191 + $0x20] sm:$0xff]
    %vm2197 = vcmask 326656
    %v2199 = vsel %vm2197, %v2182, 0
    %2201 = vmatpush.msra.mxu0 0.0
    %2202 = vmatpush.msra.mxu0 0.0
    %2203 = vmatpush.msra.mxu0 0.0
    %2204 = vmatpush.msra.mxu0 0.0
    %2205 = vmatpush.msra.mxu0 0.0
    %2206 = vmatpush.msra.mxu0 0.0
    %2207 = vmatpush.msra.mxu0 0.0
    %2208 = vmatpush.msra.mxu0 0.0
    %2209 = vmatpush.msra.mxu0 0.0
    %2210 = vmatpush.msra.mxu0 0.0
    %2211 = vmatpush.msra.mxu0 0.0
    %v2212 = vand.u32 %v2196, 4294901760
    %2213 = vmatpush.msra.mxu0 %v2212
    %v2214 = vand.u32 %v2195, 4294901760
    %2215 = vmatpush.msra.mxu0 %v2214
    %v2216 = vand.u32 %v2194, 4294901760
    %2217 = vmatpush.msra.mxu0 %v2216
    %v2218 = vand.u32 %v2193, 4294901760
    %2219 = vmatpush.msra.mxu0 %v2218
    %v2220 = vand.u32 %v2192, 4294901760
    %2221 = vmatpush.msra.mxu0 %v2220
    %v2222 = vand.u32 %v2199, 4294901760
    %v2223 = vsub.f32 %v2199, %v2222
    %v2224 = vand.u32 %v2223, 4294901760
    %v2225 = vsub.f32 %v2223, %v2224
    %v2226 = vand.u32 %v2225, 4294901760
    %2227 = vmatmul.f32.gmra.mxu0 %v2226
    %v2228 = vpop.f32.mrf.mxu0
    %v2229 = vadd.f32 0.0, %v2228
    %2230 = vdwg.mxu0
    %2231 = vmatpush.msra.mxu0 0.0
    %2232 = vmatpush.msra.mxu0 0.0
    %2233 = vmatpush.msra.mxu0 0.0
    %2234 = vmatpush.msra.mxu0 0.0
    %2235 = vmatpush.msra.mxu0 0.0
    %2236 = vmatpush.msra.mxu0 0.0
    %2237 = vmatpush.msra.mxu0 0.0
    %2238 = vmatpush.msra.mxu0 0.0
    %2239 = vmatpush.msra.mxu0 0.0
    %2240 = vmatpush.msra.mxu0 0.0
    %2241 = vmatpush.msra.mxu0 0.0
    %v2242 = vand.u32 %v2196, 4294901760
    %v2243 = vsub.f32 %v2196, %v2242
    %v2244 = vand.u32 %v2243, 4294901760
    %v2245 = vsub.f32 %v2243, %v2244
    %v2246 = vand.u32 %v2245, 4294901760
    %2247 = vmatpush.msra.mxu0 %v2246
    %v2248 = vand.u32 %v2195, 4294901760
    %v2249 = vsub.f32 %v2195, %v2248
    %v2250 = vand.u32 %v2249, 4294901760
    %v2251 = vsub.f32 %v2249, %v2250
    %v2252 = vand.u32 %v2251, 4294901760
    %2253 = vmatpush.msra.mxu0 %v2252
    %v2254 = vand.u32 %v2194, 4294901760
    %v2255 = vsub.f32 %v2194, %v2254
    %v2256 = vand.u32 %v2255, 4294901760
    %v2257 = vsub.f32 %v2255, %v2256
    %v2258 = vand.u32 %v2257, 4294901760
    %2259 = vmatpush.msra.mxu0 %v2258
    %v2260 = vand.u32 %v2193, 4294901760
    %v2261 = vsub.f32 %v2193, %v2260
    %v2262 = vand.u32 %v2261, 4294901760
    %v2263 = vsub.f32 %v2261, %v2262
    %v2264 = vand.u32 %v2263, 4294901760
    %2265 = vmatpush.msra.mxu0 %v2264
    %v2266 = vand.u32 %v2192, 4294901760
    %v2267 = vsub.f32 %v2192, %v2266
    %v2268 = vand.u32 %v2267, 4294901760
    %v2269 = vsub.f32 %v2267, %v2268
    %v2270 = vand.u32 %v2269, 4294901760
    %2271 = vmatpush.msra.mxu0 %v2270
    %v2272 = vand.u32 %v2199, 4294901760
    %2273 = vmatmul.f32.gmra.mxu0 %v2272
    %v2274 = vpop.f32.mrf.mxu0
    %v2275 = vadd.f32 %v2229, %v2274
    %2276 = vdwg.mxu0
    %2277 = vmatpush.msra.mxu0 0.0
    %2278 = vmatpush.msra.mxu0 0.0
    %2279 = vmatpush.msra.mxu0 0.0
    %2280 = vmatpush.msra.mxu0 0.0
    %2281 = vmatpush.msra.mxu0 0.0
    %2282 = vmatpush.msra.mxu0 0.0
    %2283 = vmatpush.msra.mxu0 0.0
    %2284 = vmatpush.msra.mxu0 0.0
    %2285 = vmatpush.msra.mxu0 0.0
    %2286 = vmatpush.msra.mxu0 0.0
    %2287 = vmatpush.msra.mxu0 0.0
    %v2288 = vand.u32 %v2196, 4294901760
    %v2289 = vsub.f32 %v2196, %v2288
    %2290 = vmatpush.msra.mxu0 %v2289
    %v2291 = vand.u32 %v2195, 4294901760
    %v2292 = vsub.f32 %v2195, %v2291
    %2293 = vmatpush.msra.mxu0 %v2292
    %v2294 = vand.u32 %v2194, 4294901760
    %v2295 = vsub.f32 %v2194, %v2294
    %2296 = vmatpush.msra.mxu0 %v2295
    %v2297 = vand.u32 %v2193, 4294901760
    %v2298 = vsub.f32 %v2193, %v2297
    %2299 = vmatpush.msra.mxu0 %v2298
    %v2300 = vand.u32 %v2192, 4294901760
    %v2301 = vsub.f32 %v2192, %v2300
    %2302 = vmatpush.msra.mxu0 %v2301
    %v2303 = vand.u32 %v2199, 4294901760
    %v2304 = vsub.f32 %v2199, %v2303
    %2305 = vmatmul.f32.gmra.mxu0 %v2304
    %v2306 = vpop.f32.mrf.mxu0
    %v2307 = vadd.f32 %v2275, %v2306
    %2308 = vdwg.mxu0
    %2309 = vmatpush.msra.mxu0 0.0
    %2310 = vmatpush.msra.mxu0 0.0
    %2311 = vmatpush.msra.mxu0 0.0
    %2312 = vmatpush.msra.mxu0 0.0
    %2313 = vmatpush.msra.mxu0 0.0
    %2314 = vmatpush.msra.mxu0 0.0
    %2315 = vmatpush.msra.mxu0 0.0
    %2316 = vmatpush.msra.mxu0 0.0
    %2317 = vmatpush.msra.mxu0 0.0
    %2318 = vmatpush.msra.mxu0 0.0
    %2319 = vmatpush.msra.mxu0 0.0
    %v2320 = vand.u32 %v2196, 4294901760
    %2321 = vmatpush.msra.mxu0 %v2320
    %v2322 = vand.u32 %v2195, 4294901760
    %2323 = vmatpush.msra.mxu0 %v2322
    %v2324 = vand.u32 %v2194, 4294901760
    %2325 = vmatpush.msra.mxu0 %v2324
    %v2326 = vand.u32 %v2193, 4294901760
    %2327 = vmatpush.msra.mxu0 %v2326
    %v2328 = vand.u32 %v2192, 4294901760
    %2329 = vmatpush.msra.mxu0 %v2328
    %v2330 = vand.u32 %v2199, 4294901760
    %v2331 = vsub.f32 %v2199, %v2330
    %v2332 = vand.u32 %v2331, 4294901760
    %2333 = vmatmul.f32.gmra.mxu0 %v2332
    %v2334 = vpop.f32.mrf.mxu0
    %v2335 = vadd.f32 %v2307, %v2334
    %2336 = vdwg.mxu0
    %2337 = vmatpush.msra.mxu0 0.0
    %2338 = vmatpush.msra.mxu0 0.0
    %2339 = vmatpush.msra.mxu0 0.0
    %2340 = vmatpush.msra.mxu0 0.0
    %2341 = vmatpush.msra.mxu0 0.0
    %2342 = vmatpush.msra.mxu0 0.0
    %2343 = vmatpush.msra.mxu0 0.0
    %2344 = vmatpush.msra.mxu0 0.0
    %2345 = vmatpush.msra.mxu0 0.0
    %2346 = vmatpush.msra.mxu0 0.0
    %2347 = vmatpush.msra.mxu0 0.0
    %v2348 = vand.u32 %v2196, 4294901760
    %v2349 = vsub.f32 %v2196, %v2348
    %v2350 = vand.u32 %v2349, 4294901760
    %2351 = vmatpush.msra.mxu0 %v2350
    %v2352 = vand.u32 %v2195, 4294901760
    %v2353 = vsub.f32 %v2195, %v2352
    %v2354 = vand.u32 %v2353, 4294901760
    %2355 = vmatpush.msra.mxu0 %v2354
    %v2356 = vand.u32 %v2194, 4294901760
    %v2357 = vsub.f32 %v2194, %v2356
    %v2358 = vand.u32 %v2357, 4294901760
    %2359 = vmatpush.msra.mxu0 %v2358
    %v2360 = vand.u32 %v2193, 4294901760
    %v2361 = vsub.f32 %v2193, %v2360
    %v2362 = vand.u32 %v2361, 4294901760
    %2363 = vmatpush.msra.mxu0 %v2362
    %v2364 = vand.u32 %v2192, 4294901760
    %v2365 = vsub.f32 %v2192, %v2364
    %v2366 = vand.u32 %v2365, 4294901760
    %2367 = vmatpush.msra.mxu0 %v2366
    %v2368 = vand.u32 %v2199, 4294901760
    %2369 = vmatmul.f32.gmra.mxu0 %v2368
    %v2370 = vpop.f32.mrf.mxu0
    %v2371 = vadd.f32 %v2335, %v2370
    %2372 = vdwg.mxu0
    %2373 = vmatpush.msra.mxu0 0.0
    %2374 = vmatpush.msra.mxu0 0.0
    %2375 = vmatpush.msra.mxu0 0.0
    %2376 = vmatpush.msra.mxu0 0.0
    %2377 = vmatpush.msra.mxu0 0.0
    %2378 = vmatpush.msra.mxu0 0.0
    %2379 = vmatpush.msra.mxu0 0.0
    %2380 = vmatpush.msra.mxu0 0.0
    %2381 = vmatpush.msra.mxu0 0.0
    %2382 = vmatpush.msra.mxu0 0.0
    %2383 = vmatpush.msra.mxu0 0.0
    %v2384 = vand.u32 %v2196, 4294901760
    %2385 = vmatpush.msra.mxu0 %v2384
    %v2386 = vand.u32 %v2195, 4294901760
    %2387 = vmatpush.msra.mxu0 %v2386
    %v2388 = vand.u32 %v2194, 4294901760
    %2389 = vmatpush.msra.mxu0 %v2388
    %v2390 = vand.u32 %v2193, 4294901760
    %2391 = vmatpush.msra.mxu0 %v2390
    %v2392 = vand.u32 %v2192, 4294901760
    %2393 = vmatpush.msra.mxu0 %v2392
    %v2394 = vand.u32 %v2199, 4294901760
    %2395 = vmatmul.f32.gmra.mxu0 %v2394
    %v2396 = vpop.f32.mrf.mxu0
    %v2397 = vadd.f32 %v2371, %v2396
    %2398 = vdwg.mxu0
    %v2400 = vsel %vm2197, %v2181, 0
    %2402 = vmatpush.msra.mxu0 0.0
    %2403 = vmatpush.msra.mxu0 0.0
    %2404 = vmatpush.msra.mxu0 0.0
    %2405 = vmatpush.msra.mxu0 0.0
    %2406 = vmatpush.msra.mxu0 0.0
    %2407 = vmatpush.msra.mxu0 0.0
    %2408 = vmatpush.msra.mxu0 0.0
    %2409 = vmatpush.msra.mxu0 0.0
    %2410 = vmatpush.msra.mxu0 0.0
    %2411 = vmatpush.msra.mxu0 0.0
    %2412 = vmatpush.msra.mxu0 0.0
    %v2413 = vand.u32 %v2190, 4294901760
    %2414 = vmatpush.msra.mxu0 %v2413
    %v2415 = vand.u32 %v2189, 4294901760
    %2416 = vmatpush.msra.mxu0 %v2415
    %v2417 = vand.u32 %v2188, 4294901760
    %2418 = vmatpush.msra.mxu0 %v2417
    %v2419 = vand.u32 %v2187, 4294901760
    %2420 = vmatpush.msra.mxu0 %v2419
    %v2421 = vand.u32 %v2186, 4294901760
    %2422 = vmatpush.msra.mxu0 %v2421
    %v2423 = vand.u32 %v2400, 4294901760
    %v2424 = vsub.f32 %v2400, %v2423
    %v2425 = vand.u32 %v2424, 4294901760
    %v2426 = vsub.f32 %v2424, %v2425
    %v2427 = vand.u32 %v2426, 4294901760
    %2428 = vmatmul.f32.gmra.mxu0 %v2427
    %v2429 = vpop.f32.mrf.mxu0
    %v2430 = vadd.f32 %v2397, %v2429
    %2431 = vdwg.mxu0
    %2432 = vmatpush.msra.mxu0 0.0
    %2433 = vmatpush.msra.mxu0 0.0
    %2434 = vmatpush.msra.mxu0 0.0
    %2435 = vmatpush.msra.mxu0 0.0
    %2436 = vmatpush.msra.mxu0 0.0
    %2437 = vmatpush.msra.mxu0 0.0
    %2438 = vmatpush.msra.mxu0 0.0
    %2439 = vmatpush.msra.mxu0 0.0
    %2440 = vmatpush.msra.mxu0 0.0
    %2441 = vmatpush.msra.mxu0 0.0
    %2442 = vmatpush.msra.mxu0 0.0
    %v2443 = vand.u32 %v2190, 4294901760
    %v2444 = vsub.f32 %v2190, %v2443
    %v2445 = vand.u32 %v2444, 4294901760
    %v2446 = vsub.f32 %v2444, %v2445
    %v2447 = vand.u32 %v2446, 4294901760
    %2448 = vmatpush.msra.mxu0 %v2447
    %v2449 = vand.u32 %v2189, 4294901760
    %v2450 = vsub.f32 %v2189, %v2449
    %v2451 = vand.u32 %v2450, 4294901760
    %v2452 = vsub.f32 %v2450, %v2451
    %v2453 = vand.u32 %v2452, 4294901760
    %2454 = vmatpush.msra.mxu0 %v2453
    %v2455 = vand.u32 %v2188, 4294901760
    %v2456 = vsub.f32 %v2188, %v2455
    %v2457 = vand.u32 %v2456, 4294901760
    %v2458 = vsub.f32 %v2456, %v2457
    %v2459 = vand.u32 %v2458, 4294901760
    %2460 = vmatpush.msra.mxu0 %v2459
    %v2461 = vand.u32 %v2187, 4294901760
    %v2462 = vsub.f32 %v2187, %v2461
    %v2463 = vand.u32 %v2462, 4294901760
    %v2464 = vsub.f32 %v2462, %v2463
    %v2465 = vand.u32 %v2464, 4294901760
    %2466 = vmatpush.msra.mxu0 %v2465
    %v2467 = vand.u32 %v2186, 4294901760
    %v2468 = vsub.f32 %v2186, %v2467
    %v2469 = vand.u32 %v2468, 4294901760
    %v2470 = vsub.f32 %v2468, %v2469
    %v2471 = vand.u32 %v2470, 4294901760
    %2472 = vmatpush.msra.mxu0 %v2471
    %v2473 = vand.u32 %v2400, 4294901760
    %2474 = vmatmul.f32.gmra.mxu0 %v2473
    %v2475 = vpop.f32.mrf.mxu0
    %v2476 = vadd.f32 %v2430, %v2475
    %2477 = vdwg.mxu0
    %2478 = vmatpush.msra.mxu0 0.0
    %2479 = vmatpush.msra.mxu0 0.0
    %2480 = vmatpush.msra.mxu0 0.0
    %2481 = vmatpush.msra.mxu0 0.0
    %2482 = vmatpush.msra.mxu0 0.0
    %2483 = vmatpush.msra.mxu0 0.0
    %2484 = vmatpush.msra.mxu0 0.0
    %2485 = vmatpush.msra.mxu0 0.0
    %2486 = vmatpush.msra.mxu0 0.0
    %2487 = vmatpush.msra.mxu0 0.0
    %2488 = vmatpush.msra.mxu0 0.0
    %v2489 = vand.u32 %v2190, 4294901760
    %v2490 = vsub.f32 %v2190, %v2489
    %2491 = vmatpush.msra.mxu0 %v2490
    %v2492 = vand.u32 %v2189, 4294901760
    %v2493 = vsub.f32 %v2189, %v2492
    %2494 = vmatpush.msra.mxu0 %v2493
    %v2495 = vand.u32 %v2188, 4294901760
    %v2496 = vsub.f32 %v2188, %v2495
    %2497 = vmatpush.msra.mxu0 %v2496
    %v2498 = vand.u32 %v2187, 4294901760
    %v2499 = vsub.f32 %v2187, %v2498
    %2500 = vmatpush.msra.mxu0 %v2499
    %v2501 = vand.u32 %v2186, 4294901760
    %v2502 = vsub.f32 %v2186, %v2501
    %2503 = vmatpush.msra.mxu0 %v2502
    %v2504 = vand.u32 %v2400, 4294901760
    %v2505 = vsub.f32 %v2400, %v2504
    %2506 = vmatmul.f32.gmra.mxu0 %v2505
    %v2507 = vpop.f32.mrf.mxu0
    %v2508 = vadd.f32 %v2476, %v2507
    %2509 = vdwg.mxu0
    %2510 = vmatpush.msra.mxu0 0.0
    %2511 = vmatpush.msra.mxu0 0.0
    %2512 = vmatpush.msra.mxu0 0.0
    %2513 = vmatpush.msra.mxu0 0.0
    %2514 = vmatpush.msra.mxu0 0.0
    %2515 = vmatpush.msra.mxu0 0.0
    %2516 = vmatpush.msra.mxu0 0.0
    %2517 = vmatpush.msra.mxu0 0.0
    %2518 = vmatpush.msra.mxu0 0.0
    %2519 = vmatpush.msra.mxu0 0.0
    %2520 = vmatpush.msra.mxu0 0.0
    %v2521 = vand.u32 %v2190, 4294901760
    %2522 = vmatpush.msra.mxu0 %v2521
    %v2523 = vand.u32 %v2189, 4294901760
    %2524 = vmatpush.msra.mxu0 %v2523
    %v2525 = vand.u32 %v2188, 4294901760
    %2526 = vmatpush.msra.mxu0 %v2525
    %v2527 = vand.u32 %v2187, 4294901760
    %2528 = vmatpush.msra.mxu0 %v2527
    %v2529 = vand.u32 %v2186, 4294901760
    %2530 = vmatpush.msra.mxu0 %v2529
    %v2531 = vand.u32 %v2400, 4294901760
    %v2532 = vsub.f32 %v2400, %v2531
    %v2533 = vand.u32 %v2532, 4294901760
    %2534 = vmatmul.f32.gmra.mxu0 %v2533
    %v2535 = vpop.f32.mrf.mxu0
    %v2536 = vadd.f32 %v2508, %v2535
    %2537 = vdwg.mxu0
    %2538 = vmatpush.msra.mxu0 0.0
    %2539 = vmatpush.msra.mxu0 0.0
    %2540 = vmatpush.msra.mxu0 0.0
    %2541 = vmatpush.msra.mxu0 0.0
    %2542 = vmatpush.msra.mxu0 0.0
    %2543 = vmatpush.msra.mxu0 0.0
    %2544 = vmatpush.msra.mxu0 0.0
    %2545 = vmatpush.msra.mxu0 0.0
    %2546 = vmatpush.msra.mxu0 0.0
    %2547 = vmatpush.msra.mxu0 0.0
    %2548 = vmatpush.msra.mxu0 0.0
    %v2549 = vand.u32 %v2190, 4294901760
    %v2550 = vsub.f32 %v2190, %v2549
    %v2551 = vand.u32 %v2550, 4294901760
    %2552 = vmatpush.msra.mxu0 %v2551
    %v2553 = vand.u32 %v2189, 4294901760
    %v2554 = vsub.f32 %v2189, %v2553
    %v2555 = vand.u32 %v2554, 4294901760
    %2556 = vmatpush.msra.mxu0 %v2555
    %v2557 = vand.u32 %v2188, 4294901760
    %v2558 = vsub.f32 %v2188, %v2557
    %v2559 = vand.u32 %v2558, 4294901760
    %2560 = vmatpush.msra.mxu0 %v2559
    %v2561 = vand.u32 %v2187, 4294901760
    %v2562 = vsub.f32 %v2187, %v2561
    %v2563 = vand.u32 %v2562, 4294901760
    %2564 = vmatpush.msra.mxu0 %v2563
    %v2565 = vand.u32 %v2186, 4294901760
    %v2566 = vsub.f32 %v2186, %v2565
    %v2567 = vand.u32 %v2566, 4294901760
    %2568 = vmatpush.msra.mxu0 %v2567
    %v2569 = vand.u32 %v2400, 4294901760
    %2570 = vmatmul.f32.gmra.mxu0 %v2569
    %v2571 = vpop.f32.mrf.mxu0
    %v2572 = vadd.f32 %v2536, %v2571
    %2573 = vdwg.mxu0
    %2574 = vmatpush.msra.mxu0 0.0
    %2575 = vmatpush.msra.mxu0 0.0
    %2576 = vmatpush.msra.mxu0 0.0
    %2577 = vmatpush.msra.mxu0 0.0
    %2578 = vmatpush.msra.mxu0 0.0
    %2579 = vmatpush.msra.mxu0 0.0
    %2580 = vmatpush.msra.mxu0 0.0
    %2581 = vmatpush.msra.mxu0 0.0
    %2582 = vmatpush.msra.mxu0 0.0
    %2583 = vmatpush.msra.mxu0 0.0
    %2584 = vmatpush.msra.mxu0 0.0
    %v2585 = vand.u32 %v2190, 4294901760
    %2586 = vmatpush.msra.mxu0 %v2585
    %v2587 = vand.u32 %v2189, 4294901760
    %2588 = vmatpush.msra.mxu0 %v2587
    %v2589 = vand.u32 %v2188, 4294901760
    %2590 = vmatpush.msra.mxu0 %v2589
    %v2591 = vand.u32 %v2187, 4294901760
    %2592 = vmatpush.msra.mxu0 %v2591
    %v2593 = vand.u32 %v2186, 4294901760
    %2594 = vmatpush.msra.mxu0 %v2593
    %v2595 = vand.u32 %v2400, 4294901760
    %2596 = vmatmul.f32.gmra.mxu0 %v2595
    %v2597 = vpop.f32.mrf.mxu0
    %v2598 = vadd.f32 %v2572, %v2597
    %2599 = vdwg.mxu0
    %s2600 = scalar_lea.vmem %s6, 80
    %v2601 = vld [vmem:[%s2600] sm:$0xff]
    %v2602 = vld [vmem:[%s2600 + $0x8] sm:$0xff]
    %v2603 = vld [vmem:[%s2600 + $0x10] sm:$0xff]
    %v2604 = vld [vmem:[%s2600 + $0x18] sm:$0xff]
    %v2605 = vld [vmem:[%s2600 + $0x20] sm:$0xff]
    %v2607 = vsel %vm2197, %v2183, 0
    %2609 = vmatpush.msra.mxu0 0.0
    %2610 = vmatpush.msra.mxu0 0.0
    %2611 = vmatpush.msra.mxu0 0.0
    %2612 = vmatpush.msra.mxu0 0.0
    %2613 = vmatpush.msra.mxu0 0.0
    %2614 = vmatpush.msra.mxu0 0.0
    %2615 = vmatpush.msra.mxu0 0.0
    %2616 = vmatpush.msra.mxu0 0.0
    %2617 = vmatpush.msra.mxu0 0.0
    %2618 = vmatpush.msra.mxu0 0.0
    %2619 = vmatpush.msra.mxu0 0.0
    %v2620 = vand.u32 %v2605, 4294901760
    %2621 = vmatpush.msra.mxu0 %v2620
    %v2622 = vand.u32 %v2604, 4294901760
    %2623 = vmatpush.msra.mxu0 %v2622
    %v2624 = vand.u32 %v2603, 4294901760
    %2625 = vmatpush.msra.mxu0 %v2624
    %v2626 = vand.u32 %v2602, 4294901760
    %2627 = vmatpush.msra.mxu0 %v2626
    %v2628 = vand.u32 %v2601, 4294901760
    %2629 = vmatpush.msra.mxu0 %v2628
    %v2630 = vand.u32 %v2607, 4294901760
    %v2631 = vsub.f32 %v2607, %v2630
    %v2632 = vand.u32 %v2631, 4294901760
    %v2633 = vsub.f32 %v2631, %v2632
    %v2634 = vand.u32 %v2633, 4294901760
    %2635 = vmatmul.f32.gmra.mxu0 %v2634
    %v2636 = vpop.f32.mrf.mxu0
    %v2637 = vadd.f32 0.0, %v2636
    %2638 = vdwg.mxu0
    %2639 = vmatpush.msra.mxu0 0.0
    %2640 = vmatpush.msra.mxu0 0.0
    %2641 = vmatpush.msra.mxu0 0.0
    %2642 = vmatpush.msra.mxu0 0.0
    %2643 = vmatpush.msra.mxu0 0.0
    %2644 = vmatpush.msra.mxu0 0.0
    %2645 = vmatpush.msra.mxu0 0.0
    %2646 = vmatpush.msra.mxu0 0.0
    %2647 = vmatpush.msra.mxu0 0.0
    %2648 = vmatpush.msra.mxu0 0.0
    %2649 = vmatpush.msra.mxu0 0.0
    %v2650 = vand.u32 %v2605, 4294901760
    %v2651 = vsub.f32 %v2605, %v2650
    %v2652 = vand.u32 %v2651, 4294901760
    %v2653 = vsub.f32 %v2651, %v2652
    %v2654 = vand.u32 %v2653, 4294901760
    %2655 = vmatpush.msra.mxu0 %v2654
    %v2656 = vand.u32 %v2604, 4294901760
    %v2657 = vsub.f32 %v2604, %v2656
    %v2658 = vand.u32 %v2657, 4294901760
    %v2659 = vsub.f32 %v2657, %v2658
    %v2660 = vand.u32 %v2659, 4294901760
    %2661 = vmatpush.msra.mxu0 %v2660
    %v2662 = vand.u32 %v2603, 4294901760
    %v2663 = vsub.f32 %v2603, %v2662
    %v2664 = vand.u32 %v2663, 4294901760
    %v2665 = vsub.f32 %v2663, %v2664
    %v2666 = vand.u32 %v2665, 4294901760
    %2667 = vmatpush.msra.mxu0 %v2666
    %v2668 = vand.u32 %v2602, 4294901760
    %v2669 = vsub.f32 %v2602, %v2668
    %v2670 = vand.u32 %v2669, 4294901760
    %v2671 = vsub.f32 %v2669, %v2670
    %v2672 = vand.u32 %v2671, 4294901760
    %2673 = vmatpush.msra.mxu0 %v2672
    %v2674 = vand.u32 %v2601, 4294901760
    %v2675 = vsub.f32 %v2601, %v2674
    %v2676 = vand.u32 %v2675, 4294901760
    %v2677 = vsub.f32 %v2675, %v2676
    %v2678 = vand.u32 %v2677, 4294901760
    %2679 = vmatpush.msra.mxu0 %v2678
    %v2680 = vand.u32 %v2607, 4294901760
    %2681 = vmatmul.f32.gmra.mxu0 %v2680
    %v2682 = vpop.f32.mrf.mxu0
    %v2683 = vadd.f32 %v2637, %v2682
    %2684 = vdwg.mxu0
    %2685 = vmatpush.msra.mxu0 0.0
    %2686 = vmatpush.msra.mxu0 0.0
    %2687 = vmatpush.msra.mxu0 0.0
    %2688 = vmatpush.msra.mxu0 0.0
    %2689 = vmatpush.msra.mxu0 0.0
    %2690 = vmatpush.msra.mxu0 0.0
    %2691 = vmatpush.msra.mxu0 0.0
    %2692 = vmatpush.msra.mxu0 0.0
    %2693 = vmatpush.msra.mxu0 0.0
    %2694 = vmatpush.msra.mxu0 0.0
    %2695 = vmatpush.msra.mxu0 0.0
    %v2696 = vand.u32 %v2605, 4294901760
    %v2697 = vsub.f32 %v2605, %v2696
    %2698 = vmatpush.msra.mxu0 %v2697
    %v2699 = vand.u32 %v2604, 4294901760
    %v2700 = vsub.f32 %v2604, %v2699
    %2701 = vmatpush.msra.mxu0 %v2700
    %v2702 = vand.u32 %v2603, 4294901760
    %v2703 = vsub.f32 %v2603, %v2702
    %2704 = vmatpush.msra.mxu0 %v2703
    %v2705 = vand.u32 %v2602, 4294901760
    %v2706 = vsub.f32 %v2602, %v2705
    %2707 = vmatpush.msra.mxu0 %v2706
    %v2708 = vand.u32 %v2601, 4294901760
    %v2709 = vsub.f32 %v2601, %v2708
    %2710 = vmatpush.msra.mxu0 %v2709
    %v2711 = vand.u32 %v2607, 4294901760
    %v2712 = vsub.f32 %v2607, %v2711
    %2713 = vmatmul.f32.gmra.mxu0 %v2712
    %v2714 = vpop.f32.mrf.mxu0
    %v2715 = vadd.f32 %v2683, %v2714
    %2716 = vdwg.mxu0
    %2717 = vmatpush.msra.mxu0 0.0
    %2718 = vmatpush.msra.mxu0 0.0
    %2719 = vmatpush.msra.mxu0 0.0
    %2720 = vmatpush.msra.mxu0 0.0
    %2721 = vmatpush.msra.mxu0 0.0
    %2722 = vmatpush.msra.mxu0 0.0
    %2723 = vmatpush.msra.mxu0 0.0
    %2724 = vmatpush.msra.mxu0 0.0
    %2725 = vmatpush.msra.mxu0 0.0
    %2726 = vmatpush.msra.mxu0 0.0
    %2727 = vmatpush.msra.mxu0 0.0
    %v2728 = vand.u32 %v2605, 4294901760
    %2729 = vmatpush.msra.mxu0 %v2728
    %v2730 = vand.u32 %v2604, 4294901760
    %2731 = vmatpush.msra.mxu0 %v2730
    %v2732 = vand.u32 %v2603, 4294901760
    %2733 = vmatpush.msra.mxu0 %v2732
    %v2734 = vand.u32 %v2602, 4294901760
    %2735 = vmatpush.msra.mxu0 %v2734
    %v2736 = vand.u32 %v2601, 4294901760
    %2737 = vmatpush.msra.mxu0 %v2736
    %v2738 = vand.u32 %v2607, 4294901760
    %v2739 = vsub.f32 %v2607, %v2738
    %v2740 = vand.u32 %v2739, 4294901760
    %2741 = vmatmul.f32.gmra.mxu0 %v2740
    %v2742 = vpop.f32.mrf.mxu0
    %v2743 = vadd.f32 %v2715, %v2742
    %2744 = vdwg.mxu0
    %2745 = vmatpush.msra.mxu0 0.0
    %2746 = vmatpush.msra.mxu0 0.0
    %2747 = vmatpush.msra.mxu0 0.0
    %2748 = vmatpush.msra.mxu0 0.0
    %2749 = vmatpush.msra.mxu0 0.0
    %2750 = vmatpush.msra.mxu0 0.0
    %2751 = vmatpush.msra.mxu0 0.0
    %2752 = vmatpush.msra.mxu0 0.0
    %2753 = vmatpush.msra.mxu0 0.0
    %2754 = vmatpush.msra.mxu0 0.0
    %2755 = vmatpush.msra.mxu0 0.0
    %v2756 = vand.u32 %v2605, 4294901760
    %v2757 = vsub.f32 %v2605, %v2756
    %v2758 = vand.u32 %v2757, 4294901760
    %2759 = vmatpush.msra.mxu0 %v2758
    %v2760 = vand.u32 %v2604, 4294901760
    %v2761 = vsub.f32 %v2604, %v2760
    %v2762 = vand.u32 %v2761, 4294901760
    %2763 = vmatpush.msra.mxu0 %v2762
    %v2764 = vand.u32 %v2603, 4294901760
    %v2765 = vsub.f32 %v2603, %v2764
    %v2766 = vand.u32 %v2765, 4294901760
    %2767 = vmatpush.msra.mxu0 %v2766
    %v2768 = vand.u32 %v2602, 4294901760
    %v2769 = vsub.f32 %v2602, %v2768
    %v2770 = vand.u32 %v2769, 4294901760
    %2771 = vmatpush.msra.mxu0 %v2770
    %v2772 = vand.u32 %v2601, 4294901760
    %v2773 = vsub.f32 %v2601, %v2772
    %v2774 = vand.u32 %v2773, 4294901760
    %2775 = vmatpush.msra.mxu0 %v2774
    %v2776 = vand.u32 %v2607, 4294901760
    %2777 = vmatmul.f32.gmra.mxu0 %v2776
    %v2778 = vpop.f32.mrf.mxu0
    %v2779 = vadd.f32 %v2743, %v2778
    %2780 = vdwg.mxu0
    %2781 = vmatpush.msra.mxu0 0.0
    %2782 = vmatpush.msra.mxu0 0.0
    %2783 = vmatpush.msra.mxu0 0.0
    %2784 = vmatpush.msra.mxu0 0.0
    %2785 = vmatpush.msra.mxu0 0.0
    %2786 = vmatpush.msra.mxu0 0.0
    %2787 = vmatpush.msra.mxu0 0.0
    %2788 = vmatpush.msra.mxu0 0.0
    %2789 = vmatpush.msra.mxu0 0.0
    %2790 = vmatpush.msra.mxu0 0.0
    %2791 = vmatpush.msra.mxu0 0.0
    %v2792 = vand.u32 %v2605, 4294901760
    %2793 = vmatpush.msra.mxu0 %v2792
    %v2794 = vand.u32 %v2604, 4294901760
    %2795 = vmatpush.msra.mxu0 %v2794
    %v2796 = vand.u32 %v2603, 4294901760
    %2797 = vmatpush.msra.mxu0 %v2796
    %v2798 = vand.u32 %v2602, 4294901760
    %2799 = vmatpush.msra.mxu0 %v2798
    %v2800 = vand.u32 %v2601, 4294901760
    %2801 = vmatpush.msra.mxu0 %v2800
    %v2802 = vand.u32 %v2607, 4294901760
    %2803 = vmatmul.f32.gmra.mxu0 %v2802
    %v2804 = vpop.f32.mrf.mxu0
    %v2805 = vadd.f32 %v2779, %v2804
    %2806 = vdwg.mxu0
    %v2807 = vadd.f32 %v2598, %v2805
    %s2808 = scalar_lea.vmem %s6, 120
    %v2809 = vld [vmem:[%s2808] sm:$0xff]
    %v2810 = vld [vmem:[%s2808 + $0x8] sm:$0xff]
    %v2811 = vld [vmem:[%s2808 + $0x10] sm:$0xff]
    %v2812 = vld [vmem:[%s2808 + $0x18] sm:$0xff]
    %v2813 = vld [vmem:[%s2808 + $0x20] sm:$0xff]
    %v2815 = vsel %vm2197, %v2184, 0
    %2817 = vmatpush.msra.mxu0 0.0
    %2818 = vmatpush.msra.mxu0 0.0
    %2819 = vmatpush.msra.mxu0 0.0
    %2820 = vmatpush.msra.mxu0 0.0
    %2821 = vmatpush.msra.mxu0 0.0
    %2822 = vmatpush.msra.mxu0 0.0
    %2823 = vmatpush.msra.mxu0 0.0
    %2824 = vmatpush.msra.mxu0 0.0
    %2825 = vmatpush.msra.mxu0 0.0
    %2826 = vmatpush.msra.mxu0 0.0
    %2827 = vmatpush.msra.mxu0 0.0
    %v2828 = vand.u32 %v2813, 4294901760
    %2829 = vmatpush.msra.mxu0 %v2828
    %v2830 = vand.u32 %v2812, 4294901760
    %2831 = vmatpush.msra.mxu0 %v2830
    %v2832 = vand.u32 %v2811, 4294901760
    %2833 = vmatpush.msra.mxu0 %v2832
    %v2834 = vand.u32 %v2810, 4294901760
    %2835 = vmatpush.msra.mxu0 %v2834
    %v2836 = vand.u32 %v2809, 4294901760
    %2837 = vmatpush.msra.mxu0 %v2836
    %v2838 = vand.u32 %v2815, 4294901760
    %v2839 = vsub.f32 %v2815, %v2838
    %v2840 = vand.u32 %v2839, 4294901760
    %v2841 = vsub.f32 %v2839, %v2840
    %v2842 = vand.u32 %v2841, 4294901760
    %2843 = vmatmul.f32.gmra.mxu0 %v2842
    %v2844 = vpop.f32.mrf.mxu0
    %v2845 = vadd.f32 0.0, %v2844
    %2846 = vdwg.mxu0
    %2847 = vmatpush.msra.mxu0 0.0
    %2848 = vmatpush.msra.mxu0 0.0
    %2849 = vmatpush.msra.mxu0 0.0
    %2850 = vmatpush.msra.mxu0 0.0
    %2851 = vmatpush.msra.mxu0 0.0
    %2852 = vmatpush.msra.mxu0 0.0
    %2853 = vmatpush.msra.mxu0 0.0
    %2854 = vmatpush.msra.mxu0 0.0
    %2855 = vmatpush.msra.mxu0 0.0
    %2856 = vmatpush.msra.mxu0 0.0
    %2857 = vmatpush.msra.mxu0 0.0
    %v2858 = vand.u32 %v2813, 4294901760
    %v2859 = vsub.f32 %v2813, %v2858
    %v2860 = vand.u32 %v2859, 4294901760
    %v2861 = vsub.f32 %v2859, %v2860
    %v2862 = vand.u32 %v2861, 4294901760
    %2863 = vmatpush.msra.mxu0 %v2862
    %v2864 = vand.u32 %v2812, 4294901760
    %v2865 = vsub.f32 %v2812, %v2864
    %v2866 = vand.u32 %v2865, 4294901760
    %v2867 = vsub.f32 %v2865, %v2866
    %v2868 = vand.u32 %v2867, 4294901760
    %2869 = vmatpush.msra.mxu0 %v2868
    %v2870 = vand.u32 %v2811, 4294901760
    %v2871 = vsub.f32 %v2811, %v2870
    %v2872 = vand.u32 %v2871, 4294901760
    %v2873 = vsub.f32 %v2871, %v2872
    %v2874 = vand.u32 %v2873, 4294901760
    %2875 = vmatpush.msra.mxu0 %v2874
    %v2876 = vand.u32 %v2810, 4294901760
    %v2877 = vsub.f32 %v2810, %v2876
    %v2878 = vand.u32 %v2877, 4294901760
    %v2879 = vsub.f32 %v2877, %v2878
    %v2880 = vand.u32 %v2879, 4294901760
    %2881 = vmatpush.msra.mxu0 %v2880
    %v2882 = vand.u32 %v2809, 4294901760
    %v2883 = vsub.f32 %v2809, %v2882
    %v2884 = vand.u32 %v2883, 4294901760
    %v2885 = vsub.f32 %v2883, %v2884
    %v2886 = vand.u32 %v2885, 4294901760
    %2887 = vmatpush.msra.mxu0 %v2886
    %v2888 = vand.u32 %v2815, 4294901760
    %2889 = vmatmul.f32.gmra.mxu0 %v2888
    %v2890 = vpop.f32.mrf.mxu0
    %v2891 = vadd.f32 %v2845, %v2890
    %2892 = vdwg.mxu0
    %2893 = vmatpush.msra.mxu0 0.0
    %2894 = vmatpush.msra.mxu0 0.0
    %2895 = vmatpush.msra.mxu0 0.0
    %2896 = vmatpush.msra.mxu0 0.0
    %2897 = vmatpush.msra.mxu0 0.0
    %2898 = vmatpush.msra.mxu0 0.0
    %2899 = vmatpush.msra.mxu0 0.0
    %2900 = vmatpush.msra.mxu0 0.0
    %2901 = vmatpush.msra.mxu0 0.0
    %2902 = vmatpush.msra.mxu0 0.0
    %2903 = vmatpush.msra.mxu0 0.0
    %v2904 = vand.u32 %v2813, 4294901760
    %v2905 = vsub.f32 %v2813, %v2904
    %2906 = vmatpush.msra.mxu0 %v2905
    %v2907 = vand.u32 %v2812, 4294901760
    %v2908 = vsub.f32 %v2812, %v2907
    %2909 = vmatpush.msra.mxu0 %v2908
    %v2910 = vand.u32 %v2811, 4294901760
    %v2911 = vsub.f32 %v2811, %v2910
    %2912 = vmatpush.msra.mxu0 %v2911
    %v2913 = vand.u32 %v2810, 4294901760
    %v2914 = vsub.f32 %v2810, %v2913
    %2915 = vmatpush.msra.mxu0 %v2914
    %v2916 = vand.u32 %v2809, 4294901760
    %v2917 = vsub.f32 %v2809, %v2916
    %2918 = vmatpush.msra.mxu0 %v2917
    %v2919 = vand.u32 %v2815, 4294901760
    %v2920 = vsub.f32 %v2815, %v2919
    %2921 = vmatmul.f32.gmra.mxu0 %v2920
    %v2922 = vpop.f32.mrf.mxu0
    %v2923 = vadd.f32 %v2891, %v2922
    %2924 = vdwg.mxu0
    %2925 = vmatpush.msra.mxu0 0.0
    %2926 = vmatpush.msra.mxu0 0.0
    %2927 = vmatpush.msra.mxu0 0.0
    %2928 = vmatpush.msra.mxu0 0.0
    %2929 = vmatpush.msra.mxu0 0.0
    %2930 = vmatpush.msra.mxu0 0.0
    %2931 = vmatpush.msra.mxu0 0.0
    %2932 = vmatpush.msra.mxu0 0.0
    %2933 = vmatpush.msra.mxu0 0.0
    %2934 = vmatpush.msra.mxu0 0.0
    %2935 = vmatpush.msra.mxu0 0.0
    %v2936 = vand.u32 %v2813, 4294901760
    %2937 = vmatpush.msra.mxu0 %v2936
    %v2938 = vand.u32 %v2812, 4294901760
    %2939 = vmatpush.msra.mxu0 %v2938
    %v2940 = vand.u32 %v2811, 4294901760
    %2941 = vmatpush.msra.mxu0 %v2940
    %v2942 = vand.u32 %v2810, 4294901760
    %2943 = vmatpush.msra.mxu0 %v2942
    %v2944 = vand.u32 %v2809, 4294901760
    %2945 = vmatpush.msra.mxu0 %v2944
    %v2946 = vand.u32 %v2815, 4294901760
    %v2947 = vsub.f32 %v2815, %v2946
    %v2948 = vand.u32 %v2947, 4294901760
    %2949 = vmatmul.f32.gmra.mxu0 %v2948
    %v2950 = vpop.f32.mrf.mxu0
    %v2951 = vadd.f32 %v2923, %v2950
    %2952 = vdwg.mxu0
    %2953 = vmatpush.msra.mxu0 0.0
    %2954 = vmatpush.msra.mxu0 0.0
    %2955 = vmatpush.msra.mxu0 0.0
    %2956 = vmatpush.msra.mxu0 0.0
    %2957 = vmatpush.msra.mxu0 0.0
    %2958 = vmatpush.msra.mxu0 0.0
    %2959 = vmatpush.msra.mxu0 0.0
    %2960 = vmatpush.msra.mxu0 0.0
    %2961 = vmatpush.msra.mxu0 0.0
    %2962 = vmatpush.msra.mxu0 0.0
    %2963 = vmatpush.msra.mxu0 0.0
    %v2964 = vand.u32 %v2813, 4294901760
    %v2965 = vsub.f32 %v2813, %v2964
    %v2966 = vand.u32 %v2965, 4294901760
    %2967 = vmatpush.msra.mxu0 %v2966
    %v2968 = vand.u32 %v2812, 4294901760
    %v2969 = vsub.f32 %v2812, %v2968
    %v2970 = vand.u32 %v2969, 4294901760
    %2971 = vmatpush.msra.mxu0 %v2970
    %v2972 = vand.u32 %v2811, 4294901760
    %v2973 = vsub.f32 %v2811, %v2972
    %v2974 = vand.u32 %v2973, 4294901760
    %2975 = vmatpush.msra.mxu0 %v2974
    %v2976 = vand.u32 %v2810, 4294901760
    %v2977 = vsub.f32 %v2810, %v2976
    %v2978 = vand.u32 %v2977, 4294901760
    %2979 = vmatpush.msra.mxu0 %v2978
    %v2980 = vand.u32 %v2809, 4294901760
    %v2981 = vsub.f32 %v2809, %v2980
    %v2982 = vand.u32 %v2981, 4294901760
    %2983 = vmatpush.msra.mxu0 %v2982
    %v2984 = vand.u32 %v2815, 4294901760
    %2985 = vmatmul.f32.gmra.mxu0 %v2984
    %v2986 = vpop.f32.mrf.mxu0
    %v2987 = vadd.f32 %v2951, %v2986
    %2988 = vdwg.mxu0
    %2989 = vmatpush.msra.mxu0 0.0
    %2990 = vmatpush.msra.mxu0 0.0
    %2991 = vmatpush.msra.mxu0 0.0
    %2992 = vmatpush.msra.mxu0 0.0
    %2993 = vmatpush.msra.mxu0 0.0
    %2994 = vmatpush.msra.mxu0 0.0
    %2995 = vmatpush.msra.mxu0 0.0
    %2996 = vmatpush.msra.mxu0 0.0
    %2997 = vmatpush.msra.mxu0 0.0
    %2998 = vmatpush.msra.mxu0 0.0
    %2999 = vmatpush.msra.mxu0 0.0
    %v3000 = vand.u32 %v2813, 4294901760
    %3001 = vmatpush.msra.mxu0 %v3000
    %v3002 = vand.u32 %v2812, 4294901760
    %3003 = vmatpush.msra.mxu0 %v3002
    %v3004 = vand.u32 %v2811, 4294901760
    %3005 = vmatpush.msra.mxu0 %v3004
    %v3006 = vand.u32 %v2810, 4294901760
    %3007 = vmatpush.msra.mxu0 %v3006
    %v3008 = vand.u32 %v2809, 4294901760
    %3009 = vmatpush.msra.mxu0 %v3008
    %v3010 = vand.u32 %v2815, 4294901760
    %3011 = vmatmul.f32.gmra.mxu0 %v3010
    %v3012 = vpop.f32.mrf.mxu0
    %v3013 = vadd.f32 %v2987, %v3012
    %3014 = vdwg.mxu0
    %v3015 = vadd.f32 %v2807, %v3013
    %s3016 = scalar_lea.vmem %s6, 160
    %v3017 = vld [vmem:[%s3016] sm:$0xff]
    %v3018 = vld [vmem:[%s3016 + $0x8] sm:$0xff]
    %v3019 = vld [vmem:[%s3016 + $0x10] sm:$0xff]
    %v3020 = vld [vmem:[%s3016 + $0x18] sm:$0xff]
    %v3021 = vld [vmem:[%s3016 + $0x20] sm:$0xff]
    %v3023 = vsel %vm2197, %v2185, 0
    %3025 = vmatpush.msra.mxu0 0.0
    %3026 = vmatpush.msra.mxu0 0.0
    %3027 = vmatpush.msra.mxu0 0.0
    %3028 = vmatpush.msra.mxu0 0.0
    %3029 = vmatpush.msra.mxu0 0.0
    %3030 = vmatpush.msra.mxu0 0.0
    %3031 = vmatpush.msra.mxu0 0.0
    %3032 = vmatpush.msra.mxu0 0.0
    %3033 = vmatpush.msra.mxu0 0.0
    %3034 = vmatpush.msra.mxu0 0.0
    %3035 = vmatpush.msra.mxu0 0.0
    %v3036 = vand.u32 %v3021, 4294901760
    %3037 = vmatpush.msra.mxu0 %v3036
    %v3038 = vand.u32 %v3020, 4294901760
    %3039 = vmatpush.msra.mxu0 %v3038
    %v3040 = vand.u32 %v3019, 4294901760
    %3041 = vmatpush.msra.mxu0 %v3040
    %v3042 = vand.u32 %v3018, 4294901760
    %3043 = vmatpush.msra.mxu0 %v3042
    %v3044 = vand.u32 %v3017, 4294901760
    %3045 = vmatpush.msra.mxu0 %v3044
    %v3046 = vand.u32 %v3023, 4294901760
    %v3047 = vsub.f32 %v3023, %v3046
    %v3048 = vand.u32 %v3047, 4294901760
    %v3049 = vsub.f32 %v3047, %v3048
    %v3050 = vand.u32 %v3049, 4294901760
    %3051 = vmatmul.f32.gmra.mxu0 %v3050
    %v3052 = vpop.f32.mrf.mxu0
    %v3053 = vadd.f32 0.0, %v3052
    %3054 = vdwg.mxu0
    %3055 = vmatpush.msra.mxu0 0.0
    %3056 = vmatpush.msra.mxu0 0.0
    %3057 = vmatpush.msra.mxu0 0.0
    %3058 = vmatpush.msra.mxu0 0.0
    %3059 = vmatpush.msra.mxu0 0.0
    %3060 = vmatpush.msra.mxu0 0.0
    %3061 = vmatpush.msra.mxu0 0.0
    %3062 = vmatpush.msra.mxu0 0.0
    %3063 = vmatpush.msra.mxu0 0.0
    %3064 = vmatpush.msra.mxu0 0.0
    %3065 = vmatpush.msra.mxu0 0.0
    %v3066 = vand.u32 %v3021, 4294901760
    %v3067 = vsub.f32 %v3021, %v3066
    %v3068 = vand.u32 %v3067, 4294901760
    %v3069 = vsub.f32 %v3067, %v3068
    %v3070 = vand.u32 %v3069, 4294901760
    %3071 = vmatpush.msra.mxu0 %v3070
    %v3072 = vand.u32 %v3020, 4294901760
    %v3073 = vsub.f32 %v3020, %v3072
    %v3074 = vand.u32 %v3073, 4294901760
    %v3075 = vsub.f32 %v3073, %v3074
    %v3076 = vand.u32 %v3075, 4294901760
    %3077 = vmatpush.msra.mxu0 %v3076
    %v3078 = vand.u32 %v3019, 4294901760
    %v3079 = vsub.f32 %v3019, %v3078
    %v3080 = vand.u32 %v3079, 4294901760
    %v3081 = vsub.f32 %v3079, %v3080
    %v3082 = vand.u32 %v3081, 4294901760
    %3083 = vmatpush.msra.mxu0 %v3082
    %v3084 = vand.u32 %v3018, 4294901760
    %v3085 = vsub.f32 %v3018, %v3084
    %v3086 = vand.u32 %v3085, 4294901760
    %v3087 = vsub.f32 %v3085, %v3086
    %v3088 = vand.u32 %v3087, 4294901760
    %3089 = vmatpush.msra.mxu0 %v3088
    %v3090 = vand.u32 %v3017, 4294901760
    %v3091 = vsub.f32 %v3017, %v3090
    %v3092 = vand.u32 %v3091, 4294901760
    %v3093 = vsub.f32 %v3091, %v3092
    %v3094 = vand.u32 %v3093, 4294901760
    %3095 = vmatpush.msra.mxu0 %v3094
    %v3096 = vand.u32 %v3023, 4294901760
    %3097 = vmatmul.f32.gmra.mxu0 %v3096
    %v3098 = vpop.f32.mrf.mxu0
    %v3099 = vadd.f32 %v3053, %v3098
    %3100 = vdwg.mxu0
    %3101 = vmatpush.msra.mxu0 0.0
    %3102 = vmatpush.msra.mxu0 0.0
    %3103 = vmatpush.msra.mxu0 0.0
    %3104 = vmatpush.msra.mxu0 0.0
    %3105 = vmatpush.msra.mxu0 0.0
    %3106 = vmatpush.msra.mxu0 0.0
    %3107 = vmatpush.msra.mxu0 0.0
    %3108 = vmatpush.msra.mxu0 0.0
    %3109 = vmatpush.msra.mxu0 0.0
    %3110 = vmatpush.msra.mxu0 0.0
    %3111 = vmatpush.msra.mxu0 0.0
    %v3112 = vand.u32 %v3021, 4294901760
    %v3113 = vsub.f32 %v3021, %v3112
    %3114 = vmatpush.msra.mxu0 %v3113
    %v3115 = vand.u32 %v3020, 4294901760
    %v3116 = vsub.f32 %v3020, %v3115
    %3117 = vmatpush.msra.mxu0 %v3116
    %v3118 = vand.u32 %v3019, 4294901760
    %v3119 = vsub.f32 %v3019, %v3118
    %3120 = vmatpush.msra.mxu0 %v3119
    %v3121 = vand.u32 %v3018, 4294901760
    %v3122 = vsub.f32 %v3018, %v3121
    %3123 = vmatpush.msra.mxu0 %v3122
    %v3124 = vand.u32 %v3017, 4294901760
    %v3125 = vsub.f32 %v3017, %v3124
    %3126 = vmatpush.msra.mxu0 %v3125
    %v3127 = vand.u32 %v3023, 4294901760
    %v3128 = vsub.f32 %v3023, %v3127
    %3129 = vmatmul.f32.gmra.mxu0 %v3128
    %v3130 = vpop.f32.mrf.mxu0
    %v3131 = vadd.f32 %v3099, %v3130
    %3132 = vdwg.mxu0
    %3133 = vmatpush.msra.mxu0 0.0
    %3134 = vmatpush.msra.mxu0 0.0
    %3135 = vmatpush.msra.mxu0 0.0
    %3136 = vmatpush.msra.mxu0 0.0
    %3137 = vmatpush.msra.mxu0 0.0
    %3138 = vmatpush.msra.mxu0 0.0
    %3139 = vmatpush.msra.mxu0 0.0
    %3140 = vmatpush.msra.mxu0 0.0
    %3141 = vmatpush.msra.mxu0 0.0
    %3142 = vmatpush.msra.mxu0 0.0
    %3143 = vmatpush.msra.mxu0 0.0
    %v3144 = vand.u32 %v3021, 4294901760
    %3145 = vmatpush.msra.mxu0 %v3144
    %v3146 = vand.u32 %v3020, 4294901760
    %3147 = vmatpush.msra.mxu0 %v3146
    %v3148 = vand.u32 %v3019, 4294901760
    %3149 = vmatpush.msra.mxu0 %v3148
    %v3150 = vand.u32 %v3018, 4294901760
    %3151 = vmatpush.msra.mxu0 %v3150
    %v3152 = vand.u32 %v3017, 4294901760
    %3153 = vmatpush.msra.mxu0 %v3152
    %v3154 = vand.u32 %v3023, 4294901760
    %v3155 = vsub.f32 %v3023, %v3154
    %v3156 = vand.u32 %v3155, 4294901760
    %3157 = vmatmul.f32.gmra.mxu0 %v3156
    %v3158 = vpop.f32.mrf.mxu0
    %v3159 = vadd.f32 %v3131, %v3158
    %3160 = vdwg.mxu0
    %3161 = vmatpush.msra.mxu0 0.0
    %3162 = vmatpush.msra.mxu0 0.0
    %3163 = vmatpush.msra.mxu0 0.0
    %3164 = vmatpush.msra.mxu0 0.0
    %3165 = vmatpush.msra.mxu0 0.0
    %3166 = vmatpush.msra.mxu0 0.0
    %3167 = vmatpush.msra.mxu0 0.0
    %3168 = vmatpush.msra.mxu0 0.0
    %3169 = vmatpush.msra.mxu0 0.0
    %3170 = vmatpush.msra.mxu0 0.0
    %3171 = vmatpush.msra.mxu0 0.0
    %v3172 = vand.u32 %v3021, 4294901760
    %v3173 = vsub.f32 %v3021, %v3172
    %v3174 = vand.u32 %v3173, 4294901760
    %3175 = vmatpush.msra.mxu0 %v3174
    %v3176 = vand.u32 %v3020, 4294901760
    %v3177 = vsub.f32 %v3020, %v3176
    %v3178 = vand.u32 %v3177, 4294901760
    %3179 = vmatpush.msra.mxu0 %v3178
    %v3180 = vand.u32 %v3019, 4294901760
    %v3181 = vsub.f32 %v3019, %v3180
    %v3182 = vand.u32 %v3181, 4294901760
    %3183 = vmatpush.msra.mxu0 %v3182
    %v3184 = vand.u32 %v3018, 4294901760
    %v3185 = vsub.f32 %v3018, %v3184
    %v3186 = vand.u32 %v3185, 4294901760
    %3187 = vmatpush.msra.mxu0 %v3186
    %v3188 = vand.u32 %v3017, 4294901760
    %v3189 = vsub.f32 %v3017, %v3188
    %v3190 = vand.u32 %v3189, 4294901760
    %3191 = vmatpush.msra.mxu0 %v3190
    %v3192 = vand.u32 %v3023, 4294901760
    %3193 = vmatmul.f32.gmra.mxu0 %v3192
    %v3194 = vpop.f32.mrf.mxu0
    %v3195 = vadd.f32 %v3159, %v3194
    %3196 = vdwg.mxu0
    %3197 = vmatpush.msra.mxu0 0.0
    %3198 = vmatpush.msra.mxu0 0.0
    %3199 = vmatpush.msra.mxu0 0.0
    %3200 = vmatpush.msra.mxu0 0.0
    %3201 = vmatpush.msra.mxu0 0.0
    %3202 = vmatpush.msra.mxu0 0.0
    %3203 = vmatpush.msra.mxu0 0.0
    %3204 = vmatpush.msra.mxu0 0.0
    %3205 = vmatpush.msra.mxu0 0.0
    %3206 = vmatpush.msra.mxu0 0.0
    %3207 = vmatpush.msra.mxu0 0.0
    %v3208 = vand.u32 %v3021, 4294901760
    %3209 = vmatpush.msra.mxu0 %v3208
    %v3210 = vand.u32 %v3020, 4294901760
    %3211 = vmatpush.msra.mxu0 %v3210
    %v3212 = vand.u32 %v3019, 4294901760
    %3213 = vmatpush.msra.mxu0 %v3212
    %v3214 = vand.u32 %v3018, 4294901760
    %3215 = vmatpush.msra.mxu0 %v3214
    %v3216 = vand.u32 %v3017, 4294901760
    %3217 = vmatpush.msra.mxu0 %v3216
    %v3218 = vand.u32 %v3023, 4294901760
    %3219 = vmatmul.f32.gmra.mxu0 %v3218
    %v3220 = vpop.f32.mrf.mxu0
    %v3221 = vadd.f32 %v3195, %v3220
    %3222 = vdwg.mxu0
    %v3223 = vadd.f32 %v3015, %v3221
    %v3224 = vld [vmem:[%s7] sm:$0x1]
    %v3226 = vperm.slane %v3224, 0
    %v3228 = vadd.f32 %v3223, %v3226
    %vm3229 = vcmask 261120
    %v3230 = vsel %vm3229, %v3228, 0.0
    %3231 = vadd.xlane.f32.xlu0 %v3230
    %v3232 = vpop.xlane.xlu0 %3231
    %v3233 = vrcp.pop 32.0
    %v3234 = vmul.f32 32.0, %v3233
    %v3235 = vsub.f32 1.0, %v3234
    %v3236 = vmul.f32 %v3233, %v3235
    %v3237 = vadd.f32 %v3233, %v3236
    %vm3238 = vweird.f32 %v3233
    %v3239 = vsel %vm3238, %v3233, %v3237
    %v3240 = vmul.f32 %v3232, %v3239
    %v3241 = vsub.f32 %v3228, %v3240
    %v3242 = vmul.f32 %v3241, %v3241
    %v3243 = vsel %vm3229, %v3242, 0.0
    %3244 = vadd.xlane.f32.xlu0 %v3243
    %v3245 = vpop.xlane.xlu0 %3244
    %v3246 = vmul.f32 %v3245, %v3239
    %v3247 = vadd.f32 %v3246, 1e-05
    %v3248 = vrsqrt.pop %v3247
    %v3249 = vmul.f32 %v3248, %v3247
    %v3250 = vmul.f32 %v3249, %v3248
    %v3251 = vmul.f32 0.5, %v3250
    %v3252 = vsub.f32 1.5, %v3251
    %v3253 = vmul.f32 %v3248, %v3252
    %vm3254 = vweird.f32 %v3247
    %vm3255 = vweird.f32 %v3248
    %vm3256 = vmor %vm3254, %vm3255
    %v3257 = vsel %vm3256, %v3248, %v3253
    %v3258 = vmul.f32 %v3241, %v3257
    %v3259 = vld [vmem:[%s8] sm:$0x1]
    %v3261 = vperm.slane %v3259, 0
    %v3263 = vmul.f32 %v3258, %v3261
    %v3264 = vld [vmem:[%s9] sm:$0x1]
    %v3266 = vperm.slane %v3264, 0
    %v3268 = vadd.f32 %v3263, %v3266
    %v3269 = vtanh.pop %v3268
    %v3270 = vld [vmem:[%s10] sm:$0xff]
    %v3271 = vld [vmem:[%s10 + $0x8] sm:$0xff]
    %v3272 = vld [vmem:[%s10 + $0x10] sm:$0xff]
    %v3273 = vld [vmem:[%s10 + $0x18] sm:$0xff]
    %v3274 = vld [vmem:[%s1] sm:$0xff]
    %v3275 = vld [vmem:[%s11] sm:$0x3f]
    %vm3276 = vcmask 48128
    %v3278 = vsel %vm3276, %v3274, 0
    %vm3280 = vcmask 1045504
    %v3282 = vsel %vm3280, %v3275, 0
    %3284 = vmatpush.msra.mxu0 0.0
    %3285 = vmatpush.msra.mxu0 0.0
    %3286 = vmatpush.msra.mxu0 0.0
    %3287 = vmatpush.msra.mxu0 0.0
    %3288 = vmatpush.msra.mxu0 0.0
    %3289 = vmatpush.msra.mxu0 0.0
    %3290 = vmatpush.msra.mxu0 0.0
    %3291 = vmatpush.msra.mxu0 0.0
    %3292 = vmatpush.msra.mxu0 0.0
    %3293 = vmatpush.msra.mxu0 0.0
    %3294 = vmatpush.msra.mxu0 0.0
    %3295 = vmatpush.msra.mxu0 0.0
    %3296 = vmatpush.msra.mxu0 0.0
    %3297 = vmatpush.msra.mxu0 0.0
    %3298 = vmatpush.msra.mxu0 0.0
    %v3299 = vand.u32 %v3282, 4294901760
    %3300 = vmatpush.msra.mxu0 %v3299
    %v3301 = vand.u32 %v3278, 4294901760
    %v3302 = vsub.f32 %v3278, %v3301
    %v3303 = vand.u32 %v3302, 4294901760
    %v3304 = vsub.f32 %v3302, %v3303
    %v3305 = vand.u32 %v3304, 4294901760
    %3306 = vmatmul.f32.gmra.mxu0 %v3305
    %v3307 = vpop.f32.mrf.mxu0
    %v3308 = vadd.f32 0.0, %v3307
    %3309 = vdwg.mxu0
    %3310 = vmatpush.msra.mxu0 0.0
    %3311 = vmatpush.msra.mxu0 0.0
    %3312 = vmatpush.msra.mxu0 0.0
    %3313 = vmatpush.msra.mxu0 0.0
    %3314 = vmatpush.msra.mxu0 0.0
    %3315 = vmatpush.msra.mxu0 0.0
    %3316 = vmatpush.msra.mxu0 0.0
    %3317 = vmatpush.msra.mxu0 0.0
    %3318 = vmatpush.msra.mxu0 0.0
    %3319 = vmatpush.msra.mxu0 0.0
    %3320 = vmatpush.msra.mxu0 0.0
    %3321 = vmatpush.msra.mxu0 0.0
    %3322 = vmatpush.msra.mxu0 0.0
    %3323 = vmatpush.msra.mxu0 0.0
    %3324 = vmatpush.msra.mxu0 0.0
    %v3325 = vand.u32 %v3282, 4294901760
    %v3326 = vsub.f32 %v3282, %v3325
    %v3327 = vand.u32 %v3326, 4294901760
    %v3328 = vsub.f32 %v3326, %v3327
    %v3329 = vand.u32 %v3328, 4294901760
    %3330 = vmatpush.msra.mxu0 %v3329
    %v3331 = vand.u32 %v3278, 4294901760
    %3332 = vmatmul.f32.gmra.mxu0 %v3331
    %v3333 = vpop.f32.mrf.mxu0
    %v3334 = vadd.f32 %v3308, %v3333
    %3335 = vdwg.mxu0
    %3336 = vmatpush.msra.mxu0 0.0
    %3337 = vmatpush.msra.mxu0 0.0
    %3338 = vmatpush.msra.mxu0 0.0
    %3339 = vmatpush.msra.mxu0 0.0
    %3340 = vmatpush.msra.mxu0 0.0
    %3341 = vmatpush.msra.mxu0 0.0
    %3342 = vmatpush.msra.mxu0 0.0
    %3343 = vmatpush.msra.mxu0 0.0
    %3344 = vmatpush.msra.mxu0 0.0
    %3345 = vmatpush.msra.mxu0 0.0
    %3346 = vmatpush.msra.mxu0 0.0
    %3347 = vmatpush.msra.mxu0 0.0
    %3348 = vmatpush.msra.mxu0 0.0
    %3349 = vmatpush.msra.mxu0 0.0
    %3350 = vmatpush.msra.mxu0 0.0
    %v3351 = vand.u32 %v3282, 4294901760
    %v3352 = vsub.f32 %v3282, %v3351
    %3353 = vmatpush.msra.mxu0 %v3352
    %v3354 = vand.u32 %v3278, 4294901760
    %v3355 = vsub.f32 %v3278, %v3354
    %3356 = vmatmul.f32.gmra.mxu0 %v3355
    %v3357 = vpop.f32.mrf.mxu0
    %v3358 = vadd.f32 %v3334, %v3357
    %3359 = vdwg.mxu0
    %3360 = vmatpush.msra.mxu0 0.0
    %3361 = vmatpush.msra.mxu0 0.0
    %3362 = vmatpush.msra.mxu0 0.0
    %3363 = vmatpush.msra.mxu0 0.0
    %3364 = vmatpush.msra.mxu0 0.0
    %3365 = vmatpush.msra.mxu0 0.0
    %3366 = vmatpush.msra.mxu0 0.0
    %3367 = vmatpush.msra.mxu0 0.0
    %3368 = vmatpush.msra.mxu0 0.0
    %3369 = vmatpush.msra.mxu0 0.0
    %3370 = vmatpush.msra.mxu0 0.0
    %3371 = vmatpush.msra.mxu0 0.0
    %3372 = vmatpush.msra.mxu0 0.0
    %3373 = vmatpush.msra.mxu0 0.0
    %3374 = vmatpush.msra.mxu0 0.0
    %v3375 = vand.u32 %v3282, 4294901760
    %3376 = vmatpush.msra.mxu0 %v3375
    %v3377 = vand.u32 %v3278, 4294901760
    %v3378 = vsub.f32 %v3278, %v3377
    %v3379 = vand.u32 %v3378, 4294901760
    %3380 = vmatmul.f32.gmra.mxu0 %v3379
    %v3381 = vpop.f32.mrf.mxu0
    %v3382 = vadd.f32 %v3358, %v3381
    %3383 = vdwg.mxu0
    %3384 = vmatpush.msra.mxu0 0.0
    %3385 = vmatpush.msra.mxu0 0.0
    %3386 = vmatpush.msra.mxu0 0.0
    %3387 = vmatpush.msra.mxu0 0.0
    %3388 = vmatpush.msra.mxu0 0.0
    %3389 = vmatpush.msra.mxu0 0.0
    %3390 = vmatpush.msra.mxu0 0.0
    %3391 = vmatpush.msra.mxu0 0.0
    %3392 = vmatpush.msra.mxu0 0.0
    %3393 = vmatpush.msra.mxu0 0.0
    %3394 = vmatpush.msra.mxu0 0.0
    %3395 = vmatpush.msra.mxu0 0.0
    %3396 = vmatpush.msra.mxu0 0.0
    %3397 = vmatpush.msra.mxu0 0.0
    %3398 = vmatpush.msra.mxu0 0.0
    %v3399 = vand.u32 %v3282, 4294901760
    %v3400 = vsub.f32 %v3282, %v3399
    %v3401 = vand.u32 %v3400, 4294901760
    %3402 = vmatpush.msra.mxu0 %v3401
    %v3403 = vand.u32 %v3278, 4294901760
    %3404 = vmatmul.f32.gmra.mxu0 %v3403
    %v3405 = vpop.f32.mrf.mxu0
    %v3406 = vadd.f32 %v3382, %v3405
    %3407 = vdwg.mxu0
    %3408 = vmatpush.msra.mxu0 0.0
    %3409 = vmatpush.msra.mxu0 0.0
    %3410 = vmatpush.msra.mxu0 0.0
    %3411 = vmatpush.msra.mxu0 0.0
    %3412 = vmatpush.msra.mxu0 0.0
    %3413 = vmatpush.msra.mxu0 0.0
    %3414 = vmatpush.msra.mxu0 0.0
    %3415 = vmatpush.msra.mxu0 0.0
    %3416 = vmatpush.msra.mxu0 0.0
    %3417 = vmatpush.msra.mxu0 0.0
    %3418 = vmatpush.msra.mxu0 0.0
    %3419 = vmatpush.msra.mxu0 0.0
    %3420 = vmatpush.msra.mxu0 0.0
    %3421 = vmatpush.msra.mxu0 0.0
    %3422 = vmatpush.msra.mxu0 0.0
    %v3423 = vand.u32 %v3282, 4294901760
    %3424 = vmatpush.msra.mxu0 %v3423
    %v3425 = vand.u32 %v3278, 4294901760
    %3426 = vmatmul.f32.gmra.mxu0 %v3425
    %v3427 = vpop.f32.mrf.mxu0
    %v3428 = vadd.f32 %v3406, %v3427
    %3429 = vdwg.mxu0
    %v3431 = vsel %vm3229, %v3269, 0
    %3433 = vmatpush.msra.mxu0 0.0
    %3434 = vmatpush.msra.mxu0 0.0
    %3435 = vmatpush.msra.mxu0 0.0
    %3436 = vmatpush.msra.mxu0 0.0
    %3437 = vmatpush.msra.mxu0 0.0
    %3438 = vmatpush.msra.mxu0 0.0
    %3439 = vmatpush.msra.mxu0 0.0
    %3440 = vmatpush.msra.mxu0 0.0
    %3441 = vmatpush.msra.mxu0 0.0
    %3442 = vmatpush.msra.mxu0 0.0
    %3443 = vmatpush.msra.mxu0 0.0
    %3444 = vmatpush.msra.mxu0 0.0
    %v3445 = vand.u32 %v3273, 4294901760
    %3446 = vmatpush.msra.mxu0 %v3445
    %v3447 = vand.u32 %v3272, 4294901760
    %3448 = vmatpush.msra.mxu0 %v3447
    %v3449 = vand.u32 %v3271, 4294901760
    %3450 = vmatpush.msra.mxu0 %v3449
    %v3451 = vand.u32 %v3270, 4294901760
    %3452 = vmatpush.msra.mxu0 %v3451
    %v3453 = vand.u32 %v3431, 4294901760
    %v3454 = vsub.f32 %v3431, %v3453
    %v3455 = vand.u32 %v3454, 4294901760
    %v3456 = vsub.f32 %v3454, %v3455
    %v3457 = vand.u32 %v3456, 4294901760
    %3458 = vmatmul.f32.gmra.mxu0 %v3457
    %v3459 = vpop.f32.mrf.mxu0
    %v3460 = vadd.f32 %v3428, %v3459
    %3461 = vdwg.mxu0
    %3462 = vmatpush.msra.mxu0 0.0
    %3463 = vmatpush.msra.mxu0 0.0
    %3464 = vmatpush.msra.mxu0 0.0
    %3465 = vmatpush.msra.mxu0 0.0
    %3466 = vmatpush.msra.mxu0 0.0
    %3467 = vmatpush.msra.mxu0 0.0
    %3468 = vmatpush.msra.mxu0 0.0
    %3469 = vmatpush.msra.mxu0 0.0
    %3470 = vmatpush.msra.mxu0 0.0
    %3471 = vmatpush.msra.mxu0 0.0
    %3472 = vmatpush.msra.mxu0 0.0
    %3473 = vmatpush.msra.mxu0 0.0
    %v3474 = vand.u32 %v3273, 4294901760
    %v3475 = vsub.f32 %v3273, %v3474
    %v3476 = vand.u32 %v3475, 4294901760
    %v3477 = vsub.f32 %v3475, %v3476
    %v3478 = vand.u32 %v3477, 4294901760
    %3479 = vmatpush.msra.mxu0 %v3478
    %v3480 = vand.u32 %v3272, 4294901760
    %v3481 = vsub.f32 %v3272, %v3480
    %v3482 = vand.u32 %v3481, 4294901760
    %v3483 = vsub.f32 %v3481, %v3482
    %v3484 = vand.u32 %v3483, 4294901760
    %3485 = vmatpush.msra.mxu0 %v3484
    %v3486 = vand.u32 %v3271, 4294901760
    %v3487 = vsub.f32 %v3271, %v3486
    %v3488 = vand.u32 %v3487, 4294901760
    %v3489 = vsub.f32 %v3487, %v3488
    %v3490 = vand.u32 %v3489, 4294901760
    %3491 = vmatpush.msra.mxu0 %v3490
    %v3492 = vand.u32 %v3270, 4294901760
    %v3493 = vsub.f32 %v3270, %v3492
    %v3494 = vand.u32 %v3493, 4294901760
    %v3495 = vsub.f32 %v3493, %v3494
    %v3496 = vand.u32 %v3495, 4294901760
    %3497 = vmatpush.msra.mxu0 %v3496
    %v3498 = vand.u32 %v3431, 4294901760
    %3499 = vmatmul.f32.gmra.mxu0 %v3498
    %v3500 = vpop.f32.mrf.mxu0
    %v3501 = vadd.f32 %v3460, %v3500
    %3502 = vdwg.mxu0
    %3503 = vmatpush.msra.mxu0 0.0
    %3504 = vmatpush.msra.mxu0 0.0
    %3505 = vmatpush.msra.mxu0 0.0
    %3506 = vmatpush.msra.mxu0 0.0
    %3507 = vmatpush.msra.mxu0 0.0
    %3508 = vmatpush.msra.mxu0 0.0
    %3509 = vmatpush.msra.mxu0 0.0
    %3510 = vmatpush.msra.mxu0 0.0
    %3511 = vmatpush.msra.mxu0 0.0
    %3512 = vmatpush.msra.mxu0 0.0
    %3513 = vmatpush.msra.mxu0 0.0
    %3514 = vmatpush.msra.mxu0 0.0
    %v3515 = vand.u32 %v3273, 4294901760
    %v3516 = vsub.f32 %v3273, %v3515
    %3517 = vmatpush.msra.mxu0 %v3516
    %v3518 = vand.u32 %v3272, 4294901760
    %v3519 = vsub.f32 %v3272, %v3518
    %3520 = vmatpush.msra.mxu0 %v3519
    %v3521 = vand.u32 %v3271, 4294901760
    %v3522 = vsub.f32 %v3271, %v3521
    %3523 = vmatpush.msra.mxu0 %v3522
    %v3524 = vand.u32 %v3270, 4294901760
    %v3525 = vsub.f32 %v3270, %v3524
    %3526 = vmatpush.msra.mxu0 %v3525
    %v3527 = vand.u32 %v3431, 4294901760
    %v3528 = vsub.f32 %v3431, %v3527
    %3529 = vmatmul.f32.gmra.mxu0 %v3528
    %v3530 = vpop.f32.mrf.mxu0
    %v3531 = vadd.f32 %v3501, %v3530
    %3532 = vdwg.mxu0
    %3533 = vmatpush.msra.mxu0 0.0
    %3534 = vmatpush.msra.mxu0 0.0
    %3535 = vmatpush.msra.mxu0 0.0
    %3536 = vmatpush.msra.mxu0 0.0
    %3537 = vmatpush.msra.mxu0 0.0
    %3538 = vmatpush.msra.mxu0 0.0
    %3539 = vmatpush.msra.mxu0 0.0
    %3540 = vmatpush.msra.mxu0 0.0
    %3541 = vmatpush.msra.mxu0 0.0
    %3542 = vmatpush.msra.mxu0 0.0
    %3543 = vmatpush.msra.mxu0 0.0
    %3544 = vmatpush.msra.mxu0 0.0
    %v3545 = vand.u32 %v3273, 4294901760
    %3546 = vmatpush.msra.mxu0 %v3545
    %v3547 = vand.u32 %v3272, 4294901760
    %3548 = vmatpush.msra.mxu0 %v3547
    %v3549 = vand.u32 %v3271, 4294901760
    %3550 = vmatpush.msra.mxu0 %v3549
    %v3551 = vand.u32 %v3270, 4294901760
    %3552 = vmatpush.msra.mxu0 %v3551
    %v3553 = vand.u32 %v3431, 4294901760
    %v3554 = vsub.f32 %v3431, %v3553
    %v3555 = vand.u32 %v3554, 4294901760
    %3556 = vmatmul.f32.gmra.mxu0 %v3555
    %v3557 = vpop.f32.mrf.mxu0
    %v3558 = vadd.f32 %v3531, %v3557
    %3559 = vdwg.mxu0
    %3560 = vmatpush.msra.mxu0 0.0
    %3561 = vmatpush.msra.mxu0 0.0
    %3562 = vmatpush.msra.mxu0 0.0
    %3563 = vmatpush.msra.mxu0 0.0
    %3564 = vmatpush.msra.mxu0 0.0
    %3565 = vmatpush.msra.mxu0 0.0
    %3566 = vmatpush.msra.mxu0 0.0
    %3567 = vmatpush.msra.mxu0 0.0
    %3568 = vmatpush.msra.mxu0 0.0
    %3569 = vmatpush.msra.mxu0 0.0
    %3570 = vmatpush.msra.mxu0 0.0
    %3571 = vmatpush.msra.mxu0 0.0
    %v3572 = vand.u32 %v3273, 4294901760
    %v3573 = vsub.f32 %v3273, %v3572
    %v3574 = vand.u32 %v3573, 4294901760
    %3575 = vmatpush.msra.mxu0 %v3574
    %v3576 = vand.u32 %v3272, 4294901760
    %v3577 = vsub.f32 %v3272, %v3576
    %v3578 = vand.u32 %v3577, 4294901760
    %3579 = vmatpush.msra.mxu0 %v3578
    %v3580 = vand.u32 %v3271, 4294901760
    %v3581 = vsub.f32 %v3271, %v3580
    %v3582 = vand.u32 %v3581, 4294901760
    %3583 = vmatpush.msra.mxu0 %v3582
    %v3584 = vand.u32 %v3270, 4294901760
    %v3585 = vsub.f32 %v3270, %v3584
    %v3586 = vand.u32 %v3585, 4294901760
    %3587 = vmatpush.msra.mxu0 %v3586
    %v3588 = vand.u32 %v3431, 4294901760
    %3589 = vmatmul.f32.gmra.mxu0 %v3588
    %v3590 = vpop.f32.mrf.mxu0
    %v3591 = vadd.f32 %v3558, %v3590
    %3592 = vdwg.mxu0
    %3593 = vmatpush.msra.mxu0 0.0
    %3594 = vmatpush.msra.mxu0 0.0
    %3595 = vmatpush.msra.mxu0 0.0
    %3596 = vmatpush.msra.mxu0 0.0
    %3597 = vmatpush.msra.mxu0 0.0
    %3598 = vmatpush.msra.mxu0 0.0
    %3599 = vmatpush.msra.mxu0 0.0
    %3600 = vmatpush.msra.mxu0 0.0
    %3601 = vmatpush.msra.mxu0 0.0
    %3602 = vmatpush.msra.mxu0 0.0
    %3603 = vmatpush.msra.mxu0 0.0
    %3604 = vmatpush.msra.mxu0 0.0
    %v3605 = vand.u32 %v3273, 4294901760
    %3606 = vmatpush.msra.mxu0 %v3605
    %v3607 = vand.u32 %v3272, 4294901760
    %3608 = vmatpush.msra.mxu0 %v3607
    %v3609 = vand.u32 %v3271, 4294901760
    %3610 = vmatpush.msra.mxu0 %v3609
    %v3611 = vand.u32 %v3270, 4294901760
    %3612 = vmatpush.msra.mxu0 %v3611
    %v3613 = vand.u32 %v3431, 4294901760
    %3614 = vmatmul.f32.gmra.mxu0 %v3613
    %v3615 = vpop.f32.mrf.mxu0
    %v3616 = vadd.f32 %v3591, %v3615
    %3617 = vdwg.mxu0
    %v3618 = vld [vmem:[%s12] sm:$0x1]
    %v3620 = vperm.slane %v3618, 0
    %v3622 = vadd.f32 %v3616, %v3620
    %v3623 = vmax.f32 %v3622, 0.0
    %v3624 = vld [vmem:[%s13] sm:$0xff]
    %v3625 = vld [vmem:[%s13 + $0x8] sm:$0xff]
    %v3626 = vld [vmem:[%s13 + $0x10] sm:$0xff]
    %v3627 = vld [vmem:[%s13 + $0x18] sm:$0xff]
    %v3628 = vld [vmem:[%s14] sm:$0x1]
    %v3630 = vperm.slane %v3628, 0
    %v3633 = vsel %vm3229, %v3623, 0
    %3635 = vmatpush.msra.mxu0 0.0
    %3636 = vmatpush.msra.mxu0 0.0
    %3637 = vmatpush.msra.mxu0 0.0
    %3638 = vmatpush.msra.mxu0 0.0
    %3639 = vmatpush.msra.mxu0 0.0
    %3640 = vmatpush.msra.mxu0 0.0
    %3641 = vmatpush.msra.mxu0 0.0
    %3642 = vmatpush.msra.mxu0 0.0
    %3643 = vmatpush.msra.mxu0 0.0
    %3644 = vmatpush.msra.mxu0 0.0
    %3645 = vmatpush.msra.mxu0 0.0
    %3646 = vmatpush.msra.mxu0 0.0
    %v3647 = vand.u32 %v3627, 4294901760
    %3648 = vmatpush.msra.mxu0 %v3647
    %v3649 = vand.u32 %v3626, 4294901760
    %3650 = vmatpush.msra.mxu0 %v3649
    %v3651 = vand.u32 %v3625, 4294901760
    %3652 = vmatpush.msra.mxu0 %v3651
    %v3653 = vand.u32 %v3624, 4294901760
    %3654 = vmatpush.msra.mxu0 %v3653
    %v3655 = vand.u32 %v3633, 4294901760
    %v3656 = vsub.f32 %v3633, %v3655
    %v3657 = vand.u32 %v3656, 4294901760
    %v3658 = vsub.f32 %v3656, %v3657
    %v3659 = vand.u32 %v3658, 4294901760
    %3660 = vmatmul.f32.gmra.mxu0 %v3659
    %v3661 = vpop.f32.mrf.mxu0
    %v3662 = vadd.f32 %v3630, %v3661
    %3663 = vdwg.mxu0
    %3664 = vmatpush.msra.mxu0 0.0
    %3665 = vmatpush.msra.mxu0 0.0
    %3666 = vmatpush.msra.mxu0 0.0
    %3667 = vmatpush.msra.mxu0 0.0
    %3668 = vmatpush.msra.mxu0 0.0
    %3669 = vmatpush.msra.mxu0 0.0
    %3670 = vmatpush.msra.mxu0 0.0
    %3671 = vmatpush.msra.mxu0 0.0
    %3672 = vmatpush.msra.mxu0 0.0
    %3673 = vmatpush.msra.mxu0 0.0
    %3674 = vmatpush.msra.mxu0 0.0
    %3675 = vmatpush.msra.mxu0 0.0
    %v3676 = vand.u32 %v3627, 4294901760
    %v3677 = vsub.f32 %v3627, %v3676
    %v3678 = vand.u32 %v3677, 4294901760
    %v3679 = vsub.f32 %v3677, %v3678
    %v3680 = vand.u32 %v3679, 4294901760
    %3681 = vmatpush.msra.mxu0 %v3680
    %v3682 = vand.u32 %v3626, 4294901760
    %v3683 = vsub.f32 %v3626, %v3682
    %v3684 = vand.u32 %v3683, 4294901760
    %v3685 = vsub.f32 %v3683, %v3684
    %v3686 = vand.u32 %v3685, 4294901760
    %3687 = vmatpush.msra.mxu0 %v3686
    %v3688 = vand.u32 %v3625, 4294901760
    %v3689 = vsub.f32 %v3625, %v3688
    %v3690 = vand.u32 %v3689, 4294901760
    %v3691 = vsub.f32 %v3689, %v3690
    %v3692 = vand.u32 %v3691, 4294901760
    %3693 = vmatpush.msra.mxu0 %v3692
    %v3694 = vand.u32 %v3624, 4294901760
    %v3695 = vsub.f32 %v3624, %v3694
    %v3696 = vand.u32 %v3695, 4294901760
    %v3697 = vsub.f32 %v3695, %v3696
    %v3698 = vand.u32 %v3697, 4294901760
    %3699 = vmatpush.msra.mxu0 %v3698
    %v3700 = vand.u32 %v3633, 4294901760
    %3701 = vmatmul.f32.gmra.mxu0 %v3700
    %v3702 = vpop.f32.mrf.mxu0
    %v3703 = vadd.f32 %v3662, %v3702
    %3704 = vdwg.mxu0
    %3705 = vmatpush.msra.mxu0 0.0
    %3706 = vmatpush.msra.mxu0 0.0
    %3707 = vmatpush.msra.mxu0 0.0
    %3708 = vmatpush.msra.mxu0 0.0
    %3709 = vmatpush.msra.mxu0 0.0
    %3710 = vmatpush.msra.mxu0 0.0
    %3711 = vmatpush.msra.mxu0 0.0
    %3712 = vmatpush.msra.mxu0 0.0
    %3713 = vmatpush.msra.mxu0 0.0
    %3714 = vmatpush.msra.mxu0 0.0
    %3715 = vmatpush.msra.mxu0 0.0
    %3716 = vmatpush.msra.mxu0 0.0
    %v3717 = vand.u32 %v3627, 4294901760
    %v3718 = vsub.f32 %v3627, %v3717
    %3719 = vmatpush.msra.mxu0 %v3718
    %v3720 = vand.u32 %v3626, 4294901760
    %v3721 = vsub.f32 %v3626, %v3720
    %3722 = vmatpush.msra.mxu0 %v3721
    %v3723 = vand.u32 %v3625, 4294901760
    %v3724 = vsub.f32 %v3625, %v3723
    %3725 = vmatpush.msra.mxu0 %v3724
    %v3726 = vand.u32 %v3624, 4294901760
    %v3727 = vsub.f32 %v3624, %v3726
    %3728 = vmatpush.msra.mxu0 %v3727
    %v3729 = vand.u32 %v3633, 4294901760
    %v3730 = vsub.f32 %v3633, %v3729
    %3731 = vmatmul.f32.gmra.mxu0 %v3730
    %v3732 = vpop.f32.mrf.mxu0
    %v3733 = vadd.f32 %v3703, %v3732
    %3734 = vdwg.mxu0
    %3735 = vmatpush.msra.mxu0 0.0
    %3736 = vmatpush.msra.mxu0 0.0
    %3737 = vmatpush.msra.mxu0 0.0
    %3738 = vmatpush.msra.mxu0 0.0
    %3739 = vmatpush.msra.mxu0 0.0
    %3740 = vmatpush.msra.mxu0 0.0
    %3741 = vmatpush.msra.mxu0 0.0
    %3742 = vmatpush.msra.mxu0 0.0
    %3743 = vmatpush.msra.mxu0 0.0
    %3744 = vmatpush.msra.mxu0 0.0
    %3745 = vmatpush.msra.mxu0 0.0
    %3746 = vmatpush.msra.mxu0 0.0
    %v3747 = vand.u32 %v3627, 4294901760
    %3748 = vmatpush.msra.mxu0 %v3747
    %v3749 = vand.u32 %v3626, 4294901760
    %3750 = vmatpush.msra.mxu0 %v3749
    %v3751 = vand.u32 %v3625, 4294901760
    %3752 = vmatpush.msra.mxu0 %v3751
    %v3753 = vand.u32 %v3624, 4294901760
    %3754 = vmatpush.msra.mxu0 %v3753
    %v3755 = vand.u32 %v3633, 4294901760
    %v3756 = vsub.f32 %v3633, %v3755
    %v3757 = vand.u32 %v3756, 4294901760
    %3758 = vmatmul.f32.gmra.mxu0 %v3757
    %v3759 = vpop.f32.mrf.mxu0
    %v3760 = vadd.f32 %v3733, %v3759
    %3761 = vdwg.mxu0
    %3762 = vmatpush.msra.mxu0 0.0
    %3763 = vmatpush.msra.mxu0 0.0
    %3764 = vmatpush.msra.mxu0 0.0
    %3765 = vmatpush.msra.mxu0 0.0
    %3766 = vmatpush.msra.mxu0 0.0
    %3767 = vmatpush.msra.mxu0 0.0
    %3768 = vmatpush.msra.mxu0 0.0
    %3769 = vmatpush.msra.mxu0 0.0
    %3770 = vmatpush.msra.mxu0 0.0
    %3771 = vmatpush.msra.mxu0 0.0
    %3772 = vmatpush.msra.mxu0 0.0
    %3773 = vmatpush.msra.mxu0 0.0
    %v3774 = vand.u32 %v3627, 4294901760
    %v3775 = vsub.f32 %v3627, %v3774
    %v3776 = vand.u32 %v3775, 4294901760
    %3777 = vmatpush.msra.mxu0 %v3776
    %v3778 = vand.u32 %v3626, 4294901760
    %v3779 = vsub.f32 %v3626, %v3778
    %v3780 = vand.u32 %v3779, 4294901760
    %3781 = vmatpush.msra.mxu0 %v3780
    %v3782 = vand.u32 %v3625, 4294901760
    %v3783 = vsub.f32 %v3625, %v3782
    %v3784 = vand.u32 %v3783, 4294901760
    %3785 = vmatpush.msra.mxu0 %v3784
    %v3786 = vand.u32 %v3624, 4294901760
    %v3787 = vsub.f32 %v3624, %v3786
    %v3788 = vand.u32 %v3787, 4294901760
    %3789 = vmatpush.msra.mxu0 %v3788
    %v3790 = vand.u32 %v3633, 4294901760
    %3791 = vmatmul.f32.gmra.mxu0 %v3790
    %v3792 = vpop.f32.mrf.mxu0
    %v3793 = vadd.f32 %v3760, %v3792
    %3794 = vdwg.mxu0
    %3795 = vmatpush.msra.mxu0 0.0
    %3796 = vmatpush.msra.mxu0 0.0
    %3797 = vmatpush.msra.mxu0 0.0
    %3798 = vmatpush.msra.mxu0 0.0
    %3799 = vmatpush.msra.mxu0 0.0
    %3800 = vmatpush.msra.mxu0 0.0
    %3801 = vmatpush.msra.mxu0 0.0
    %3802 = vmatpush.msra.mxu0 0.0
    %3803 = vmatpush.msra.mxu0 0.0
    %3804 = vmatpush.msra.mxu0 0.0
    %3805 = vmatpush.msra.mxu0 0.0
    %3806 = vmatpush.msra.mxu0 0.0
    %v3807 = vand.u32 %v3627, 4294901760
    %3808 = vmatpush.msra.mxu0 %v3807
    %v3809 = vand.u32 %v3626, 4294901760
    %3810 = vmatpush.msra.mxu0 %v3809
    %v3811 = vand.u32 %v3625, 4294901760
    %3812 = vmatpush.msra.mxu0 %v3811
    %v3813 = vand.u32 %v3624, 4294901760
    %3814 = vmatpush.msra.mxu0 %v3813
    %v3815 = vand.u32 %v3633, 4294901760
    %3816 = vmatmul.f32.gmra.mxu0 %v3815
    %v3817 = vpop.f32.mrf.mxu0
    %v3818 = vadd.f32 %v3793, %v3817
    %3819 = vdwg.mxu0
    %v3820 = vmax.f32 %v3818, 0.0
    %v3821 = vld [vmem:[%s15] sm:$0xff]
    %v3822 = vld [vmem:[%s15 + $0x8] sm:$0xff]
    %v3823 = vld [vmem:[%s15 + $0x10] sm:$0xff]
    %v3824 = vld [vmem:[%s15 + $0x18] sm:$0xff]
    %v3825 = vld [vmem:[%s16] sm:$0x1]
    %v3827 = vperm.slane %v3825, 0
    %v3830 = vsel %vm3229, %v3820, 0
    %3832 = vmatpush.msra.mxu0 0.0
    %3833 = vmatpush.msra.mxu0 0.0
    %3834 = vmatpush.msra.mxu0 0.0
    %3835 = vmatpush.msra.mxu0 0.0
    %3836 = vmatpush.msra.mxu0 0.0
    %3837 = vmatpush.msra.mxu0 0.0
    %3838 = vmatpush.msra.mxu0 0.0
    %3839 = vmatpush.msra.mxu0 0.0
    %3840 = vmatpush.msra.mxu0 0.0
    %3841 = vmatpush.msra.mxu0 0.0
    %3842 = vmatpush.msra.mxu0 0.0
    %3843 = vmatpush.msra.mxu0 0.0
    %v3844 = vand.u32 %v3824, 4294901760
    %3845 = vmatpush.msra.mxu0 %v3844
    %v3846 = vand.u32 %v3823, 4294901760
    %3847 = vmatpush.msra.mxu0 %v3846
    %v3848 = vand.u32 %v3822, 4294901760
    %3849 = vmatpush.msra.mxu0 %v3848
    %v3850 = vand.u32 %v3821, 4294901760
    %3851 = vmatpush.msra.mxu0 %v3850
    %v3852 = vand.u32 %v3830, 4294901760
    %v3853 = vsub.f32 %v3830, %v3852
    %v3854 = vand.u32 %v3853, 4294901760
    %v3855 = vsub.f32 %v3853, %v3854
    %v3856 = vand.u32 %v3855, 4294901760
    %3857 = vmatmul.f32.gmra.mxu0 %v3856
    %v3858 = vpop.f32.mrf.mxu0
    %v3859 = vadd.f32 %v3827, %v3858
    %3860 = vdwg.mxu0
    %3861 = vmatpush.msra.mxu0 0.0
    %3862 = vmatpush.msra.mxu0 0.0
    %3863 = vmatpush.msra.mxu0 0.0
    %3864 = vmatpush.msra.mxu0 0.0
    %3865 = vmatpush.msra.mxu0 0.0
    %3866 = vmatpush.msra.mxu0 0.0
    %3867 = vmatpush.msra.mxu0 0.0
    %3868 = vmatpush.msra.mxu0 0.0
    %3869 = vmatpush.msra.mxu0 0.0
    %3870 = vmatpush.msra.mxu0 0.0
    %3871 = vmatpush.msra.mxu0 0.0
    %3872 = vmatpush.msra.mxu0 0.0
    %v3873 = vand.u32 %v3824, 4294901760
    %v3874 = vsub.f32 %v3824, %v3873
    %v3875 = vand.u32 %v3874, 4294901760
    %v3876 = vsub.f32 %v3874, %v3875
    %v3877 = vand.u32 %v3876, 4294901760
    %3878 = vmatpush.msra.mxu0 %v3877
    %v3879 = vand.u32 %v3823, 4294901760
    %v3880 = vsub.f32 %v3823, %v3879
    %v3881 = vand.u32 %v3880, 4294901760
    %v3882 = vsub.f32 %v3880, %v3881
    %v3883 = vand.u32 %v3882, 4294901760
    %3884 = vmatpush.msra.mxu0 %v3883
    %v3885 = vand.u32 %v3822, 4294901760
    %v3886 = vsub.f32 %v3822, %v3885
    %v3887 = vand.u32 %v3886, 4294901760
    %v3888 = vsub.f32 %v3886, %v3887
    %v3889 = vand.u32 %v3888, 4294901760
    %3890 = vmatpush.msra.mxu0 %v3889
    %v3891 = vand.u32 %v3821, 4294901760
    %v3892 = vsub.f32 %v3821, %v3891
    %v3893 = vand.u32 %v3892, 4294901760
    %v3894 = vsub.f32 %v3892, %v3893
    %v3895 = vand.u32 %v3894, 4294901760
    %3896 = vmatpush.msra.mxu0 %v3895
    %v3897 = vand.u32 %v3830, 4294901760
    %3898 = vmatmul.f32.gmra.mxu0 %v3897
    %v3899 = vpop.f32.mrf.mxu0
    %v3900 = vadd.f32 %v3859, %v3899
    %3901 = vdwg.mxu0
    %3902 = vmatpush.msra.mxu0 0.0
    %3903 = vmatpush.msra.mxu0 0.0
    %3904 = vmatpush.msra.mxu0 0.0
    %3905 = vmatpush.msra.mxu0 0.0
    %3906 = vmatpush.msra.mxu0 0.0
    %3907 = vmatpush.msra.mxu0 0.0
    %3908 = vmatpush.msra.mxu0 0.0
    %3909 = vmatpush.msra.mxu0 0.0
    %3910 = vmatpush.msra.mxu0 0.0
    %3911 = vmatpush.msra.mxu0 0.0
    %3912 = vmatpush.msra.mxu0 0.0
    %3913 = vmatpush.msra.mxu0 0.0
    %v3914 = vand.u32 %v3824, 4294901760
    %v3915 = vsub.f32 %v3824, %v3914
    %3916 = vmatpush.msra.mxu0 %v3915
    %v3917 = vand.u32 %v3823, 4294901760
    %v3918 = vsub.f32 %v3823, %v3917
    %3919 = vmatpush.msra.mxu0 %v3918
    %v3920 = vand.u32 %v3822, 4294901760
    %v3921 = vsub.f32 %v3822, %v3920
    %3922 = vmatpush.msra.mxu0 %v3921
    %v3923 = vand.u32 %v3821, 4294901760
    %v3924 = vsub.f32 %v3821, %v3923
    %3925 = vmatpush.msra.mxu0 %v3924
    %v3926 = vand.u32 %v3830, 4294901760
    %v3927 = vsub.f32 %v3830, %v3926
    %3928 = vmatmul.f32.gmra.mxu0 %v3927
    %v3929 = vpop.f32.mrf.mxu0
    %v3930 = vadd.f32 %v3900, %v3929
    %3931 = vdwg.mxu0
    %3932 = vmatpush.msra.mxu0 0.0
    %3933 = vmatpush.msra.mxu0 0.0
    %3934 = vmatpush.msra.mxu0 0.0
    %3935 = vmatpush.msra.mxu0 0.0
    %3936 = vmatpush.msra.mxu0 0.0
    %3937 = vmatpush.msra.mxu0 0.0
    %3938 = vmatpush.msra.mxu0 0.0
    %3939 = vmatpush.msra.mxu0 0.0
    %3940 = vmatpush.msra.mxu0 0.0
    %3941 = vmatpush.msra.mxu0 0.0
    %3942 = vmatpush.msra.mxu0 0.0
    %3943 = vmatpush.msra.mxu0 0.0
    %v3944 = vand.u32 %v3824, 4294901760
    %3945 = vmatpush.msra.mxu0 %v3944
    %v3946 = vand.u32 %v3823, 4294901760
    %3947 = vmatpush.msra.mxu0 %v3946
    %v3948 = vand.u32 %v3822, 4294901760
    %3949 = vmatpush.msra.mxu0 %v3948
    %v3950 = vand.u32 %v3821, 4294901760
    %3951 = vmatpush.msra.mxu0 %v3950
    %v3952 = vand.u32 %v3830, 4294901760
    %v3953 = vsub.f32 %v3830, %v3952
    %v3954 = vand.u32 %v3953, 4294901760
    %3955 = vmatmul.f32.gmra.mxu0 %v3954
    %v3956 = vpop.f32.mrf.mxu0
    %v3957 = vadd.f32 %v3930, %v3956
    %3958 = vdwg.mxu0
    %3959 = vmatpush.msra.mxu0 0.0
    %3960 = vmatpush.msra.mxu0 0.0
    %3961 = vmatpush.msra.mxu0 0.0
    %3962 = vmatpush.msra.mxu0 0.0
    %3963 = vmatpush.msra.mxu0 0.0
    %3964 = vmatpush.msra.mxu0 0.0
    %3965 = vmatpush.msra.mxu0 0.0
    %3966 = vmatpush.msra.mxu0 0.0
    %3967 = vmatpush.msra.mxu0 0.0
    %3968 = vmatpush.msra.mxu0 0.0
    %3969 = vmatpush.msra.mxu0 0.0
    %3970 = vmatpush.msra.mxu0 0.0
    %v3971 = vand.u32 %v3824, 4294901760
    %v3972 = vsub.f32 %v3824, %v3971
    %v3973 = vand.u32 %v3972, 4294901760
    %3974 = vmatpush.msra.mxu0 %v3973
    %v3975 = vand.u32 %v3823, 4294901760
    %v3976 = vsub.f32 %v3823, %v3975
    %v3977 = vand.u32 %v3976, 4294901760
    %3978 = vmatpush.msra.mxu0 %v3977
    %v3979 = vand.u32 %v3822, 4294901760
    %v3980 = vsub.f32 %v3822, %v3979
    %v3981 = vand.u32 %v3980, 4294901760
    %3982 = vmatpush.msra.mxu0 %v3981
    %v3983 = vand.u32 %v3821, 4294901760
    %v3984 = vsub.f32 %v3821, %v3983
    %v3985 = vand.u32 %v3984, 4294901760
    %3986 = vmatpush.msra.mxu0 %v3985
    %v3987 = vand.u32 %v3830, 4294901760
    %3988 = vmatmul.f32.gmra.mxu0 %v3987
    %v3989 = vpop.f32.mrf.mxu0
    %v3990 = vadd.f32 %v3957, %v3989
    %3991 = vdwg.mxu0
    %3992 = vmatpush.msra.mxu0 0.0
    %3993 = vmatpush.msra.mxu0 0.0
    %3994 = vmatpush.msra.mxu0 0.0
    %3995 = vmatpush.msra.mxu0 0.0
    %3996 = vmatpush.msra.mxu0 0.0
    %3997 = vmatpush.msra.mxu0 0.0
    %3998 = vmatpush.msra.mxu0 0.0
    %3999 = vmatpush.msra.mxu0 0.0
    %4000 = vmatpush.msra.mxu0 0.0
    %4001 = vmatpush.msra.mxu0 0.0
    %4002 = vmatpush.msra.mxu0 0.0
    %4003 = vmatpush.msra.mxu0 0.0
    %v4004 = vand.u32 %v3824, 4294901760
    %4005 = vmatpush.msra.mxu0 %v4004
    %v4006 = vand.u32 %v3823, 4294901760
    %4007 = vmatpush.msra.mxu0 %v4006
    %v4008 = vand.u32 %v3822, 4294901760
    %4009 = vmatpush.msra.mxu0 %v4008
    %v4010 = vand.u32 %v3821, 4294901760
    %4011 = vmatpush.msra.mxu0 %v4010
    %v4012 = vand.u32 %v3830, 4294901760
    %4013 = vmatmul.f32.gmra.mxu0 %v4012
    %v4014 = vpop.f32.mrf.mxu0
    %v4015 = vadd.f32 %v3990, %v4014
    %4016 = vdwg.mxu0
    %4017 = vst [vmem:[#allocation2] sm:$0xff] %v4015
    // Predicated region
    $region70: #{tpu_custom_call.1} parent=1 // pred_check
      _
    $region71: #{tpu_custom_call.1} parent=1 // pred_check_branch
      %4019 = sbr.rel (0) target = $region73
    $region72: #{tpu_custom_call.1} parent=1 // pred_region
      %4021 = vsyncadd [#allocation3], 0
      %s4023 = sshll.u32 [#allocation2], 4
      %s4024 = int_to_ptr.vmem [resolvable:$true] %s4023
      %s4025 = sshll.u32 %s17, 4
      %s4026 = int_to_ptr.hbm [resolvable:$true] %s4025
      %4028 = dma.vmem_to_hbm [thread:$0]  %s4024, 128, %s4026, [#allocation3]
    $region73: #{tpu_custom_call.1} parent=1 // pred_fallthru
      _
    // Predicated region
    $region74: #{tpu_custom_call.1} parent=1 // pred_check
      _
    $region75: #{tpu_custom_call.1} parent=1 // pred_check_branch
      %4030 = sbr.rel (0) target = $region77
    $region76: #{tpu_custom_call.1} parent=1 // pred_region
      %4032 = dma.done [#allocation3], 128
    $region77: #{tpu_custom_call.1} parent=1 // pred_fallthru
      _
    %4033 = vsyncpa [#allocation3], 1

</llo_original>
